<compile_context>
chip_gen: v5e
topology: v5e:2x2
jax: 0.10.0
libtpu: 0.0.40
codegen_flags: <defaults>
</compile_context>

<pallas_src>
import functools

import jax
import jax.numpy as jnp
import numpy as np
from jax import lax
from jax.experimental import pallas as pl
from jax.experimental.pallas import tpu as pltpu

HIDDEN1 = 400          # l1 output (logical)
HIDDEN2 = 300          # l2 output == GRU hidden size (logical)
LANE = 128
SUB = 16               # bf16 sublane tile
UNROLL_MAX = 32        # static-Python-loop threshold for the recurrence
BATCH_TILE = 256       # batch block for the parallel grid axis (v7x 2-TC)


def _round_up(x, m):
    return ((x + m - 1) // m) * m


H1P = _round_up(HIDDEN1, LANE)     # 512
H2P = _round_up(HIDDEN2, LANE)     # 384


# ----------------------------------------------------------------------------
# Pallas kernel: full forward pass for one batch block
# ----------------------------------------------------------------------------
def _gru_actor_kernel(state_ref, prev_ref,
                      w1_ref, b1_ref, w2_ref, b2_ref,
                      wih_ref, whh_hbm_ref, bih_ref, bhh_ref,
                      w3_ref, b3_ref,
                      out_ref,
                      whh_vmem, whh_sem,
                      *, planning_horizon, max_action, hidden_pad, act_sub):
    HP = hidden_pad
    bf16 = jnp.bfloat16
    f32 = jnp.float32

    # Kick off the whh HBM->VMEM copy (dominant transfer); it overlaps with
    # the encoder matmuls and the first gx matmul below.  Issued every grid
    # step so the kernel stays correct when batch blocks are split across TCs.
    whh_copy = pltpu.make_async_copy(whh_hbm_ref, whh_vmem, whh_sem)
    whh_copy.start()

    def gx_of(prev):                       # prev: (BT, act_sub) f32
        return jnp.dot(prev.astype(bf16), wih_ref[...],
                       preferred_element_type=f32) + bih_ref[...]

    def gh_of(h):                          # h: (BT, HP) f32
        return jnp.dot(h.astype(bf16), whh_vmem[...],
                       preferred_element_type=f32) + bhh_ref[...]

    def out_of(h):
        y = jnp.dot(h.astype(bf16), w3_ref[...],
                    preferred_element_type=f32) + b3_ref[...]
        return max_action * jnp.tanh(y)

    def gru_blend(gx, gh, h):
        # PyTorch GRUCell gate order [r, z, n]; each gate block is HP lanes
        # wide so every slice below is a lane-aligned free view.
        r = jax.nn.sigmoid(gx[:, 0:HP] + gh[:, 0:HP])
        z = jax.nn.sigmoid(gx[:, HP:2 * HP] + gh[:, HP:2 * HP])
        n = jnp.tanh(gx[:, 2 * HP:3 * HP] + r * gh[:, 2 * HP:3 * HP])
        return (1.0 - z) * n + z * h

    # ---- encoder: h0 = l2(relu(l1(state)))  (runs under the whh DMA) -------
    a = jnp.dot(state_ref[...].astype(bf16), w1_ref[...],
                preferred_element_type=f32) + b1_ref[...]
    a = jnp.maximum(a, 0.0)
    h = jnp.dot(a.astype(bf16), w2_ref[...],
                preferred_element_type=f32) + b2_ref[...]

    gx = gx_of(prev_ref[...])              # also independent of whh
    whh_copy.wait()                        # whh needed only from here on
    gh = gh_of(h)

    if planning_horizon <= UNROLL_MAX:
        # Static Python unroll: single basic block -> scheduler overlaps the
        # next-step gh matmul with this step's w3 matmul + tanh + store.
        for i in range(planning_horizon):
            h = gru_blend(gx, gh, h)
            if i + 1 < planning_horizon:
                gh = gh_of(h)              # issue the big recurrent matmul ...
            out = out_of(h)                # ... before the output tail
            out_ref[i] = out               # lane-dense (BT, 128) store
            if i + 1 < planning_horizon:
                gx = gx_of(out[:, :act_sub])
    else:
        def step(i, carry):
            gx, gh, h = carry
            h = gru_blend(gx, gh, h)
            gh_next = gh_of(h)             # one unused trailing gh; negligible
            out = out_of(h)
            out_ref[i] = out
            return (gx_of(out[:, :act_sub]), gh_next, h)
        lax.fori_loop(0, planning_horizon, step, (gx, gh, h), unroll=False)


# ----------------------------------------------------------------------------
# Wrapper
# ----------------------------------------------------------------------------
def gru_actor_forward(padded_params, state, previous_action,
                      planning_horizon=1, max_action=1.0):
    p = padded_params
    B, input_dim = state.shape
    A = previous_action.shape[1]
    H = int(planning_horizon)

    I_PAD = p["w1p"].shape[0]
    A_SUB = p["wih_p"].shape[0]
    A_PAD = p["w3p"].shape[1]
    assert A <= A_PAD and input_dim <= I_PAD

    Bp = _round_up(B, 8)
    if Bp > BATCH_TILE:
        BT = BATCH_TILE
        Bp = _round_up(Bp, BT)
    else:
        BT = Bp
    nb = Bp // BT

    state_p = jnp.zeros((Bp, I_PAD), jnp.float32)
    state_p = state_p.at[:B, :input_dim].set(state.astype(jnp.float32))
    prev_p = jnp.zeros((Bp, A_SUB), jnp.float32)
    prev_p = prev_p.at[:B, :A].set(previous_action.astype(jnp.float32))

    args = (state_p, prev_p,
            p["w1p"], p["b1p"], p["w2p"], p["b2p"],
            p["wih_p"], p["whh_p"], p["bih_p"], p["bhh_p"],
            p["w3p"], p["b3p"])

    def full_spec(arr):                    # whole array, VMEM-resident
        nd = arr.ndim
        return pl.BlockSpec(arr.shape, lambda b, _nd=nd: (0,) * _nd)

    in_specs = [
        pl.BlockSpec((BT, I_PAD), lambda b: (b, 0)),   # state (batch-tiled)
        pl.BlockSpec((BT, A_SUB), lambda b: (b, 0)),   # previous_action
        full_spec(p["w1p"]), full_spec(p["b1p"]),
        full_spec(p["w2p"]), full_spec(p["b2p"]),
        full_spec(p["wih_p"]),
        pl.BlockSpec(memory_space=pl.ANY),             # whh: manual async DMA
        full_spec(p["bih_p"]), full_spec(p["bhh_p"]),
        full_spec(p["w3p"]), full_spec(p["b3p"]),
    ]
    out_specs = pl.BlockSpec((H, BT, A_PAD), lambda b: (0, b, 0))

    kernel = functools.partial(
        _gru_actor_kernel,
        planning_horizon=H, max_action=float(max_action),
        hidden_pad=H2P, act_sub=A_SUB)

    flops = (2 * Bp * (I_PAD * H1P + H1P * H2P)
             + 2 * Bp * H * (A_SUB * 3 * H2P + H2P * 3 * H2P + H2P * A_PAD))
    transcendentals = Bp * H * (3 * H2P + A_PAD)
    bytes_accessed = int(sum(int(np.prod(x.shape)) * x.dtype.itemsize
                             for x in args) + H * Bp * A_PAD * 4)

    out = pl.pallas_call(
        kernel,
        out_shape=jax.ShapeDtypeStruct((H, Bp, A_PAD), jnp.float32),
        grid_spec=pltpu.PrefetchScalarGridSpec(
            num_scalar_prefetch=0,
            grid=(nb,),
            in_specs=in_specs,
            out_specs=out_specs,
            scratch_shapes=[pltpu.VMEM((H2P, 3 * H2P), jnp.bfloat16),
                            pltpu.SemaphoreType.DMA]),
        compiler_params=pltpu.CompilerParams(
            dimension_semantics=("parallel",)),
        cost_estimate=pl.CostEstimate(flops=flops,
                                      transcendentals=transcendentals,
                                      bytes_accessed=bytes_accessed),
    )(*args)

    out = out[:, :B, :A]                       # (horizon, B, A)
    if H > 1:
        return jnp.transpose(out, (1, 0, 2))   # (B, horizon, A) == stack(dim=1)
    return out[0]                              # (B, A)


# ----------------------------------------------------------------------------
# Deterministic parameter init (same shapes / fan-in bounds as the nn.Module)
# ----------------------------------------------------------------------------
def init_params(key, input_dim, action_dim):
    ks = jax.random.split(key, 12)

    def linear(kw, kb, fan_in, fan_out):
        bound = 1.0 / np.sqrt(fan_in)
        w = jax.random.uniform(kw, (fan_in, fan_out), jnp.float32, -bound, bound)
        b = jax.random.uniform(kb, (1, fan_out), jnp.float32, -bound, bound)
        return w, b

    w1t, b1 = linear(ks[0], ks[1], input_dim, HIDDEN1)     # l1: input_dim -> 400
    w2t, b2 = linear(ks[2], ks[3], HIDDEN1, HIDDEN2)       # l2: 400 -> 300

    gb = 1.0 / np.sqrt(HIDDEN2)                            # GRUCell bound
    wih_t = jax.random.uniform(ks[4], (action_dim, 3 * HIDDEN2), jnp.float32, -gb, gb)
    whh_t = jax.random.uniform(ks[5], (HIDDEN2, 3 * HIDDEN2), jnp.float32, -gb, gb)
    bih = jax.random.uniform(ks[6], (1, 3 * HIDDEN2), jnp.float32, -gb, gb)
    bhh = jax.random.uniform(ks[7], (1, 3 * HIDDEN2), jnp.float32, -gb, gb)

    w3t, b3 = linear(ks[8], ks[9], HIDDEN2, action_dim)    # l3: 300 -> action_dim

    return dict(w1t=w1t, b1=b1, w2t=w2t, b2=b2,
                wih_t=wih_t, whh_t=whh_t, bih=bih, bhh=bhh,
                w3t=w3t, b3=b3)


# ----------------------------------------------------------------------------
# One-time layout prep: lane-aligned, zero-padded, bf16 weights / f32 biases
# ----------------------------------------------------------------------------
def pad_params(params, input_dim, action_dim):
    H = HIDDEN2
    bf16 = jnp.bfloat16
    I_PAD = _round_up(input_dim, SUB)
    A_SUB = _round_up(action_dim, SUB)      # real-width wih rows (no 128 pad)
    A_PAD = _round_up(action_dim, LANE)     # lane-dense output width

    w1p = jnp.zeros((I_PAD, H1P), jnp.float32).at[:input_dim, :HIDDEN1].set(params["w1t"])
    b1p = jnp.zeros((1, H1P), jnp.float32).at[:, :HIDDEN1].set(params["b1"])

    w2p = jnp.zeros((H1P, H2P), jnp.float32).at[:HIDDEN1, :H].set(params["w2t"])
    b2p = jnp.zeros((1, H2P), jnp.float32).at[:, :H].set(params["b2"])

    wih_p = jnp.zeros((A_SUB, 3 * H2P), jnp.float32)
    whh_p = jnp.zeros((H2P, 3 * H2P), jnp.float32)
    bih_p = jnp.zeros((1, 3 * H2P), jnp.float32)
    bhh_p = jnp.zeros((1, 3 * H2P), jnp.float32)
    for g in range(3):                      # [r, z, n] -> lane-aligned 384 blocks
        src = slice(g * H, (g + 1) * H)
        dst = slice(g * H2P, g * H2P + H)
        wih_p = wih_p.at[:action_dim, dst].set(params["wih_t"][:, src])
        whh_p = whh_p.at[:H, dst].set(params["whh_t"][:, src])
        bih_p = bih_p.at[:, dst].set(params["bih"][:, src])
        bhh_p = bhh_p.at[:, dst].set(params["bhh"][:, src])

    w3p = jnp.zeros((H2P, A_PAD), jnp.float32).at[:H, :action_dim].set(params["w3t"])
    b3p = jnp.zeros((1, A_PAD), jnp.float32).at[:, :action_dim].set(params["b3"])

    # Weights bf16 (half DMA, single-pass MXU); biases stay f32 (post-acc add).
    return dict(w1p=w1p.astype(bf16), b1p=b1p,
                w2p=w2p.astype(bf16), b2p=b2p,
                wih_p=wih_p.astype(bf16), whh_p=whh_p.astype(bf16),
                bih_p=bih_p, bhh_p=bhh_p,
                w3p=w3p.astype(bf16), b3p=b3p)


# ----------------------------------------------------------------------------
# Pure-JAX f32 reference (mirrors the PyTorch forward) for correctness checks
# ----------------------------------------------------------------------------
def reference_forward(params, state, previous_action,
                      planning_horizon=1, max_action=1.0):
    H = HIDDEN2
    a = jax.nn.relu(state @ params["w1t"] + params["b1"])
    h = a @ params["w2t"] + params["b2"]
    prev = previous_action
    outs = []
    for _ in range(planning_horizon):
        gx = prev @ params["wih_t"] + params["bih"]
        gh = h @ params["whh_t"] + params["bhh"]
        r = jax.nn.sigmoid(gx[:, :H] + gh[:, :H])
        z = jax.nn.sigmoid(gx[:, H:2 * H] + gh[:, H:2 * H])
        n = jnp.tanh(gx[:, 2 * H:] + r * gh[:, 2 * H:])
        h = (1.0 - z) * n + z * h
        out = max_action * jnp.tanh(h @ params["w3t"] + params["b3"])
        outs.append(out)
        prev = out
    if planning_horizon > 1:
        return jnp.stack(outs, axis=1)
    return outs[0]


# ----------------------------------------------------------------------------
if __name__ == "__main__":
    key = jax.random.PRNGKey(0)
    k_params, k_state, k_act = jax.random.split(key, 3)

    batch = 8
    input_dim = 32
    action_dim = 8
    max_action = 2.0

    params = init_params(k_params, input_dim, action_dim)
    padded = pad_params(params, input_dim, action_dim)

    state = jax.random.normal(k_state, (batch, input_dim), jnp.float32)
    previous_action = jax.random.uniform(k_act, (batch, action_dim),
                                         jnp.float32, -1.0, 1.0)

    # Tolerances are looser than v1 because weights / matmul LHS are bf16
    # (f32 accumulation); this is the intended accuracy trade-off.
    TOL = dict(rtol=5e-2, atol=5e-2)

    # planning_horizon = 1  -> (B, A)
    out1 = gru_actor_forward(padded, state, previous_action,
                             planning_horizon=1, max_action=max_action)
    out1 = jax.block_until_ready(out1)
    ref1 = reference_forward(params, state, previous_action,
                             planning_horizon=1, max_action=max_action)
    np.testing.assert_allclose(np.asarray(out1), np.asarray(ref1), **TOL)
    assert out1.shape == (batch, action_dim)

    # planning_horizon = 4  -> (B, horizon, A)
    out4 = gru_actor_forward(padded, state, previous_action,
                             planning_horizon=4, max_action=max_action)
    out4 = jax.block_until_ready(out4)
    ref4 = reference_forward(params, state, previous_action,
                             planning_horizon=4, max_action=max_action)
    np.testing.assert_allclose(np.asarray(out4), np.asarray(ref4), **TOL)
    assert out4.shape == (batch, 4, action_dim)

    print("KERNEL_OK")
</pallas_src>

<mosaic_0001>
module attributes {stable_mosaic.version = 11 : i64} {
  func.func @_gru_actor_kernel(%arg0: i32, %arg1: memref<8x32xf32, #tpu.memory_space<vmem>>, %arg2: memref<8x16xf32, #tpu.memory_space<vmem>>, %arg3: memref<32x512xbf16, #tpu.memory_space<vmem>>, %arg4: memref<1x512xf32, #tpu.memory_space<vmem>>, %arg5: memref<512x384xbf16, #tpu.memory_space<vmem>>, %arg6: memref<1x384xf32, #tpu.memory_space<vmem>>, %arg7: memref<16x1152xbf16, #tpu.memory_space<vmem>>, %arg8: memref<384x1152xbf16, #tpu.memory_space<any>>, %arg9: memref<1x1152xf32, #tpu.memory_space<vmem>>, %arg10: memref<1x1152xf32, #tpu.memory_space<vmem>>, %arg11: memref<384x128xbf16, #tpu.memory_space<vmem>>, %arg12: memref<1x128xf32, #tpu.memory_space<vmem>>, %arg13: memref<1x8x128xf32, #tpu.memory_space<vmem>>, %arg14: memref<384x1152xbf16, #tpu.memory_space<vmem>>, %arg15: memref<!tpu.dma_semaphore, #tpu.memory_space<semaphore_mem>>) attributes {dimension_semantics = [#tpu.dimension_semantics<parallel>], iteration_bounds = array<i64: 1>, scalar_prefetch = 0 : i64, scratch_operands = 2 : i64, tpu.core_type = #tpu.core_type<tc>, window_params = [{transform_indices = @transform_0, window_bounds = array<i64: 8, 32>}, {transform_indices = @transform_1, window_bounds = array<i64: 8, 16>}, {pipeline_mode = #tpu.pipeline_mode<synchronous>, transform_indices = @transform_2, window_bounds = array<i64: 32, 512>}, {pipeline_mode = #tpu.pipeline_mode<synchronous>, transform_indices = @transform_3, window_bounds = array<i64: 1, 512>}, {pipeline_mode = #tpu.pipeline_mode<synchronous>, transform_indices = @transform_4, window_bounds = array<i64: 512, 384>}, {pipeline_mode = #tpu.pipeline_mode<synchronous>, transform_indices = @transform_5, window_bounds = array<i64: 1, 384>}, {pipeline_mode = #tpu.pipeline_mode<synchronous>, transform_indices = @transform_6, window_bounds = array<i64: 16, 1152>}, {}, {pipeline_mode = #tpu.pipeline_mode<synchronous>, transform_indices = @transform_8, window_bounds = array<i64: 1, 1152>}, {pipeline_mode = #tpu.pipeline_mode<synchronous>, transform_indices = @transform_9, window_bounds = array<i64: 1, 1152>}, {pipeline_mode = #tpu.pipeline_mode<synchronous>, transform_indices = @transform_10, window_bounds = array<i64: 384, 128>}, {pipeline_mode = #tpu.pipeline_mode<synchronous>, transform_indices = @transform_11, window_bounds = array<i64: 1, 128>}, {transform_indices = @transform_12, window_bounds = array<i64: 1, 8, 128>}]} {
    tpu.enqueue_dma source(%arg8 : memref<384x1152xbf16, #tpu.memory_space<any>>) target(%arg14 : memref<384x1152xbf16, #tpu.memory_space<vmem>>) target_semaphore(%arg15 : memref<!tpu.dma_semaphore, #tpu.memory_space<semaphore_mem>>)
    %c0 = arith.constant 0 : index
    %c0_0 = arith.constant 0 : index
    %0 = vector.load %arg1[%c0, %c0_0] : memref<8x32xf32, #tpu.memory_space<vmem>>, vector<8x32xf32>
    %1 = arith.truncf %0 : vector<8x32xf32> to vector<8x32xbf16>
    %c0_1 = arith.constant 0 : index
    %c0_2 = arith.constant 0 : index
    %2 = vector.load %arg3[%c0_1, %c0_2] : memref<32x512xbf16, #tpu.memory_space<vmem>>, vector<32x512xbf16>
    %cst = arith.constant dense<0.000000e+00> : vector<8x512xf32>
    %3 = tpu.matmul %1, %2, %cst {dimension_numbers = #tpu.dot_dimension_numbers<[1], [0], [0], [1], [0, 0, 1, 1], [], []>} : vector<8x32xbf16>, vector<32x512xbf16>, vector<8x512xf32> -> vector<8x512xf32>
    %c0_3 = arith.constant 0 : index
    %c0_4 = arith.constant 0 : index
    %4 = vector.load %arg4[%c0_3, %c0_4] : memref<1x512xf32, #tpu.memory_space<vmem>>, vector<1x512xf32>
    %5 = vector.broadcast %4 : vector<1x512xf32> to vector<8x512xf32>
    %6 = arith.addf %3, %5 : vector<8x512xf32>
    %cst_5 = arith.constant 0.000000e+00 : f32
    %7 = vector.broadcast %cst_5 : f32 to vector<8x512xf32>
    %8 = arith.maximumf %6, %7 : vector<8x512xf32>
    %9 = arith.truncf %8 : vector<8x512xf32> to vector<8x512xbf16>
    %c0_6 = arith.constant 0 : index
    %c0_7 = arith.constant 0 : index
    %10 = vector.load %arg5[%c0_6, %c0_7] : memref<512x384xbf16, #tpu.memory_space<vmem>>, vector<512x384xbf16>
    %cst_8 = arith.constant dense<0.000000e+00> : vector<8x384xf32>
    %11 = tpu.matmul %9, %10, %cst_8 {dimension_numbers = #tpu.dot_dimension_numbers<[1], [0], [0], [1], [0, 0, 1, 1], [], []>} : vector<8x512xbf16>, vector<512x384xbf16>, vector<8x384xf32> -> vector<8x384xf32>
    %c0_9 = arith.constant 0 : index
    %c0_10 = arith.constant 0 : index
    %12 = vector.load %arg6[%c0_9, %c0_10] : memref<1x384xf32, #tpu.memory_space<vmem>>, vector<1x384xf32>
    %13 = vector.broadcast %12 : vector<1x384xf32> to vector<8x384xf32>
    %14 = arith.addf %11, %13 : vector<8x384xf32>
    %c0_11 = arith.constant 0 : index
    %c0_12 = arith.constant 0 : index
    %15 = vector.load %arg2[%c0_11, %c0_12] : memref<8x16xf32, #tpu.memory_space<vmem>>, vector<8x16xf32>
    %16 = arith.truncf %15 : vector<8x16xf32> to vector<8x16xbf16>
    %c0_13 = arith.constant 0 : index
    %c0_14 = arith.constant 0 : index
    %17 = vector.load %arg7[%c0_13, %c0_14] : memref<16x1152xbf16, #tpu.memory_space<vmem>>, vector<16x1152xbf16>
    %cst_15 = arith.constant dense<0.000000e+00> : vector<8x1152xf32>
    %18 = tpu.matmul %16, %17, %cst_15 {dimension_numbers = #tpu.dot_dimension_numbers<[1], [0], [0], [1], [0, 0, 1, 1], [], []>} : vector<8x16xbf16>, vector<16x1152xbf16>, vector<8x1152xf32> -> vector<8x1152xf32>
    %c0_16 = arith.constant 0 : index
    %c0_17 = arith.constant 0 : index
    %19 = vector.load %arg9[%c0_16, %c0_17] : memref<1x1152xf32, #tpu.memory_space<vmem>>, vector<1x1152xf32>
    %20 = vector.broadcast %19 : vector<1x1152xf32> to vector<8x1152xf32>
    %21 = arith.addf %18, %20 : vector<8x1152xf32>
    tpu.wait_dma2 semaphore(%arg15 : memref<!tpu.dma_semaphore, #tpu.memory_space<semaphore_mem>>) src(%arg8 : memref<384x1152xbf16, #tpu.memory_space<any>>) dst(%arg14 : memref<384x1152xbf16, #tpu.memory_space<vmem>>)
    %22 = arith.truncf %14 : vector<8x384xf32> to vector<8x384xbf16>
    %c0_18 = arith.constant 0 : index
    %c0_19 = arith.constant 0 : index
    %23 = vector.load %arg14[%c0_18, %c0_19] : memref<384x1152xbf16, #tpu.memory_space<vmem>>, vector<384x1152xbf16>
    %cst_20 = arith.constant dense<0.000000e+00> : vector<8x1152xf32>
    %24 = tpu.matmul %22, %23, %cst_20 {dimension_numbers = #tpu.dot_dimension_numbers<[1], [0], [0], [1], [0, 0, 1, 1], [], []>} : vector<8x384xbf16>, vector<384x1152xbf16>, vector<8x1152xf32> -> vector<8x1152xf32>
    %c0_21 = arith.constant 0 : index
    %c0_22 = arith.constant 0 : index
    %25 = vector.load %arg10[%c0_21, %c0_22] : memref<1x1152xf32, #tpu.memory_space<vmem>>, vector<1x1152xf32>
    %26 = vector.broadcast %25 : vector<1x1152xf32> to vector<8x1152xf32>
    %27 = arith.addf %24, %26 : vector<8x1152xf32>
    %28 = vector.extract_strided_slice %21 {offsets = [0, 0], sizes = [8, 384], strides = [1, 1]} : vector<8x1152xf32> to vector<8x384xf32>
    %29 = vector.extract_strided_slice %27 {offsets = [0, 0], sizes = [8, 384], strides = [1, 1]} : vector<8x1152xf32> to vector<8x384xf32>
    %30 = arith.addf %28, %29 : vector<8x384xf32>
    %31 = arith.negf %30 : vector<8x384xf32>
    %32 = math.exp %31 : vector<8x384xf32>
    %cst_23 = arith.constant 1.000000e+00 : f32
    %33 = vector.broadcast %cst_23 : f32 to vector<8x384xf32>
    %34 = arith.addf %33, %32 : vector<8x384xf32>
    %35 = arith.divf %33, %34 : vector<8x384xf32>
    %36 = vector.extract_strided_slice %21 {offsets = [0, 384], sizes = [8, 384], strides = [1, 1]} : vector<8x1152xf32> to vector<8x384xf32>
    %37 = vector.extract_strided_slice %27 {offsets = [0, 384], sizes = [8, 384], strides = [1, 1]} : vector<8x1152xf32> to vector<8x384xf32>
    %38 = arith.addf %36, %37 : vector<8x384xf32>
    %39 = arith.negf %38 : vector<8x384xf32>
    %40 = math.exp %39 : vector<8x384xf32>
    %cst_24 = arith.constant 1.000000e+00 : f32
    %41 = vector.broadcast %cst_24 : f32 to vector<8x384xf32>
    %42 = arith.addf %41, %40 : vector<8x384xf32>
    %43 = arith.divf %41, %42 : vector<8x384xf32>
    %44 = vector.extract_strided_slice %21 {offsets = [0, 768], sizes = [8, 384], strides = [1, 1]} : vector<8x1152xf32> to vector<8x384xf32>
    %45 = vector.extract_strided_slice %27 {offsets = [0, 768], sizes = [8, 384], strides = [1, 1]} : vector<8x1152xf32> to vector<8x384xf32>
    %46 = arith.mulf %35, %45 : vector<8x384xf32>
    %47 = arith.addf %44, %46 : vector<8x384xf32>
    %48 = math.tanh %47 : vector<8x384xf32>
    %cst_25 = arith.constant 1.000000e+00 : f32
    %49 = vector.broadcast %cst_25 : f32 to vector<8x384xf32>
    %50 = arith.subf %49, %43 : vector<8x384xf32>
    %51 = arith.mulf %50, %48 : vector<8x384xf32>
    %52 = arith.mulf %43, %14 : vector<8x384xf32>
    %53 = arith.addf %51, %52 : vector<8x384xf32>
    %54 = arith.truncf %53 : vector<8x384xf32> to vector<8x384xbf16>
    %c0_26 = arith.constant 0 : index
    %c0_27 = arith.constant 0 : index
    %55 = vector.load %arg11[%c0_26, %c0_27] : memref<384x128xbf16, #tpu.memory_space<vmem>>, vector<384x128xbf16>
    %cst_28 = arith.constant dense<0.000000e+00> : vector<8x128xf32>
    %56 = tpu.matmul %54, %55, %cst_28 {dimension_numbers = #tpu.dot_dimension_numbers<[1], [0], [0], [1], [0, 0, 1, 1], [], []>} : vector<8x384xbf16>, vector<384x128xbf16>, vector<8x128xf32> -> vector<8x128xf32>
    %c0_29 = arith.constant 0 : index
    %c0_30 = arith.constant 0 : index
    %57 = vector.load %arg12[%c0_29, %c0_30] : memref<1x128xf32, #tpu.memory_space<vmem>>, vector<1x128xf32>
    %58 = vector.broadcast %57 : vector<1x128xf32> to vector<8x128xf32>
    %59 = arith.addf %56, %58 : vector<8x128xf32>
    %60 = math.tanh %59 : vector<8x128xf32>
    %cst_31 = arith.constant 2.000000e+00 : f32
    %61 = vector.broadcast %cst_31 : f32 to vector<8x128xf32>
    %62 = arith.mulf %61, %60 : vector<8x128xf32>
    %c0_32 = arith.constant 0 : index
    %c0_33 = arith.constant 0 : index
    %c0_34 = arith.constant 0 : index
    %63 = vector.load %arg13[%c0_32, %c0_33, %c0_34] : memref<1x8x128xf32, #tpu.memory_space<vmem>>, vector<1x8x128xf32>
    %64 = vector.shape_cast %63 : vector<1x8x128xf32> to vector<8x128xf32>
    %65 = vector.shape_cast %62 : vector<8x128xf32> to vector<1x8x128xf32>
    tpu.vector_store %arg13[%c0_32, %c0_33, %c0_34], %65 {strides = array<i32>} : memref<1x8x128xf32, #tpu.memory_space<vmem>>, vector<1x8x128xf32>,
    return
  }
  func.func @transform_0(%arg0: i32) -> (i32, i32) {
    %c0_i32 = arith.constant 0 : i32
    %c0_i32_0 = arith.constant 0 : i32
    return %arg0, %c0_i32 : i32, i32
  }
  func.func @transform_1(%arg0: i32) -> (i32, i32) {
    %c0_i32 = arith.constant 0 : i32
    %c0_i32_0 = arith.constant 0 : i32
    return %arg0, %c0_i32 : i32, i32
  }
  func.func @transform_2(%arg0: i32) -> (i32, i32) {
    %c0_i32 = arith.constant 0 : i32
    %c0_i32_0 = arith.constant 0 : i32
    %c0_i32_1 = arith.constant 0 : i32
    return %c0_i32, %c0_i32_0 : i32, i32
  }
  func.func @transform_3(%arg0: i32) -> (i32, i32) {
    %c0_i32 = arith.constant 0 : i32
    %c0_i32_0 = arith.constant 0 : i32
    %c0_i32_1 = arith.constant 0 : i32
    return %c0_i32, %c0_i32_0 : i32, i32
  }
  func.func @transform_4(%arg0: i32) -> (i32, i32) {
    %c0_i32 = arith.constant 0 : i32
    %c0_i32_0 = arith.constant 0 : i32
    %c0_i32_1 = arith.constant 0 : i32
    return %c0_i32, %c0_i32_0 : i32, i32
  }
  func.func @transform_5(%arg0: i32) -> (i32, i32) {
    %c0_i32 = arith.constant 0 : i32
    %c0_i32_0 = arith.constant 0 : i32
    %c0_i32_1 = arith.constant 0 : i32
    return %c0_i32, %c0_i32_0 : i32, i32
  }
  func.func @transform_6(%arg0: i32) -> (i32, i32) {
    %c0_i32 = arith.constant 0 : i32
    %c0_i32_0 = arith.constant 0 : i32
    %c0_i32_1 = arith.constant 0 : i32
    return %c0_i32, %c0_i32_0 : i32, i32
  }
  func.func @transform_8(%arg0: i32) -> (i32, i32) {
    %c0_i32 = arith.constant 0 : i32
    %c0_i32_0 = arith.constant 0 : i32
    %c0_i32_1 = arith.constant 0 : i32
    return %c0_i32, %c0_i32_0 : i32, i32
  }
  func.func @transform_9(%arg0: i32) -> (i32, i32) {
    %c0_i32 = arith.constant 0 : i32
    %c0_i32_0 = arith.constant 0 : i32
    %c0_i32_1 = arith.constant 0 : i32
    return %c0_i32, %c0_i32_0 : i32, i32
  }
  func.func @transform_10(%arg0: i32) -> (i32, i32) {
    %c0_i32 = arith.constant 0 : i32
    %c0_i32_0 = arith.constant 0 : i32
    %c0_i32_1 = arith.constant 0 : i32
    return %c0_i32, %c0_i32_0 : i32, i32
  }
  func.func @transform_11(%arg0: i32) -> (i32, i32) {
    %c0_i32 = arith.constant 0 : i32
    %c0_i32_0 = arith.constant 0 : i32
    %c0_i32_1 = arith.constant 0 : i32
    return %c0_i32, %c0_i32_0 : i32, i32
  }
  func.func @transform_12(%arg0: i32) -> (i32, i32, i32) {
    %c0_i32 = arith.constant 0 : i32
    %c0_i32_0 = arith.constant 0 : i32
    %c0_i32_1 = arith.constant 0 : i32
    return %c0_i32, %arg0, %c0_i32_0 : i32, i32, i32
  }
}

</mosaic_0001>

<llo_original>
// kernel: tpu_custom_call.1
$region0: #{tpu_custom_call.1}
  #allocation0 [shape = 'u32[]', space=smem, size = 0x4, offset = 0x4, fixed_abs, tag = 'smem constant byte address 0x4 - core index']
  #allocation1 [shape = 'u32[72,128]{1,0:T(1,128)}', space=vmem, size = 0x9000, scoped, tag = 'internal scratch']
  #allocation2 [shape = 'bf16[384,1152]{1,0:T(8,128)(2,1)}', space=vmem, size = 0xd8000, scoped, tag = 'scratch operand']
  #allocation3 [shape = 's32[1]{0}', space=sflag, size = 0x4, scoped, tag = 'scratch operand']
  #allocation20 [shape = 's32[]', space=sflag, size = 0x4, offset = 0, fixed_abs, tag = 'sflag constant byte address 0x0 - dummy sync flag']
  #allocation21 [shape = 's32[]', space=sflag, size = 0x4, offset = 0, fixed_abs, tag = 'sflag constant byte address 0x0 - dummy sync flag']
  #allocation22 [shape = 'u32[]', space=smem, size = 0x4, offset = 0x44, fixed_abs, tag = 'smem constant byte address 0x44 - assertion arg 0']
  #allocation23 [shape = 'u32[]', space=smem, size = 0x4, offset = 0x48, fixed_abs, tag = 'smem constant byte address 0x48 - assertion arg 1']
  %s0 = inlined_call_operand.hbm [shape: f32[8,32], index: 0, kind: input, shape index: {}]
  %s1 = inlined_call_operand.hbm [shape: f32[8,16], index: 1, kind: input, shape index: {}]
  %s2 = inlined_call_operand.hbm [shape: bf16[32,512], index: 2, kind: input, shape index: {}]
  %s3 = inlined_call_operand.hbm [shape: f32[1,512], index: 3, kind: input, shape index: {}]
  %s4 = inlined_call_operand.hbm [shape: bf16[512,384], index: 4, kind: input, shape index: {}]
  %s5 = inlined_call_operand.vmem [shape: f32[1,384], index: 5, kind: input, shape index: {}]
  %s6 = inlined_call_operand.hbm [shape: bf16[16,1152], index: 6, kind: input, shape index: {}]
  %s7 = inlined_call_operand.hbm [shape: bf16[384,1152], index: 7, kind: input, shape index: {}]
  %s8 = inlined_call_operand.hbm [shape: f32[1,1152], index: 8, kind: input, shape index: {}]
  %s9 = inlined_call_operand.hbm [shape: f32[1,1152], index: 9, kind: input, shape index: {}]
  %s10 = inlined_call_operand.hbm [shape: bf16[384,128], index: 10, kind: input, shape index: {}]
  %s11 = inlined_call_operand.vmem [shape: f32[1,128], index: 11, kind: input, shape index: {}]
  %s12 = inlined_call_operand.hbm [shape: f32[1,8,128], index: 12, kind: output, shape index: {}]
  %s13 = sld [smem:[#allocation0]]
  $region94: #{tpu_custom_call.1} parent=0
    _
  %s15 = ssub.s32 1, %s13
  %s16 = scalar_select 0, %s15, %s13
  $region1: #{tpu_custom_call.1} parent=0
    #allocation4 [shape = 'u8[4096]{0}', space=vmem, size = 0x1000, scoped, tag = 'input window, operand 0, single buffered']
    #allocation5 [shape = 's32[1]{0}', space=sflag, size = 0x4, scoped, tag = 'scoped memory for tpu_custom_call.1']
    #allocation6 [shape = 's32[1]{0}', space=sflag, size = 0x4, scoped, tag = 'scoped memory for tpu_custom_call.1']
    #allocation7 [shape = 'u8[4096]{0}', space=vmem, size = 0x1000, scoped, tag = 'input window, operand 1, single buffered']
    #allocation8 [shape = 's32[1]{0}', space=sflag, size = 0x4, scoped, tag = 'scoped memory for tpu_custom_call.1']
    #allocation9 [shape = 'u8[32768]{0}', space=vmem, size = 0x8000, scoped, tag = 'input window, operand 2, single buffered']
    #allocation10 [shape = 'u8[2048]{0}', space=vmem, size = 0x800, scoped, tag = 'input window, operand 3, single buffered']
    #allocation11 [shape = 's32[1]{0}', space=sflag, size = 0x4, scoped, tag = 'scoped memory for tpu_custom_call.1']
    #allocation12 [shape = 'u8[393216]{0}', space=vmem, size = 0x60000, scoped, tag = 'input window, operand 4, single buffered']
    #allocation13 [shape = 'u8[36864]{0}', space=vmem, size = 0x9000, scoped, tag = 'input window, operand 6, single buffered']
    #allocation14 [shape = 's32[1]{0}', space=sflag, size = 0x4, scoped, tag = 'scoped memory for tpu_custom_call.1']
    #allocation15 [shape = 'u8[4608]{0}', space=vmem, size = 0x1400, scoped, tag = 'input window, operand 8, single buffered']
    #allocation16 [shape = 'u8[4608]{0}', space=vmem, size = 0x1400, scoped, tag = 'input window, operand 9, single buffered']
    #allocation17 [shape = 's32[1]{0}', space=sflag, size = 0x4, scoped, tag = 'scoped memory for tpu_custom_call.1']
    #allocation18 [shape = 'u8[98304]{0}', space=vmem, size = 0x18000, scoped, tag = 'input window, operand 10, single buffered']
    #allocation19 [shape = 'u8[4096]{0}', space=vmem, size = 0x1000, scoped, tag = 'output window, operand 0, single buffered']
    %17 = vsyncpa [#allocation5], 0
    %18 = vsyncpa [#allocation8], 0
    %19 = vsyncpa [#allocation11], 0
    %20 = vsyncpa [#allocation14], 0
    %21 = vsyncpa [#allocation17], 0
    %22 = vsyncpa [#allocation6], 0
    // Predicated region
    $region2: #{tpu_custom_call.1} parent=1 // pred_check
      _
    $region3: #{tpu_custom_call.1} parent=1 // pred_check_branch
      %24 = sbr.rel (0) target = $region5
    $region4: #{tpu_custom_call.1} parent=1 // pred_region
      %26 = vsyncadd [#allocation5], 0
      %s28 = sshll.u32 %s0, 4
      %s29 = int_to_ptr.hbm [resolvable:$true] %s28
      %s30 = sshll.u32 [#allocation4], 4
      %s31 = int_to_ptr.vmem [resolvable:$true] %s30
      %33 = dma.hbm_to_vmem [thread:$0]  %s29, 128, %s31, [#allocation5]
    $region5: #{tpu_custom_call.1} parent=1 // pred_fallthru
      _
    // Predicated region
    $region6: #{tpu_custom_call.1} parent=1 // pred_check
      _
    $region7: #{tpu_custom_call.1} parent=1 // pred_check_branch
      %35 = sbr.rel (0) target = $region9
    $region8: #{tpu_custom_call.1} parent=1 // pred_region
      %37 = vsyncadd [#allocation8], 0
      %s39 = sshll.u32 %s1, 4
      %s40 = int_to_ptr.hbm [resolvable:$true] %s39
      %s41 = sshll.u32 [#allocation7], 4
      %s42 = int_to_ptr.vmem [resolvable:$true] %s41
      %44 = dma.hbm_to_vmem [thread:$0]  %s40, 128, %s42, [#allocation8]
    $region9: #{tpu_custom_call.1} parent=1 // pred_fallthru
      _
    // Predicated region
    $region10: #{tpu_custom_call.1} parent=1 // pred_check
      _
    $region11: #{tpu_custom_call.1} parent=1 // pred_check_branch
      %46 = sbr.rel (0) target = $region13
    $region12: #{tpu_custom_call.1} parent=1 // pred_region
      %48 = vsyncadd [#allocation8], 0
      %s49 = sshll.u32 %s2, 4
      %s50 = int_to_ptr.hbm [resolvable:$true] %s49
      %s51 = sshll.u32 [#allocation9], 4
      %s52 = int_to_ptr.vmem [resolvable:$true] %s51
      %57 = dma.hbm_to_vmem [thread:$0]  %s50, 1024, %s52, [#allocation8], 256, 256, 16
    $region13: #{tpu_custom_call.1} parent=1 // pred_fallthru
      _
    // Predicated region
    $region14: #{tpu_custom_call.1} parent=1 // pred_check
      _
    $region15: #{tpu_custom_call.1} parent=1 // pred_check_branch
      %59 = sbr.rel (0) target = $region17
    $region16: #{tpu_custom_call.1} parent=1 // pred_region
      %61 = vsyncadd [#allocation11], 0
      %s63 = sshll.u32 %s3, 4
      %s64 = int_to_ptr.hbm [resolvable:$true] %s63
      %s65 = sshll.u32 [#allocation10], 4
      %s66 = int_to_ptr.vmem [resolvable:$true] %s65
      %68 = dma.hbm_to_vmem [thread:$0]  %s64, 64, %s66, [#allocation11]
    $region17: #{tpu_custom_call.1} parent=1 // pred_fallthru
      _
    // Predicated region
    $region18: #{tpu_custom_call.1} parent=1 // pred_check
      _
    $region19: #{tpu_custom_call.1} parent=1 // pred_check_branch
      %70 = sbr.rel (0) target = $region21
    $region20: #{tpu_custom_call.1} parent=1 // pred_region
      %72 = vsyncadd [#allocation11], 0
      %s73 = sshll.u32 %s4, 4
      %s74 = int_to_ptr.hbm [resolvable:$true] %s73
      %s75 = sshll.u32 [#allocation12], 4
      %s76 = int_to_ptr.vmem [resolvable:$true] %s75
      %81 = dma.hbm_to_vmem [thread:$0]  %s74, 12288, %s76, [#allocation11], 192, 192, 12
    $region21: #{tpu_custom_call.1} parent=1 // pred_fallthru
      _
    // Predicated region
    $region22: #{tpu_custom_call.1} parent=1 // pred_check
      _
    $region23: #{tpu_custom_call.1} parent=1 // pred_check_branch
      %83 = sbr.rel (0) target = $region25
    $region24: #{tpu_custom_call.1} parent=1 // pred_region
      _
    $region25: #{tpu_custom_call.1} parent=1 // pred_fallthru
      _
    // Predicated region
    $region26: #{tpu_custom_call.1} parent=1 // pred_check
      _
    $region27: #{tpu_custom_call.1} parent=1 // pred_check_branch
      %85 = sbr.rel (0) target = $region29
    $region28: #{tpu_custom_call.1} parent=1 // pred_region
      %87 = vsyncadd [#allocation14], 0
      %s88 = sshll.u32 %s6, 4
      %s89 = int_to_ptr.hbm [resolvable:$true] %s88
      %s90 = sshll.u32 [#allocation13], 4
      %s91 = int_to_ptr.vmem [resolvable:$true] %s90
      %96 = dma.hbm_to_vmem [thread:$0]  %s89, 1152, %s91, [#allocation14], 576, 576, 36
    $region29: #{tpu_custom_call.1} parent=1 // pred_fallthru
      _
    // Predicated region
    $region30: #{tpu_custom_call.1} parent=1 // pred_check
      _
    $region31: #{tpu_custom_call.1} parent=1 // pred_check_branch
      %98 = sbr.rel (0) target = $region33
    $region32: #{tpu_custom_call.1} parent=1 // pred_region
      %100 = vsyncadd [#allocation14], 0
      %s102 = sshll.u32 %s8, 4
      %s103 = int_to_ptr.hbm [resolvable:$true] %s102
      %s104 = sshll.u32 [#allocation15], 4
      %s105 = int_to_ptr.vmem [resolvable:$true] %s104
      %107 = dma.hbm_to_vmem [thread:$0]  %s103, 144, %s105, [#allocation14]
    $region33: #{tpu_custom_call.1} parent=1 // pred_fallthru
      _
    // Predicated region
    $region34: #{tpu_custom_call.1} parent=1 // pred_check
      _
    $region35: #{tpu_custom_call.1} parent=1 // pred_check_branch
      %109 = sbr.rel (0) target = $region37
    $region36: #{tpu_custom_call.1} parent=1 // pred_region
      %111 = vsyncadd [#allocation17], 0
      %s113 = sshll.u32 %s9, 4
      %s114 = int_to_ptr.hbm [resolvable:$true] %s113
      %s115 = sshll.u32 [#allocation16], 4
      %s116 = int_to_ptr.vmem [resolvable:$true] %s115
      %118 = dma.hbm_to_vmem [thread:$0]  %s114, 144, %s116, [#allocation17]
    $region37: #{tpu_custom_call.1} parent=1 // pred_fallthru
      _
    // Predicated region
    $region38: #{tpu_custom_call.1} parent=1 // pred_check
      _
    $region39: #{tpu_custom_call.1} parent=1 // pred_check_branch
      %120 = sbr.rel (0) target = $region41
    $region40: #{tpu_custom_call.1} parent=1 // pred_region
      %122 = vsyncadd [#allocation17], 0
      %s123 = sshll.u32 %s10, 4
      %s124 = int_to_ptr.hbm [resolvable:$true] %s123
      %s125 = sshll.u32 [#allocation18], 4
      %s126 = int_to_ptr.vmem [resolvable:$true] %s125
      %131 = dma.hbm_to_vmem [thread:$0]  %s124, 3072, %s126, [#allocation17], 64, 64, 4
    $region41: #{tpu_custom_call.1} parent=1 // pred_fallthru
      _
    // Predicated region
    $region42: #{tpu_custom_call.1} parent=1 // pred_check
      _
    $region43: #{tpu_custom_call.1} parent=1 // pred_check_branch
      %133 = sbr.rel (0) target = $region45
    $region44: #{tpu_custom_call.1} parent=1 // pred_region
      _
    $region45: #{tpu_custom_call.1} parent=1 // pred_fallthru
      _
    // Predicated region
    $region46: #{tpu_custom_call.1} parent=1 // pred_check
      _
    $region47: #{tpu_custom_call.1} parent=1 // pred_check_branch
      %135 = sbr.rel (0) target = $region49
    $region48: #{tpu_custom_call.1} parent=1 // pred_region
      %137 = dma.done [#allocation5], 128
    $region49: #{tpu_custom_call.1} parent=1 // pred_fallthru
      _
    // Predicated region
    $region50: #{tpu_custom_call.1} parent=1 // pred_check
      _
    $region51: #{tpu_custom_call.1} parent=1 // pred_check_branch
      %139 = sbr.rel (0) target = $region53
    $region52: #{tpu_custom_call.1} parent=1 // pred_region
      %141 = dma.done [#allocation8], 128
    $region53: #{tpu_custom_call.1} parent=1 // pred_fallthru
      _
    // Predicated region
    $region54: #{tpu_custom_call.1} parent=1 // pred_check
      _
    $region55: #{tpu_custom_call.1} parent=1 // pred_check_branch
      %143 = sbr.rel (0) target = $region57
    $region56: #{tpu_custom_call.1} parent=1 // pred_region
      %145 = dma.done [#allocation8], 1024
    $region57: #{tpu_custom_call.1} parent=1 // pred_fallthru
      _
    // Predicated region
    $region58: #{tpu_custom_call.1} parent=1 // pred_check
      _
    $region59: #{tpu_custom_call.1} parent=1 // pred_check_branch
      %147 = sbr.rel (0) target = $region61
    $region60: #{tpu_custom_call.1} parent=1 // pred_region
      %149 = dma.done [#allocation11], 64
    $region61: #{tpu_custom_call.1} parent=1 // pred_fallthru
      _
    // Predicated region
    $region62: #{tpu_custom_call.1} parent=1 // pred_check
      _
    $region63: #{tpu_custom_call.1} parent=1 // pred_check_branch
      %151 = sbr.rel (0) target = $region65
    $region64: #{tpu_custom_call.1} parent=1 // pred_region
      %153 = dma.done [#allocation11], 12288
    $region65: #{tpu_custom_call.1} parent=1 // pred_fallthru
      _
    // Predicated region
    $region66: #{tpu_custom_call.1} parent=1 // pred_check
      _
    $region67: #{tpu_custom_call.1} parent=1 // pred_check_branch
      %155 = sbr.rel (0) target = $region69
    $region68: #{tpu_custom_call.1} parent=1 // pred_region
      %157 = dma.done [#allocation14], 1152
    $region69: #{tpu_custom_call.1} parent=1 // pred_fallthru
      _
    // Predicated region
    $region70: #{tpu_custom_call.1} parent=1 // pred_check
      _
    $region71: #{tpu_custom_call.1} parent=1 // pred_check_branch
      %159 = sbr.rel (0) target = $region73
    $region72: #{tpu_custom_call.1} parent=1 // pred_region
      %161 = dma.done [#allocation14], 144
    $region73: #{tpu_custom_call.1} parent=1 // pred_fallthru
      _
    // Predicated region
    $region74: #{tpu_custom_call.1} parent=1 // pred_check
      _
    $region75: #{tpu_custom_call.1} parent=1 // pred_check_branch
      %163 = sbr.rel (0) target = $region77
    $region76: #{tpu_custom_call.1} parent=1 // pred_region
      %165 = dma.done [#allocation17], 144
    $region77: #{tpu_custom_call.1} parent=1 // pred_fallthru
      _
    // Predicated region
    $region78: #{tpu_custom_call.1} parent=1 // pred_check
      _
    $region79: #{tpu_custom_call.1} parent=1 // pred_check_branch
      %167 = sbr.rel (0) target = $region81
    $region80: #{tpu_custom_call.1} parent=1 // pred_region
      %169 = dma.done [#allocation17], 3072
    $region81: #{tpu_custom_call.1} parent=1 // pred_fallthru
      _
    // Predicated region
    $region82: #{tpu_custom_call.1} parent=1 // pred_check
      _
    $region83: #{tpu_custom_call.1} parent=1 // pred_check_branch
      %172 = sbr.rel target = $region85
    $region84: #{tpu_custom_call.1} parent=1 // pred_region
      %173 = sst [smem:[#allocation22]] [#allocation21]
      %174 = sst [smem:[#allocation23]] [#allocation20]
    $region85: #{tpu_custom_call.1} parent=1 // pred_fallthru
      _
    %176 = shalt.err (0)
    %s178 = sshll.u32 %s7, 4
    %s179 = int_to_ptr.hbm [resolvable:$true] %s178
    %s180 = sshll.u32 [#allocation2], 4
    %s181 = int_to_ptr.vmem [resolvable:$true] %s180
    %183 = dma.hbm_to_vmem [thread:$0]  %s179, 27648, %s181, [#allocation3]
    %v184 = vld [vmem:[#allocation4] sm:$0xff]
    %v185 = vpack.c.bf16 %v184, %v184
    %v186 = vld [vmem:[#allocation9] sm:$0xff]
    %v187 = vld [vmem:[#allocation9 + $0x8] sm:$0xff]
    %v188 = vld [vmem:[#allocation9 + $0x10] sm:$0xff]
    %v189 = vld [vmem:[#allocation9 + $0x18] sm:$0xff]
    %v190 = vld [vmem:[#allocation9 + $0x20] sm:$0xff]
    %v191 = vld [vmem:[#allocation9 + $0x28] sm:$0xff]
    %v192 = vld [vmem:[#allocation9 + $0x30] sm:$0xff]
    %v193 = vld [vmem:[#allocation9 + $0x38] sm:$0xff]
    %v194 = vld [vmem:[#allocation10] sm:$0xf]
    %v196 = vperm.slane %v194, 0
    %v197 = vperm.slane %v194, 1
    %v198 = vperm.slane %v194, 2
    %v199 = vperm.slane %v194, 3
    %v212 = vunpack.c.l.b16 %v186
    %v213 = vunpack.c.h.b16 %v186
    %v214 = vunpack.c.l.b16 %v187
    %v215 = vunpack.c.h.b16 %v187
    %v216 = vunpack.c.l.b16 %v188
    %v217 = vunpack.c.h.b16 %v188
    %v218 = vunpack.c.l.b16 %v189
    %v219 = vunpack.c.h.b16 %v189
    %v220 = vunpack.c.l.b16 %v190
    %v221 = vunpack.c.h.b16 %v190
    %v222 = vunpack.c.l.b16 %v191
    %v223 = vunpack.c.h.b16 %v191
    %v224 = vunpack.c.l.b16 %v192
    %v225 = vunpack.c.h.b16 %v192
    %v226 = vunpack.c.l.b16 %v193
    %v227 = vunpack.c.h.b16 %v193
    %v228 = vpack.c.b16 %v216, %v212
    %v229 = vpack.c.b16 %v217, %v213
    %v230 = vpack.c.b16 %v218, %v214
    %v231 = vpack.c.b16 %v219, %v215
    %v232 = vpack.c.b16 %v224, %v220
    %v233 = vpack.c.b16 %v225, %v221
    %v234 = vpack.c.b16 %v226, %v222
    %v235 = vpack.c.b16 %v227, %v223
    %vm244 = vcmask 261120
    %v246 = vsel %vm244, %v185, 0
    %248 = vmatpush.bf16.msra.mxu0 0
    %249 = vmatpush.bf16.msra.mxu0 0
    %250 = vmatpush.bf16.msra.mxu0 0
    %251 = vmatpush.bf16.msra.mxu0 0
    %252 = vmatpush.bf16.msra.mxu0 0
    %253 = vmatpush.bf16.msra.mxu0 0
    %254 = vmatpush.bf16.msra.mxu0 %v232
    %255 = vmatpush.bf16.msra.mxu0 %v228
    %256 = vmatmul.bf16.gmra.mxu0 %v246
    %v257 = vpop.f32.mrf.mxu0
    %v258 = vadd.f32 %v196, %v257
    %v259 = vpop.f32.mrf.mxu0
    %260 = vdwg.mxu0
    %261 = vmatpush.bf16.msra.mxu0 0
    %262 = vmatpush.bf16.msra.mxu0 0
    %263 = vmatpush.bf16.msra.mxu0 0
    %264 = vmatpush.bf16.msra.mxu0 0
    %265 = vmatpush.bf16.msra.mxu0 0
    %266 = vmatpush.bf16.msra.mxu0 0
    %267 = vmatpush.bf16.msra.mxu0 %v233
    %268 = vmatpush.bf16.msra.mxu0 %v229
    %269 = vmatmul.bf16.gmra.mxu0 %v246
    %v270 = vpop.f32.mrf.mxu0
    %v271 = vadd.f32 %v197, %v270
    %v272 = vpop.f32.mrf.mxu0
    %273 = vdwg.mxu0
    %274 = vmatpush.bf16.msra.mxu0 0
    %275 = vmatpush.bf16.msra.mxu0 0
    %276 = vmatpush.bf16.msra.mxu0 0
    %277 = vmatpush.bf16.msra.mxu0 0
    %278 = vmatpush.bf16.msra.mxu0 0
    %279 = vmatpush.bf16.msra.mxu0 0
    %280 = vmatpush.bf16.msra.mxu0 %v234
    %281 = vmatpush.bf16.msra.mxu0 %v230
    %282 = vmatmul.bf16.gmra.mxu0 %v246
    %v283 = vpop.f32.mrf.mxu0
    %v284 = vadd.f32 %v198, %v283
    %v285 = vpop.f32.mrf.mxu0
    %286 = vdwg.mxu0
    %287 = vmatpush.bf16.msra.mxu0 0
    %288 = vmatpush.bf16.msra.mxu0 0
    %289 = vmatpush.bf16.msra.mxu0 0
    %290 = vmatpush.bf16.msra.mxu0 0
    %291 = vmatpush.bf16.msra.mxu0 0
    %292 = vmatpush.bf16.msra.mxu0 0
    %293 = vmatpush.bf16.msra.mxu0 %v235
    %294 = vmatpush.bf16.msra.mxu0 %v231
    %295 = vmatmul.bf16.gmra.mxu0 %v246
    %v296 = vpop.f32.mrf.mxu0
    %v297 = vadd.f32 %v199, %v296
    %v298 = vpop.f32.mrf.mxu0
    %299 = vdwg.mxu0
    %v300 = vmax.f32 %v258, 0.0
    %v301 = vmax.f32 %v271, 0.0
    %v302 = vmax.f32 %v284, 0.0
    %v303 = vmax.f32 %v297, 0.0
    %v304 = vpack.c.bf16 %v300, %v300
    %v305 = vpack.c.bf16 %v301, %v301
    %v306 = vpack.c.bf16 %v302, %v302
    %v307 = vpack.c.bf16 %v303, %v303
    %v308 = vld [vmem:[#allocation12] sm:$0xff]
    %v309 = vld [vmem:[#allocation12 + $0x8] sm:$0xf]
    %v310 = vld [vmem:[#allocation12 + $0xc] sm:$0xff]
    %v311 = vld [vmem:[#allocation12 + $0x14] sm:$0xf]
    %v312 = vld [vmem:[#allocation12 + $0x18] sm:$0xff]
    %v313 = vld [vmem:[#allocation12 + $0x20] sm:$0xf]
    %v314 = vld [vmem:[#allocation12 + $0x24] sm:$0xff]
    %v315 = vld [vmem:[#allocation12 + $0x2c] sm:$0xf]
    %v316 = vld [vmem:[#allocation12 + $0x30] sm:$0xff]
    %v317 = vld [vmem:[#allocation12 + $0x38] sm:$0xf]
    %v318 = vld [vmem:[#allocation12 + $0x3c] sm:$0xff]
    %v319 = vld [vmem:[#allocation12 + $0x44] sm:$0xf]
    %v320 = vld [vmem:[#allocation12 + $0x48] sm:$0xff]
    %v321 = vld [vmem:[#allocation12 + $0x50] sm:$0xf]
    %v322 = vld [vmem:[#allocation12 + $0x54] sm:$0xff]
    %v323 = vld [vmem:[#allocation12 + $0x5c] sm:$0xf]
    %v324 = vld [vmem:[#allocation12 + $0x60] sm:$0xff]
    %v325 = vld [vmem:[#allocation12 + $0x68] sm:$0xf]
    %v326 = vld [vmem:[#allocation12 + $0x6c] sm:$0xff]
    %v327 = vld [vmem:[#allocation12 + $0x74] sm:$0xf]
    %v328 = vld [vmem:[#allocation12 + $0x78] sm:$0xff]
    %v329 = vld [vmem:[#allocation12 + $0x80] sm:$0xf]
    %v330 = vld [vmem:[#allocation12 + $0x84] sm:$0xff]
    %v331 = vld [vmem:[#allocation12 + $0x8c] sm:$0xf]
    %v332 = vld [vmem:[#allocation12 + $0x90] sm:$0xff]
    %v333 = vld [vmem:[#allocation12 + $0x98] sm:$0xf]
    %v334 = vld [vmem:[#allocation12 + $0x9c] sm:$0xff]
    %v335 = vld [vmem:[#allocation12 + $0xa4] sm:$0xf]
    %v336 = vld [vmem:[#allocation12 + $0xa8] sm:$0xff]
    %v337 = vld [vmem:[#allocation12 + $0xb0] sm:$0xf]
    %v338 = vld [vmem:[#allocation12 + $0xb4] sm:$0xff]
    %v339 = vld [vmem:[#allocation12 + $0xbc] sm:$0xf]
    %v340 = vld [vmem:[#allocation12 + $0xc0] sm:$0xff]
    %v341 = vld [vmem:[#allocation12 + $0xc8] sm:$0xf]
    %v342 = vld [vmem:[#allocation12 + $0xcc] sm:$0xff]
    %v343 = vld [vmem:[#allocation12 + $0xd4] sm:$0xf]
    %v344 = vld [vmem:[#allocation12 + $0xd8] sm:$0xff]
    %v345 = vld [vmem:[#allocation12 + $0xe0] sm:$0xf]
    %v346 = vld [vmem:[#allocation12 + $0xe4] sm:$0xff]
    %v347 = vld [vmem:[#allocation12 + $0xec] sm:$0xf]
    %v348 = vld [vmem:[#allocation12 + $0xf0] sm:$0xff]
    %v349 = vld [vmem:[#allocation12 + $0xf8] sm:$0xf]
    %v350 = vld [vmem:[#allocation12 + $0xfc] sm:$0xff]
    %v351 = vld [vmem:[#allocation12 + $0x104] sm:$0xf]
    %v352 = vld [vmem:[#allocation12 + $0x108] sm:$0xff]
    %v353 = vld [vmem:[#allocation12 + $0x110] sm:$0xf]
    %v354 = vld [vmem:[#allocation12 + $0x114] sm:$0xff]
    %v355 = vld [vmem:[#allocation12 + $0x11c] sm:$0xf]
    %v356 = vld [vmem:[#allocation12 + $0x120] sm:$0xff]
    %v357 = vld [vmem:[#allocation12 + $0x128] sm:$0xf]
    %v358 = vld [vmem:[#allocation12 + $0x12c] sm:$0xff]
    %v359 = vld [vmem:[#allocation12 + $0x134] sm:$0xf]
    %v360 = vld [vmem:[#allocation12 + $0x138] sm:$0xff]
    %v361 = vld [vmem:[#allocation12 + $0x140] sm:$0xf]
    %v362 = vld [vmem:[#allocation12 + $0x144] sm:$0xff]
    %v363 = vld [vmem:[#allocation12 + $0x14c] sm:$0xf]
    %v364 = vld [vmem:[#allocation12 + $0x150] sm:$0xff]
    %v365 = vld [vmem:[#allocation12 + $0x158] sm:$0xf]
    %v366 = vld [vmem:[#allocation12 + $0x15c] sm:$0xff]
    %v367 = vld [vmem:[#allocation12 + $0x164] sm:$0xf]
    %v368 = vld [vmem:[#allocation12 + $0x168] sm:$0xff]
    %v369 = vld [vmem:[#allocation12 + $0x170] sm:$0xf]
    %v370 = vld [vmem:[#allocation12 + $0x174] sm:$0xff]
    %v371 = vld [vmem:[#allocation12 + $0x17c] sm:$0xf]
    %v372 = vld [vmem:[#allocation12 + $0x180] sm:$0xff]
    %v373 = vld [vmem:[#allocation12 + $0x188] sm:$0xf]
    %v374 = vld [vmem:[#allocation12 + $0x18c] sm:$0xff]
    %v375 = vld [vmem:[#allocation12 + $0x194] sm:$0xf]
    %v376 = vld [vmem:[#allocation12 + $0x198] sm:$0xff]
    %v377 = vld [vmem:[#allocation12 + $0x1a0] sm:$0xf]
    %v378 = vld [vmem:[#allocation12 + $0x1a4] sm:$0xff]
    %v379 = vld [vmem:[#allocation12 + $0x1ac] sm:$0xf]
    %v380 = vld [vmem:[#allocation12 + $0x1b0] sm:$0xff]
    %v381 = vld [vmem:[#allocation12 + $0x1b8] sm:$0xf]
    %v382 = vld [vmem:[#allocation12 + $0x1bc] sm:$0xff]
    %v383 = vld [vmem:[#allocation12 + $0x1c4] sm:$0xf]
    %v384 = vld [vmem:[#allocation12 + $0x1c8] sm:$0xff]
    %v385 = vld [vmem:[#allocation12 + $0x1d0] sm:$0xf]
    %v386 = vld [vmem:[#allocation12 + $0x1d4] sm:$0xff]
    %v387 = vld [vmem:[#allocation12 + $0x1dc] sm:$0xf]
    %v388 = vld [vmem:[#allocation12 + $0x1e0] sm:$0xff]
    %v389 = vld [vmem:[#allocation12 + $0x1e8] sm:$0xf]
    %v390 = vld [vmem:[#allocation12 + $0x1ec] sm:$0xff]
    %v391 = vld [vmem:[#allocation12 + $0x1f4] sm:$0xf]
    %v392 = vld [vmem:[#allocation12 + $0x1f8] sm:$0xff]
    %v393 = vld [vmem:[#allocation12 + $0x200] sm:$0xf]
    %v394 = vld [vmem:[#allocation12 + $0x204] sm:$0xff]
    %v395 = vld [vmem:[#allocation12 + $0x20c] sm:$0xf]
    %v396 = vld [vmem:[#allocation12 + $0x210] sm:$0xff]
    %v397 = vld [vmem:[#allocation12 + $0x218] sm:$0xf]
    %v398 = vld [vmem:[#allocation12 + $0x21c] sm:$0xff]
    %v399 = vld [vmem:[#allocation12 + $0x224] sm:$0xf]
    %v400 = vld [vmem:[#allocation12 + $0x228] sm:$0xff]
    %v401 = vld [vmem:[#allocation12 + $0x230] sm:$0xf]
    %v402 = vld [vmem:[#allocation12 + $0x234] sm:$0xff]
    %v403 = vld [vmem:[#allocation12 + $0x23c] sm:$0xf]
    %v404 = vld [vmem:[#allocation12 + $0x240] sm:$0xff]
    %v405 = vld [vmem:[#allocation12 + $0x248] sm:$0xf]
    %v406 = vld [vmem:[#allocation12 + $0x24c] sm:$0xff]
    %v407 = vld [vmem:[#allocation12 + $0x254] sm:$0xf]
    %v408 = vld [vmem:[#allocation12 + $0x258] sm:$0xff]
    %v409 = vld [vmem:[#allocation12 + $0x260] sm:$0xf]
    %v410 = vld [vmem:[#allocation12 + $0x264] sm:$0xff]
    %v411 = vld [vmem:[#allocation12 + $0x26c] sm:$0xf]
    %v412 = vld [vmem:[#allocation12 + $0x270] sm:$0xff]
    %v413 = vld [vmem:[#allocation12 + $0x278] sm:$0xf]
    %v414 = vld [vmem:[#allocation12 + $0x27c] sm:$0xff]
    %v415 = vld [vmem:[#allocation12 + $0x284] sm:$0xf]
    %v416 = vld [vmem:[#allocation12 + $0x288] sm:$0xff]
    %v417 = vld [vmem:[#allocation12 + $0x290] sm:$0xf]
    %v418 = vld [vmem:[#allocation12 + $0x294] sm:$0xff]
    %v419 = vld [vmem:[#allocation12 + $0x29c] sm:$0xf]
    %v420 = vld [vmem:[#allocation12 + $0x2a0] sm:$0xff]
    %v421 = vld [vmem:[#allocation12 + $0x2a8] sm:$0xf]
    %v422 = vld [vmem:[#allocation12 + $0x2ac] sm:$0xff]
    %v423 = vld [vmem:[#allocation12 + $0x2b4] sm:$0xf]
    %v424 = vld [vmem:[#allocation12 + $0x2b8] sm:$0xff]
    %v425 = vld [vmem:[#allocation12 + $0x2c0] sm:$0xf]
    %v426 = vld [vmem:[#allocation12 + $0x2c4] sm:$0xff]
    %v427 = vld [vmem:[#allocation12 + $0x2cc] sm:$0xf]
    %v428 = vld [vmem:[#allocation12 + $0x2d0] sm:$0xff]
    %v429 = vld [vmem:[#allocation12 + $0x2d8] sm:$0xf]
    %v430 = vld [vmem:[#allocation12 + $0x2dc] sm:$0xff]
    %v431 = vld [vmem:[#allocation12 + $0x2e4] sm:$0xf]
    %v432 = vld [vmem:[#allocation12 + $0x2e8] sm:$0xff]
    %v433 = vld [vmem:[#allocation12 + $0x2f0] sm:$0xf]
    %v434 = vld [vmem:[#allocation12 + $0x2f4] sm:$0xff]
    %v435 = vld [vmem:[#allocation12 + $0x2fc] sm:$0xf]
    %v436 = vld [vmem:[%s5] sm:$0x7]
    %v438 = vperm.slane %v436, 0
    %v439 = vperm.slane %v436, 1
    %v440 = vperm.slane %v436, 2
    %v572 = vunpack.c.l.b16 %v308
    %v573 = vunpack.c.h.b16 %v308
    %v574 = vunpack.c.l.b16 %v309
    %v575 = vunpack.c.l.b16 %v310
    %v576 = vunpack.c.h.b16 %v310
    %v577 = vunpack.c.l.b16 %v311
    %v578 = vunpack.c.l.b16 %v312
    %v579 = vunpack.c.h.b16 %v312
    %v580 = vunpack.c.l.b16 %v313
    %v581 = vunpack.c.l.b16 %v314
    %v582 = vunpack.c.h.b16 %v314
    %v583 = vunpack.c.l.b16 %v315
    %v584 = vunpack.c.l.b16 %v316
    %v585 = vunpack.c.h.b16 %v316
    %v586 = vunpack.c.l.b16 %v317
    %v587 = vunpack.c.l.b16 %v318
    %v588 = vunpack.c.h.b16 %v318
    %v589 = vunpack.c.l.b16 %v319
    %v590 = vunpack.c.l.b16 %v320
    %v591 = vunpack.c.h.b16 %v320
    %v592 = vunpack.c.l.b16 %v321
    %v593 = vunpack.c.l.b16 %v322
    %v594 = vunpack.c.h.b16 %v322
    %v595 = vunpack.c.l.b16 %v323
    %v596 = vunpack.c.l.b16 %v324
    %v597 = vunpack.c.h.b16 %v324
    %v598 = vunpack.c.l.b16 %v325
    %v599 = vunpack.c.l.b16 %v326
    %v600 = vunpack.c.h.b16 %v326
    %v601 = vunpack.c.l.b16 %v327
    %v602 = vunpack.c.l.b16 %v328
    %v603 = vunpack.c.h.b16 %v328
    %v604 = vunpack.c.l.b16 %v329
    %v605 = vunpack.c.l.b16 %v330
    %v606 = vunpack.c.h.b16 %v330
    %v607 = vunpack.c.l.b16 %v331
    %v608 = vunpack.c.l.b16 %v332
    %v609 = vunpack.c.h.b16 %v332
    %v610 = vunpack.c.l.b16 %v333
    %v611 = vunpack.c.l.b16 %v334
    %v612 = vunpack.c.h.b16 %v334
    %v613 = vunpack.c.l.b16 %v335
    %v614 = vunpack.c.l.b16 %v336
    %v615 = vunpack.c.h.b16 %v336
    %v616 = vunpack.c.l.b16 %v337
    %v617 = vunpack.c.l.b16 %v338
    %v618 = vunpack.c.h.b16 %v338
    %v619 = vunpack.c.l.b16 %v339
    %v620 = vunpack.c.l.b16 %v340
    %v621 = vunpack.c.h.b16 %v340
    %v622 = vunpack.c.l.b16 %v341
    %v623 = vunpack.c.l.b16 %v342
    %v624 = vunpack.c.h.b16 %v342
    %v625 = vunpack.c.l.b16 %v343
    %v626 = vunpack.c.l.b16 %v344
    %v627 = vunpack.c.h.b16 %v344
    %v628 = vunpack.c.l.b16 %v345
    %v629 = vunpack.c.l.b16 %v346
    %v630 = vunpack.c.h.b16 %v346
    %v631 = vunpack.c.l.b16 %v347
    %v632 = vunpack.c.l.b16 %v348
    %v633 = vunpack.c.h.b16 %v348
    %v634 = vunpack.c.l.b16 %v349
    %v635 = vunpack.c.l.b16 %v350
    %v636 = vunpack.c.h.b16 %v350
    %v637 = vunpack.c.l.b16 %v351
    %v638 = vunpack.c.l.b16 %v352
    %v639 = vunpack.c.h.b16 %v352
    %v640 = vunpack.c.l.b16 %v353
    %v641 = vunpack.c.l.b16 %v354
    %v642 = vunpack.c.h.b16 %v354
    %v643 = vunpack.c.l.b16 %v355
    %v644 = vunpack.c.l.b16 %v356
    %v645 = vunpack.c.h.b16 %v356
    %v646 = vunpack.c.l.b16 %v357
    %v647 = vunpack.c.l.b16 %v358
    %v648 = vunpack.c.h.b16 %v358
    %v649 = vunpack.c.l.b16 %v359
    %v650 = vunpack.c.l.b16 %v360
    %v651 = vunpack.c.h.b16 %v360
    %v652 = vunpack.c.l.b16 %v361
    %v653 = vunpack.c.l.b16 %v362
    %v654 = vunpack.c.h.b16 %v362
    %v655 = vunpack.c.l.b16 %v363
    %v656 = vunpack.c.l.b16 %v364
    %v657 = vunpack.c.h.b16 %v364
    %v658 = vunpack.c.l.b16 %v365
    %v659 = vunpack.c.l.b16 %v366
    %v660 = vunpack.c.h.b16 %v366
    %v661 = vunpack.c.l.b16 %v367
    %v662 = vunpack.c.l.b16 %v368
    %v663 = vunpack.c.h.b16 %v368
    %v664 = vunpack.c.l.b16 %v369
    %v665 = vunpack.c.l.b16 %v370
    %v666 = vunpack.c.h.b16 %v370
    %v667 = vunpack.c.l.b16 %v371
    %v668 = vunpack.c.l.b16 %v372
    %v669 = vunpack.c.h.b16 %v372
    %v670 = vunpack.c.l.b16 %v373
    %v671 = vunpack.c.l.b16 %v374
    %v672 = vunpack.c.h.b16 %v374
    %v673 = vunpack.c.l.b16 %v375
    %v674 = vunpack.c.l.b16 %v376
    %v675 = vunpack.c.h.b16 %v376
    %v676 = vunpack.c.l.b16 %v377
    %v677 = vunpack.c.l.b16 %v378
    %v678 = vunpack.c.h.b16 %v378
    %v679 = vunpack.c.l.b16 %v379
    %v680 = vunpack.c.l.b16 %v380
    %v681 = vunpack.c.h.b16 %v380
    %v682 = vunpack.c.l.b16 %v381
    %v683 = vunpack.c.l.b16 %v382
    %v684 = vunpack.c.h.b16 %v382
    %v685 = vunpack.c.l.b16 %v383
    %v686 = vunpack.c.l.b16 %v384
    %v687 = vunpack.c.h.b16 %v384
    %v688 = vunpack.c.l.b16 %v385
    %v689 = vunpack.c.l.b16 %v386
    %v690 = vunpack.c.h.b16 %v386
    %v691 = vunpack.c.l.b16 %v387
    %v692 = vunpack.c.l.b16 %v388
    %v693 = vunpack.c.h.b16 %v388
    %v694 = vunpack.c.l.b16 %v389
    %v695 = vunpack.c.l.b16 %v390
    %v696 = vunpack.c.h.b16 %v390
    %v697 = vunpack.c.l.b16 %v391
    %v698 = vunpack.c.l.b16 %v392
    %v699 = vunpack.c.h.b16 %v392
    %v700 = vunpack.c.l.b16 %v393
    %v701 = vunpack.c.l.b16 %v394
    %v702 = vunpack.c.h.b16 %v394
    %v703 = vunpack.c.l.b16 %v395
    %v704 = vunpack.c.l.b16 %v396
    %v705 = vunpack.c.h.b16 %v396
    %v706 = vunpack.c.l.b16 %v397
    %v707 = vunpack.c.l.b16 %v398
    %v708 = vunpack.c.h.b16 %v398
    %v709 = vunpack.c.l.b16 %v399
    %v710 = vunpack.c.l.b16 %v400
    %v711 = vunpack.c.h.b16 %v400
    %v712 = vunpack.c.l.b16 %v401
    %v713 = vunpack.c.l.b16 %v402
    %v714 = vunpack.c.h.b16 %v402
    %v715 = vunpack.c.l.b16 %v403
    %v716 = vunpack.c.l.b16 %v404
    %v717 = vunpack.c.h.b16 %v404
    %v718 = vunpack.c.l.b16 %v405
    %v719 = vunpack.c.l.b16 %v406
    %v720 = vunpack.c.h.b16 %v406
    %v721 = vunpack.c.l.b16 %v407
    %v722 = vunpack.c.l.b16 %v408
    %v723 = vunpack.c.h.b16 %v408
    %v724 = vunpack.c.l.b16 %v409
    %v725 = vunpack.c.l.b16 %v410
    %v726 = vunpack.c.h.b16 %v410
    %v727 = vunpack.c.l.b16 %v411
    %v728 = vunpack.c.l.b16 %v412
    %v729 = vunpack.c.h.b16 %v412
    %v730 = vunpack.c.l.b16 %v413
    %v731 = vunpack.c.l.b16 %v414
    %v732 = vunpack.c.h.b16 %v414
    %v733 = vunpack.c.l.b16 %v415
    %v734 = vunpack.c.l.b16 %v416
    %v735 = vunpack.c.h.b16 %v416
    %v736 = vunpack.c.l.b16 %v417
    %v737 = vunpack.c.l.b16 %v418
    %v738 = vunpack.c.h.b16 %v418
    %v739 = vunpack.c.l.b16 %v419
    %v740 = vunpack.c.l.b16 %v420
    %v741 = vunpack.c.h.b16 %v420
    %v742 = vunpack.c.l.b16 %v421
    %v743 = vunpack.c.l.b16 %v422
    %v744 = vunpack.c.h.b16 %v422
    %v745 = vunpack.c.l.b16 %v423
    %v746 = vunpack.c.l.b16 %v424
    %v747 = vunpack.c.h.b16 %v424
    %v748 = vunpack.c.l.b16 %v425
    %v749 = vunpack.c.l.b16 %v426
    %v750 = vunpack.c.h.b16 %v426
    %v751 = vunpack.c.l.b16 %v427
    %v752 = vunpack.c.l.b16 %v428
    %v753 = vunpack.c.h.b16 %v428
    %v754 = vunpack.c.l.b16 %v429
    %v755 = vunpack.c.l.b16 %v430
    %v756 = vunpack.c.h.b16 %v430
    %v757 = vunpack.c.l.b16 %v431
    %v758 = vunpack.c.l.b16 %v432
    %v759 = vunpack.c.h.b16 %v432
    %v760 = vunpack.c.l.b16 %v433
    %v761 = vunpack.c.l.b16 %v434
    %v762 = vunpack.c.h.b16 %v434
    %v763 = vunpack.c.l.b16 %v435
    %v764 = vpack.c.b16 %v575, %v572
    %v765 = vpack.c.b16 %v576, %v573
    %v766 = vpack.c.b16 %v577, %v574
    %v767 = vpack.c.b16 %v581, %v578
    %v768 = vpack.c.b16 %v582, %v579
    %v769 = vpack.c.b16 %v583, %v580
    %v770 = vpack.c.b16 %v587, %v584
    %v771 = vpack.c.b16 %v588, %v585
    %v772 = vpack.c.b16 %v589, %v586
    %v773 = vpack.c.b16 %v593, %v590
    %v774 = vpack.c.b16 %v594, %v591
    %v775 = vpack.c.b16 %v595, %v592
    %v776 = vpack.c.b16 %v599, %v596
    %v777 = vpack.c.b16 %v600, %v597
    %v778 = vpack.c.b16 %v601, %v598
    %v779 = vpack.c.b16 %v605, %v602
    %v780 = vpack.c.b16 %v606, %v603
    %v781 = vpack.c.b16 %v607, %v604
    %v782 = vpack.c.b16 %v611, %v608
    %v783 = vpack.c.b16 %v612, %v609
    %v784 = vpack.c.b16 %v613, %v610
    %v785 = vpack.c.b16 %v617, %v614
    %v786 = vpack.c.b16 %v618, %v615
    %v787 = vpack.c.b16 %v619, %v616
    %v788 = vpack.c.b16 %v623, %v620
    %v789 = vpack.c.b16 %v624, %v621
    %v790 = vpack.c.b16 %v625, %v622
    %v791 = vpack.c.b16 %v629, %v626
    %v792 = vpack.c.b16 %v630, %v627
    %v793 = vpack.c.b16 %v631, %v628
    %v794 = vpack.c.b16 %v635, %v632
    %v795 = vpack.c.b16 %v636, %v633
    %v796 = vpack.c.b16 %v637, %v634
    %v797 = vpack.c.b16 %v641, %v638
    %v798 = vpack.c.b16 %v642, %v639
    %v799 = vpack.c.b16 %v643, %v640
    %v800 = vpack.c.b16 %v647, %v644
    %v801 = vpack.c.b16 %v648, %v645
    %v802 = vpack.c.b16 %v649, %v646
    %v803 = vpack.c.b16 %v653, %v650
    %v804 = vpack.c.b16 %v654, %v651
    %v805 = vpack.c.b16 %v655, %v652
    %v806 = vpack.c.b16 %v659, %v656
    %v807 = vpack.c.b16 %v660, %v657
    %v808 = vpack.c.b16 %v661, %v658
    %v809 = vpack.c.b16 %v665, %v662
    %v810 = vpack.c.b16 %v666, %v663
    %v811 = vpack.c.b16 %v667, %v664
    %v812 = vpack.c.b16 %v671, %v668
    %v813 = vpack.c.b16 %v672, %v669
    %v814 = vpack.c.b16 %v673, %v670
    %v815 = vpack.c.b16 %v677, %v674
    %v816 = vpack.c.b16 %v678, %v675
    %v817 = vpack.c.b16 %v679, %v676
    %v818 = vpack.c.b16 %v683, %v680
    %v819 = vpack.c.b16 %v684, %v681
    %v820 = vpack.c.b16 %v685, %v682
    %v821 = vpack.c.b16 %v689, %v686
    %v822 = vpack.c.b16 %v690, %v687
    %v823 = vpack.c.b16 %v691, %v688
    %v824 = vpack.c.b16 %v695, %v692
    %v825 = vpack.c.b16 %v696, %v693
    %v826 = vpack.c.b16 %v697, %v694
    %v827 = vpack.c.b16 %v701, %v698
    %v828 = vpack.c.b16 %v702, %v699
    %v829 = vpack.c.b16 %v703, %v700
    %v830 = vpack.c.b16 %v707, %v704
    %v831 = vpack.c.b16 %v708, %v705
    %v832 = vpack.c.b16 %v709, %v706
    %v833 = vpack.c.b16 %v713, %v710
    %v834 = vpack.c.b16 %v714, %v711
    %v835 = vpack.c.b16 %v715, %v712
    %v836 = vpack.c.b16 %v719, %v716
    %v837 = vpack.c.b16 %v720, %v717
    %v838 = vpack.c.b16 %v721, %v718
    %v839 = vpack.c.b16 %v725, %v722
    %v840 = vpack.c.b16 %v726, %v723
    %v841 = vpack.c.b16 %v727, %v724
    %v842 = vpack.c.b16 %v731, %v728
    %v843 = vpack.c.b16 %v732, %v729
    %v844 = vpack.c.b16 %v733, %v730
    %v845 = vpack.c.b16 %v737, %v734
    %v846 = vpack.c.b16 %v738, %v735
    %v847 = vpack.c.b16 %v739, %v736
    %v848 = vpack.c.b16 %v743, %v740
    %v849 = vpack.c.b16 %v744, %v741
    %v850 = vpack.c.b16 %v745, %v742
    %v851 = vpack.c.b16 %v749, %v746
    %v852 = vpack.c.b16 %v750, %v747
    %v853 = vpack.c.b16 %v751, %v748
    %v854 = vpack.c.b16 %v755, %v752
    %v855 = vpack.c.b16 %v756, %v753
    %v856 = vpack.c.b16 %v757, %v754
    %v857 = vpack.c.b16 %v761, %v758
    %v858 = vpack.c.b16 %v762, %v759
    %v859 = vpack.c.b16 %v763, %v760
    %956 = vmatpush.bf16.msra.mxu0 %v785
    %957 = vmatpush.bf16.msra.mxu0 %v782
    %958 = vmatpush.bf16.msra.mxu0 %v779
    %959 = vmatpush.bf16.msra.mxu0 %v776
    %960 = vmatpush.bf16.msra.mxu0 %v773
    %961 = vmatpush.bf16.msra.mxu0 %v770
    %962 = vmatpush.bf16.msra.mxu0 %v767
    %963 = vmatpush.bf16.msra.mxu0 %v764
    %964 = vmatmul.bf16.gmra.mxu0 %v304
    %v965 = vpop.f32.mrf.mxu0
    %v966 = vadd.f32 %v438, %v965
    %v967 = vpop.f32.mrf.mxu0
    %968 = vdwg.mxu0
    %969 = vmatpush.bf16.msra.mxu0 %v809
    %970 = vmatpush.bf16.msra.mxu0 %v806
    %971 = vmatpush.bf16.msra.mxu0 %v803
    %972 = vmatpush.bf16.msra.mxu0 %v800
    %973 = vmatpush.bf16.msra.mxu0 %v797
    %974 = vmatpush.bf16.msra.mxu0 %v794
    %975 = vmatpush.bf16.msra.mxu0 %v791
    %976 = vmatpush.bf16.msra.mxu0 %v788
    %977 = vmatmul.bf16.gmra.mxu0 %v305
    %v978 = vpop.f32.mrf.mxu0
    %v979 = vadd.f32 %v966, %v978
    %v980 = vpop.f32.mrf.mxu0
    %981 = vdwg.mxu0
    %982 = vmatpush.bf16.msra.mxu0 %v833
    %983 = vmatpush.bf16.msra.mxu0 %v830
    %984 = vmatpush.bf16.msra.mxu0 %v827
    %985 = vmatpush.bf16.msra.mxu0 %v824
    %986 = vmatpush.bf16.msra.mxu0 %v821
    %987 = vmatpush.bf16.msra.mxu0 %v818
    %988 = vmatpush.bf16.msra.mxu0 %v815
    %989 = vmatpush.bf16.msra.mxu0 %v812
    %990 = vmatmul.bf16.gmra.mxu0 %v306
    %v991 = vpop.f32.mrf.mxu0
    %v992 = vadd.f32 %v979, %v991
    %v993 = vpop.f32.mrf.mxu0
    %994 = vdwg.mxu0
    %995 = vmatpush.bf16.msra.mxu0 %v857
    %996 = vmatpush.bf16.msra.mxu0 %v854
    %997 = vmatpush.bf16.msra.mxu0 %v851
    %998 = vmatpush.bf16.msra.mxu0 %v848
    %999 = vmatpush.bf16.msra.mxu0 %v845
    %1000 = vmatpush.bf16.msra.mxu0 %v842
    %1001 = vmatpush.bf16.msra.mxu0 %v839
    %1002 = vmatpush.bf16.msra.mxu0 %v836
    %1003 = vmatmul.bf16.gmra.mxu0 %v307
    %v1004 = vpop.f32.mrf.mxu0
    %v1005 = vadd.f32 %v992, %v1004
    %v1006 = vpop.f32.mrf.mxu0
    %1007 = vdwg.mxu0
    %1008 = vmatpush.bf16.msra.mxu0 %v786
    %1009 = vmatpush.bf16.msra.mxu0 %v783
    %1010 = vmatpush.bf16.msra.mxu0 %v780
    %1011 = vmatpush.bf16.msra.mxu0 %v777
    %1012 = vmatpush.bf16.msra.mxu0 %v774
    %1013 = vmatpush.bf16.msra.mxu0 %v771
    %1014 = vmatpush.bf16.msra.mxu0 %v768
    %1015 = vmatpush.bf16.msra.mxu0 %v765
    %1016 = vmatmul.bf16.gmra.mxu0 %v304
    %v1017 = vpop.f32.mrf.mxu0
    %v1018 = vadd.f32 %v439, %v1017
    %v1019 = vpop.f32.mrf.mxu0
    %1020 = vdwg.mxu0
    %1021 = vmatpush.bf16.msra.mxu0 %v810
    %1022 = vmatpush.bf16.msra.mxu0 %v807
    %1023 = vmatpush.bf16.msra.mxu0 %v804
    %1024 = vmatpush.bf16.msra.mxu0 %v801
    %1025 = vmatpush.bf16.msra.mxu0 %v798
    %1026 = vmatpush.bf16.msra.mxu0 %v795
    %1027 = vmatpush.bf16.msra.mxu0 %v792
    %1028 = vmatpush.bf16.msra.mxu0 %v789
    %1029 = vmatmul.bf16.gmra.mxu0 %v305
    %v1030 = vpop.f32.mrf.mxu0
    %v1031 = vadd.f32 %v1018, %v1030
    %v1032 = vpop.f32.mrf.mxu0
    %1033 = vdwg.mxu0
    %1034 = vmatpush.bf16.msra.mxu0 %v834
    %1035 = vmatpush.bf16.msra.mxu0 %v831
    %1036 = vmatpush.bf16.msra.mxu0 %v828
    %1037 = vmatpush.bf16.msra.mxu0 %v825
    %1038 = vmatpush.bf16.msra.mxu0 %v822
    %1039 = vmatpush.bf16.msra.mxu0 %v819
    %1040 = vmatpush.bf16.msra.mxu0 %v816
    %1041 = vmatpush.bf16.msra.mxu0 %v813
    %1042 = vmatmul.bf16.gmra.mxu0 %v306
    %v1043 = vpop.f32.mrf.mxu0
    %v1044 = vadd.f32 %v1031, %v1043
    %v1045 = vpop.f32.mrf.mxu0
    %1046 = vdwg.mxu0
    %1047 = vmatpush.bf16.msra.mxu0 %v858
    %1048 = vmatpush.bf16.msra.mxu0 %v855
    %1049 = vmatpush.bf16.msra.mxu0 %v852
    %1050 = vmatpush.bf16.msra.mxu0 %v849
    %1051 = vmatpush.bf16.msra.mxu0 %v846
    %1052 = vmatpush.bf16.msra.mxu0 %v843
    %1053 = vmatpush.bf16.msra.mxu0 %v840
    %1054 = vmatpush.bf16.msra.mxu0 %v837
    %1055 = vmatmul.bf16.gmra.mxu0 %v307
    %v1056 = vpop.f32.mrf.mxu0
    %v1057 = vadd.f32 %v1044, %v1056
    %v1058 = vpop.f32.mrf.mxu0
    %1059 = vdwg.mxu0
    %1060 = vmatpush.bf16.msra.mxu0 %v787
    %1061 = vmatpush.bf16.msra.mxu0 %v784
    %1062 = vmatpush.bf16.msra.mxu0 %v781
    %1063 = vmatpush.bf16.msra.mxu0 %v778
    %1064 = vmatpush.bf16.msra.mxu0 %v775
    %1065 = vmatpush.bf16.msra.mxu0 %v772
    %1066 = vmatpush.bf16.msra.mxu0 %v769
    %1067 = vmatpush.bf16.msra.mxu0 %v766
    %1068 = vmatmul.bf16.gmra.mxu0 %v304
    %v1069 = vpop.f32.mrf.mxu0
    %v1070 = vadd.f32 %v440, %v1069
    %v1071 = vpop.f32.mrf.mxu0
    %1072 = vdwg.mxu0
    %1073 = vmatpush.bf16.msra.mxu0 %v811
    %1074 = vmatpush.bf16.msra.mxu0 %v808
    %1075 = vmatpush.bf16.msra.mxu0 %v805
    %1076 = vmatpush.bf16.msra.mxu0 %v802
    %1077 = vmatpush.bf16.msra.mxu0 %v799
    %1078 = vmatpush.bf16.msra.mxu0 %v796
    %1079 = vmatpush.bf16.msra.mxu0 %v793
    %1080 = vmatpush.bf16.msra.mxu0 %v790
    %1081 = vmatmul.bf16.gmra.mxu0 %v305
    %v1082 = vpop.f32.mrf.mxu0
    %v1083 = vadd.f32 %v1070, %v1082
    %v1084 = vpop.f32.mrf.mxu0
    %1085 = vdwg.mxu0
    %1086 = vmatpush.bf16.msra.mxu0 %v835
    %1087 = vmatpush.bf16.msra.mxu0 %v832
    %1088 = vmatpush.bf16.msra.mxu0 %v829
    %1089 = vmatpush.bf16.msra.mxu0 %v826
    %1090 = vmatpush.bf16.msra.mxu0 %v823
    %1091 = vmatpush.bf16.msra.mxu0 %v820
    %1092 = vmatpush.bf16.msra.mxu0 %v817
    %1093 = vmatpush.bf16.msra.mxu0 %v814
    %1094 = vmatmul.bf16.gmra.mxu0 %v306
    %v1095 = vpop.f32.mrf.mxu0
    %v1096 = vadd.f32 %v1083, %v1095
    %v1097 = vpop.f32.mrf.mxu0
    %1098 = vdwg.mxu0
    %1099 = vmatpush.bf16.msra.mxu0 %v859
    %1100 = vmatpush.bf16.msra.mxu0 %v856
    %1101 = vmatpush.bf16.msra.mxu0 %v853
    %1102 = vmatpush.bf16.msra.mxu0 %v850
    %1103 = vmatpush.bf16.msra.mxu0 %v847
    %1104 = vmatpush.bf16.msra.mxu0 %v844
    %1105 = vmatpush.bf16.msra.mxu0 %v841
    %1106 = vmatpush.bf16.msra.mxu0 %v838
    %1107 = vmatmul.bf16.gmra.mxu0 %v307
    %v1108 = vpop.f32.mrf.mxu0
    %v1109 = vadd.f32 %v1096, %v1108
    %v1110 = vpop.f32.mrf.mxu0
    %1111 = vdwg.mxu0
    %v1112 = vld [vmem:[#allocation7] sm:$0xff]
    %v1113 = vpack.c.bf16 %v1112, %v1112
    %v1114 = vld [vmem:[#allocation13] sm:$0xff]
    %v1115 = vld [vmem:[#allocation13 + $0x8] sm:$0xff]
    %v1116 = vld [vmem:[#allocation13 + $0x10] sm:$0xff]
    %v1117 = vld [vmem:[#allocation13 + $0x18] sm:$0xff]
    %v1118 = vld [vmem:[#allocation13 + $0x20] sm:$0xf]
    %v1119 = vld [vmem:[#allocation13 + $0x24] sm:$0xff]
    %v1120 = vld [vmem:[#allocation13 + $0x2c] sm:$0xff]
    %v1121 = vld [vmem:[#allocation13 + $0x34] sm:$0xff]
    %v1122 = vld [vmem:[#allocation13 + $0x3c] sm:$0xff]
    %v1123 = vld [vmem:[#allocation13 + $0x44] sm:$0xf]
    %v1124 = vld [vmem:[#allocation15] sm:$0xff]
    %v1125 = vld [vmem:[#allocation15 + $0x8] sm:$0x1]
    %v1128 = vperm.slane %v1124, 0
    %v1129 = vperm.slane %v1124, 1
    %v1130 = vperm.slane %v1124, 2
    %v1131 = vperm.slane %v1124, 3
    %v1132 = vperm.slane %v1124, 4
    %v1133 = vperm.slane %v1124, 5
    %v1134 = vperm.slane %v1124, 6
    %v1135 = vperm.slane %v1124, 7
    %v1136 = vperm.slane %v1125, 0
    %v1156 = vunpack.c.l.b16 %v1114
    %v1157 = vunpack.c.h.b16 %v1114
    %v1158 = vunpack.c.l.b16 %v1115
    %v1159 = vunpack.c.h.b16 %v1115
    %v1160 = vunpack.c.l.b16 %v1116
    %v1161 = vunpack.c.h.b16 %v1116
    %v1162 = vunpack.c.l.b16 %v1117
    %v1163 = vunpack.c.h.b16 %v1117
    %v1164 = vunpack.c.l.b16 %v1118
    %v1165 = vunpack.c.l.b16 %v1119
    %v1166 = vunpack.c.h.b16 %v1119
    %v1167 = vunpack.c.l.b16 %v1120
    %v1168 = vunpack.c.h.b16 %v1120
    %v1169 = vunpack.c.l.b16 %v1121
    %v1170 = vunpack.c.h.b16 %v1121
    %v1171 = vunpack.c.l.b16 %v1122
    %v1172 = vunpack.c.h.b16 %v1122
    %v1173 = vunpack.c.l.b16 %v1123
    %v1174 = vpack.c.b16 %v1165, %v1156
    %v1175 = vpack.c.b16 %v1166, %v1157
    %v1176 = vpack.c.b16 %v1167, %v1158
    %v1177 = vpack.c.b16 %v1168, %v1159
    %v1178 = vpack.c.b16 %v1169, %v1160
    %v1179 = vpack.c.b16 %v1170, %v1161
    %v1180 = vpack.c.b16 %v1171, %v1162
    %v1181 = vpack.c.b16 %v1172, %v1163
    %v1182 = vpack.c.b16 %v1173, %v1164
    %vm1192 = vcmask 130048
    %v1194 = vsel %vm1192, %v1113, 0
    %1196 = vmatpush.bf16.msra.mxu0 0
    %1197 = vmatpush.bf16.msra.mxu0 0
    %1198 = vmatpush.bf16.msra.mxu0 0
    %1199 = vmatpush.bf16.msra.mxu0 0
    %1200 = vmatpush.bf16.msra.mxu0 0
    %1201 = vmatpush.bf16.msra.mxu0 0
    %1202 = vmatpush.bf16.msra.mxu0 0
    %1203 = vmatpush.bf16.msra.mxu0 %v1174
    %1204 = vmatmul.bf16.gmra.mxu0 %v1194
    %v1205 = vpop.f32.mrf.mxu0
    %v1206 = vadd.f32 %v1128, %v1205
    %v1207 = vpop.f32.mrf.mxu0
    %1208 = vdwg.mxu0
    %1209 = vmatpush.bf16.msra.mxu0 0
    %1210 = vmatpush.bf16.msra.mxu0 0
    %1211 = vmatpush.bf16.msra.mxu0 0
    %1212 = vmatpush.bf16.msra.mxu0 0
    %1213 = vmatpush.bf16.msra.mxu0 0
    %1214 = vmatpush.bf16.msra.mxu0 0
    %1215 = vmatpush.bf16.msra.mxu0 0
    %1216 = vmatpush.bf16.msra.mxu0 %v1175
    %1217 = vmatmul.bf16.gmra.mxu0 %v1194
    %v1218 = vpop.f32.mrf.mxu0
    %v1219 = vadd.f32 %v1129, %v1218
    %v1220 = vpop.f32.mrf.mxu0
    %1221 = vdwg.mxu0
    %1222 = vmatpush.bf16.msra.mxu0 0
    %1223 = vmatpush.bf16.msra.mxu0 0
    %1224 = vmatpush.bf16.msra.mxu0 0
    %1225 = vmatpush.bf16.msra.mxu0 0
    %1226 = vmatpush.bf16.msra.mxu0 0
    %1227 = vmatpush.bf16.msra.mxu0 0
    %1228 = vmatpush.bf16.msra.mxu0 0
    %1229 = vmatpush.bf16.msra.mxu0 %v1176
    %1230 = vmatmul.bf16.gmra.mxu0 %v1194
    %v1231 = vpop.f32.mrf.mxu0
    %v1232 = vadd.f32 %v1130, %v1231
    %v1233 = vpop.f32.mrf.mxu0
    %1234 = vdwg.mxu0
    %1235 = vmatpush.bf16.msra.mxu0 0
    %1236 = vmatpush.bf16.msra.mxu0 0
    %1237 = vmatpush.bf16.msra.mxu0 0
    %1238 = vmatpush.bf16.msra.mxu0 0
    %1239 = vmatpush.bf16.msra.mxu0 0
    %1240 = vmatpush.bf16.msra.mxu0 0
    %1241 = vmatpush.bf16.msra.mxu0 0
    %1242 = vmatpush.bf16.msra.mxu0 %v1177
    %1243 = vmatmul.bf16.gmra.mxu0 %v1194
    %v1244 = vpop.f32.mrf.mxu0
    %v1245 = vadd.f32 %v1131, %v1244
    %v1246 = vpop.f32.mrf.mxu0
    %1247 = vdwg.mxu0
    %1248 = vmatpush.bf16.msra.mxu0 0
    %1249 = vmatpush.bf16.msra.mxu0 0
    %1250 = vmatpush.bf16.msra.mxu0 0
    %1251 = vmatpush.bf16.msra.mxu0 0
    %1252 = vmatpush.bf16.msra.mxu0 0
    %1253 = vmatpush.bf16.msra.mxu0 0
    %1254 = vmatpush.bf16.msra.mxu0 0
    %1255 = vmatpush.bf16.msra.mxu0 %v1178
    %1256 = vmatmul.bf16.gmra.mxu0 %v1194
    %v1257 = vpop.f32.mrf.mxu0
    %v1258 = vadd.f32 %v1132, %v1257
    %v1259 = vpop.f32.mrf.mxu0
    %1260 = vdwg.mxu0
    %1261 = vmatpush.bf16.msra.mxu0 0
    %1262 = vmatpush.bf16.msra.mxu0 0
    %1263 = vmatpush.bf16.msra.mxu0 0
    %1264 = vmatpush.bf16.msra.mxu0 0
    %1265 = vmatpush.bf16.msra.mxu0 0
    %1266 = vmatpush.bf16.msra.mxu0 0
    %1267 = vmatpush.bf16.msra.mxu0 0
    %1268 = vmatpush.bf16.msra.mxu0 %v1179
    %1269 = vmatmul.bf16.gmra.mxu0 %v1194
    %v1270 = vpop.f32.mrf.mxu0
    %v1271 = vadd.f32 %v1133, %v1270
    %v1272 = vpop.f32.mrf.mxu0
    %1273 = vdwg.mxu0
    %1274 = vmatpush.bf16.msra.mxu0 0
    %1275 = vmatpush.bf16.msra.mxu0 0
    %1276 = vmatpush.bf16.msra.mxu0 0
    %1277 = vmatpush.bf16.msra.mxu0 0
    %1278 = vmatpush.bf16.msra.mxu0 0
    %1279 = vmatpush.bf16.msra.mxu0 0
    %1280 = vmatpush.bf16.msra.mxu0 0
    %1281 = vmatpush.bf16.msra.mxu0 %v1180
    %1282 = vmatmul.bf16.gmra.mxu0 %v1194
    %v1283 = vpop.f32.mrf.mxu0
    %v1284 = vadd.f32 %v1134, %v1283
    %v1285 = vpop.f32.mrf.mxu0
    %1286 = vdwg.mxu0
    %1287 = vmatpush.bf16.msra.mxu0 0
    %1288 = vmatpush.bf16.msra.mxu0 0
    %1289 = vmatpush.bf16.msra.mxu0 0
    %1290 = vmatpush.bf16.msra.mxu0 0
    %1291 = vmatpush.bf16.msra.mxu0 0
    %1292 = vmatpush.bf16.msra.mxu0 0
    %1293 = vmatpush.bf16.msra.mxu0 0
    %1294 = vmatpush.bf16.msra.mxu0 %v1181
    %1295 = vmatmul.bf16.gmra.mxu0 %v1194
    %v1296 = vpop.f32.mrf.mxu0
    %v1297 = vadd.f32 %v1135, %v1296
    %v1298 = vpop.f32.mrf.mxu0
    %1299 = vdwg.mxu0
    %1300 = vmatpush.bf16.msra.mxu0 0
    %1301 = vmatpush.bf16.msra.mxu0 0
    %1302 = vmatpush.bf16.msra.mxu0 0
    %1303 = vmatpush.bf16.msra.mxu0 0
    %1304 = vmatpush.bf16.msra.mxu0 0
    %1305 = vmatpush.bf16.msra.mxu0 0
    %1306 = vmatpush.bf16.msra.mxu0 0
    %1307 = vmatpush.bf16.msra.mxu0 %v1182
    %1308 = vmatmul.bf16.gmra.mxu0 %v1194
    %v1309 = vpop.f32.mrf.mxu0
    %v1310 = vadd.f32 %v1136, %v1309
    %v1311 = vpop.f32.mrf.mxu0
    %1312 = vdwg.mxu0
    %s1313 = smul.u32 4, 48
    %s1314 = smul.u32 %s1313, 9
    %s1315 = sshll.u32 %s1314, 4
    %1316 = dma.done [#allocation3], %s1315
    %v1317 = vpack.c.bf16 %v1005, %v1005
    %v1318 = vpack.c.bf16 %v1057, %v1057
    %v1319 = vpack.c.bf16 %v1109, %v1109
    %v1320 = vld [vmem:[#allocation2] sm:$0xff]
    %v1321 = vld [vmem:[#allocation2 + $0x8] sm:$0xff]
    %v1322 = vld [vmem:[#allocation2 + $0x10] sm:$0xff]
    %v1323 = vld [vmem:[#allocation2 + $0x18] sm:$0xff]
    %v1324 = vld [vmem:[#allocation2 + $0x20] sm:$0xf]
    %v1325 = vld [vmem:[#allocation2 + $0x24] sm:$0xff]
    %v1326 = vld [vmem:[#allocation2 + $0x2c] sm:$0xff]
    %v1327 = vld [vmem:[#allocation2 + $0x34] sm:$0xff]
    %v1328 = vld [vmem:[#allocation2 + $0x3c] sm:$0xff]
    %v1329 = vld [vmem:[#allocation2 + $0x44] sm:$0xf]
    %v1330 = vld [vmem:[#allocation2 + $0x48] sm:$0xff]
    %v1331 = vld [vmem:[#allocation2 + $0x50] sm:$0xff]
    %v1332 = vld [vmem:[#allocation2 + $0x58] sm:$0xff]
    %v1333 = vld [vmem:[#allocation2 + $0x60] sm:$0xff]
    %v1334 = vld [vmem:[#allocation2 + $0x68] sm:$0xf]
    %v1335 = vld [vmem:[#allocation2 + $0x6c] sm:$0xff]
    %v1336 = vld [vmem:[#allocation2 + $0x74] sm:$0xff]
    %v1337 = vld [vmem:[#allocation2 + $0x7c] sm:$0xff]
    %v1338 = vld [vmem:[#allocation2 + $0x84] sm:$0xff]
    %v1339 = vld [vmem:[#allocation2 + $0x8c] sm:$0xf]
    %v1340 = vld [vmem:[#allocation2 + $0x90] sm:$0xff]
    %v1341 = vld [vmem:[#allocation2 + $0x98] sm:$0xff]
    %v1342 = vld [vmem:[#allocation2 + $0xa0] sm:$0xff]
    %v1343 = vld [vmem:[#allocation2 + $0xa8] sm:$0xff]
    %v1344 = vld [vmem:[#allocation2 + $0xb0] sm:$0xf]
    %v1345 = vld [vmem:[#allocation2 + $0xb4] sm:$0xff]
    %v1346 = vld [vmem:[#allocation2 + $0xbc] sm:$0xff]
    %v1347 = vld [vmem:[#allocation2 + $0xc4] sm:$0xff]
    %v1348 = vld [vmem:[#allocation2 + $0xcc] sm:$0xff]
    %v1349 = vld [vmem:[#allocation2 + $0xd4] sm:$0xf]
    %v1350 = vld [vmem:[#allocation2 + $0xd8] sm:$0xff]
    %v1351 = vld [vmem:[#allocation2 + $0xe0] sm:$0xff]
    %v1352 = vld [vmem:[#allocation2 + $0xe8] sm:$0xff]
    %v1353 = vld [vmem:[#allocation2 + $0xf0] sm:$0xff]
    %v1354 = vld [vmem:[#allocation2 + $0xf8] sm:$0xf]
    %v1355 = vld [vmem:[#allocation2 + $0xfc] sm:$0xff]
    %v1356 = vld [vmem:[#allocation2 + $0x104] sm:$0xff]
    %v1357 = vld [vmem:[#allocation2 + $0x10c] sm:$0xff]
    %v1358 = vld [vmem:[#allocation2 + $0x114] sm:$0xff]
    %v1359 = vld [vmem:[#allocation2 + $0x11c] sm:$0xf]
    %v1360 = vld [vmem:[#allocation2 + $0x120] sm:$0xff]
    %v1361 = vld [vmem:[#allocation2 + $0x128] sm:$0xff]
    %v1362 = vld [vmem:[#allocation2 + $0x130] sm:$0xff]
    %v1363 = vld [vmem:[#allocation2 + $0x138] sm:$0xff]
    %v1364 = vld [vmem:[#allocation2 + $0x140] sm:$0xf]
    %v1365 = vld [vmem:[#allocation2 + $0x144] sm:$0xff]
    %v1366 = vld [vmem:[#allocation2 + $0x14c] sm:$0xff]
    %v1367 = vld [vmem:[#allocation2 + $0x154] sm:$0xff]
    %v1368 = vld [vmem:[#allocation2 + $0x15c] sm:$0xff]
    %v1369 = vld [vmem:[#allocation2 + $0x164] sm:$0xf]
    %v1370 = vld [vmem:[#allocation2 + $0x168] sm:$0xff]
    %v1371 = vld [vmem:[#allocation2 + $0x170] sm:$0xff]
    %v1372 = vld [vmem:[#allocation2 + $0x178] sm:$0xff]
    %v1373 = vld [vmem:[#allocation2 + $0x180] sm:$0xff]
    %v1374 = vld [vmem:[#allocation2 + $0x188] sm:$0xf]
    %v1375 = vld [vmem:[#allocation2 + $0x18c] sm:$0xff]
    %v1376 = vld [vmem:[#allocation2 + $0x194] sm:$0xff]
    %v1377 = vld [vmem:[#allocation2 + $0x19c] sm:$0xff]
    %v1378 = vld [vmem:[#allocation2 + $0x1a4] sm:$0xff]
    %v1379 = vld [vmem:[#allocation2 + $0x1ac] sm:$0xf]
    %v1380 = vld [vmem:[#allocation2 + $0x1b0] sm:$0xff]
    %v1381 = vld [vmem:[#allocation2 + $0x1b8] sm:$0xff]
    %v1382 = vld [vmem:[#allocation2 + $0x1c0] sm:$0xff]
    %v1383 = vld [vmem:[#allocation2 + $0x1c8] sm:$0xff]
    %v1384 = vld [vmem:[#allocation2 + $0x1d0] sm:$0xf]
    %v1385 = vld [vmem:[#allocation2 + $0x1d4] sm:$0xff]
    %v1386 = vld [vmem:[#allocation2 + $0x1dc] sm:$0xff]
    %v1387 = vld [vmem:[#allocation2 + $0x1e4] sm:$0xff]
    %v1388 = vld [vmem:[#allocation2 + $0x1ec] sm:$0xff]
    %v1389 = vld [vmem:[#allocation2 + $0x1f4] sm:$0xf]
    %v1390 = vld [vmem:[#allocation2 + $0x1f8] sm:$0xff]
    %v1391 = vld [vmem:[#allocation2 + $0x200] sm:$0xff]
    %v1392 = vld [vmem:[#allocation2 + $0x208] sm:$0xff]
    %v1393 = vld [vmem:[#allocation2 + $0x210] sm:$0xff]
    %v1394 = vld [vmem:[#allocation2 + $0x218] sm:$0xf]
    %v1395 = vld [vmem:[#allocation2 + $0x21c] sm:$0xff]
    %v1396 = vld [vmem:[#allocation2 + $0x224] sm:$0xff]
    %v1397 = vld [vmem:[#allocation2 + $0x22c] sm:$0xff]
    %v1398 = vld [vmem:[#allocation2 + $0x234] sm:$0xff]
    %v1399 = vld [vmem:[#allocation2 + $0x23c] sm:$0xf]
    %v1400 = vld [vmem:[#allocation2 + $0x240] sm:$0xff]
    %v1401 = vld [vmem:[#allocation2 + $0x248] sm:$0xff]
    %v1402 = vld [vmem:[#allocation2 + $0x250] sm:$0xff]
    %v1403 = vld [vmem:[#allocation2 + $0x258] sm:$0xff]
    %v1404 = vld [vmem:[#allocation2 + $0x260] sm:$0xf]
    %v1405 = vld [vmem:[#allocation2 + $0x264] sm:$0xff]
    %v1406 = vld [vmem:[#allocation2 + $0x26c] sm:$0xff]
    %v1407 = vld [vmem:[#allocation2 + $0x274] sm:$0xff]
    %v1408 = vld [vmem:[#allocation2 + $0x27c] sm:$0xff]
    %v1409 = vld [vmem:[#allocation2 + $0x284] sm:$0xf]
    %v1410 = vld [vmem:[#allocation2 + $0x288] sm:$0xff]
    %v1411 = vld [vmem:[#allocation2 + $0x290] sm:$0xff]
    %v1412 = vld [vmem:[#allocation2 + $0x298] sm:$0xff]
    %v1413 = vld [vmem:[#allocation2 + $0x2a0] sm:$0xff]
    %v1414 = vld [vmem:[#allocation2 + $0x2a8] sm:$0xf]
    %v1415 = vld [vmem:[#allocation2 + $0x2ac] sm:$0xff]
    %v1416 = vld [vmem:[#allocation2 + $0x2b4] sm:$0xff]
    %v1417 = vld [vmem:[#allocation2 + $0x2bc] sm:$0xff]
    %v1418 = vld [vmem:[#allocation2 + $0x2c4] sm:$0xff]
    %v1419 = vld [vmem:[#allocation2 + $0x2cc] sm:$0xf]
    %v1420 = vld [vmem:[#allocation2 + $0x2d0] sm:$0xff]
    %v1421 = vld [vmem:[#allocation2 + $0x2d8] sm:$0xff]
    %v1422 = vld [vmem:[#allocation2 + $0x2e0] sm:$0xff]
    %v1423 = vld [vmem:[#allocation2 + $0x2e8] sm:$0xff]
    %v1424 = vld [vmem:[#allocation2 + $0x2f0] sm:$0xf]
    %v1425 = vld [vmem:[#allocation2 + $0x2f4] sm:$0xff]
    %v1426 = vld [vmem:[#allocation2 + $0x2fc] sm:$0xff]
    %v1427 = vld [vmem:[#allocation2 + $0x304] sm:$0xff]
    %v1428 = vld [vmem:[#allocation2 + $0x30c] sm:$0xff]
    %v1429 = vld [vmem:[#allocation2 + $0x314] sm:$0xf]
    %v1430 = vld [vmem:[#allocation2 + $0x318] sm:$0xff]
    %v1431 = vld [vmem:[#allocation2 + $0x320] sm:$0xff]
    %v1432 = vld [vmem:[#allocation2 + $0x328] sm:$0xff]
    %v1433 = vld [vmem:[#allocation2 + $0x330] sm:$0xff]
    %v1434 = vld [vmem:[#allocation2 + $0x338] sm:$0xf]
    %v1435 = vld [vmem:[#allocation2 + $0x33c] sm:$0xff]
    %v1436 = vld [vmem:[#allocation2 + $0x344] sm:$0xff]
    %v1437 = vld [vmem:[#allocation2 + $0x34c] sm:$0xff]
    %v1438 = vld [vmem:[#allocation2 + $0x354] sm:$0xff]
    %v1439 = vld [vmem:[#allocation2 + $0x35c] sm:$0xf]
    %v1440 = vld [vmem:[#allocation2 + $0x360] sm:$0xff]
    %v1441 = vld [vmem:[#allocation2 + $0x368] sm:$0xff]
    %v1442 = vld [vmem:[#allocation2 + $0x370] sm:$0xff]
    %v1443 = vld [vmem:[#allocation2 + $0x378] sm:$0xff]
    %v1444 = vld [vmem:[#allocation2 + $0x380] sm:$0xf]
    %v1445 = vld [vmem:[#allocation2 + $0x384] sm:$0xff]
    %v1446 = vld [vmem:[#allocation2 + $0x38c] sm:$0xff]
    %v1447 = vld [vmem:[#allocation2 + $0x394] sm:$0xff]
    %v1448 = vld [vmem:[#allocation2 + $0x39c] sm:$0xff]
    %v1449 = vld [vmem:[#allocation2 + $0x3a4] sm:$0xf]
    %v1450 = vld [vmem:[#allocation2 + $0x3a8] sm:$0xff]
    %v1451 = vld [vmem:[#allocation2 + $0x3b0] sm:$0xff]
    %v1452 = vld [vmem:[#allocation2 + $0x3b8] sm:$0xff]
    %v1453 = vld [vmem:[#allocation2 + $0x3c0] sm:$0xff]
    %v1454 = vld [vmem:[#allocation2 + $0x3c8] sm:$0xf]
    %v1455 = vld [vmem:[#allocation2 + $0x3cc] sm:$0xff]
    %v1456 = vld [vmem:[#allocation2 + $0x3d4] sm:$0xff]
    %v1457 = vld [vmem:[#allocation2 + $0x3dc] sm:$0xff]
    %v1458 = vld [vmem:[#allocation2 + $0x3e4] sm:$0xff]
    %v1459 = vld [vmem:[#allocation2 + $0x3ec] sm:$0xf]
    %v1460 = vld [vmem:[#allocation2 + $0x3f0] sm:$0xff]
    %v1461 = vld [vmem:[#allocation2 + $0x3f8] sm:$0xff]
    %v1462 = vld [vmem:[#allocation2 + $0x400] sm:$0xff]
    %v1463 = vld [vmem:[#allocation2 + $0x408] sm:$0xff]
    %v1464 = vld [vmem:[#allocation2 + $0x410] sm:$0xf]
    %v1465 = vld [vmem:[#allocation2 + $0x414] sm:$0xff]
    %v1466 = vld [vmem:[#allocation2 + $0x41c] sm:$0xff]
    %v1467 = vld [vmem:[#allocation2 + $0x424] sm:$0xff]
    %v1468 = vld [vmem:[#allocation2 + $0x42c] sm:$0xff]
    %v1469 = vld [vmem:[#allocation2 + $0x434] sm:$0xf]
    %v1470 = vld [vmem:[#allocation2 + $0x438] sm:$0xff]
    %v1471 = vld [vmem:[#allocation2 + $0x440] sm:$0xff]
    %v1472 = vld [vmem:[#allocation2 + $0x448] sm:$0xff]
    %v1473 = vld [vmem:[#allocation2 + $0x450] sm:$0xff]
    %v1474 = vld [vmem:[#allocation2 + $0x458] sm:$0xf]
    %v1475 = vld [vmem:[#allocation2 + $0x45c] sm:$0xff]
    %v1476 = vld [vmem:[#allocation2 + $0x464] sm:$0xff]
    %v1477 = vld [vmem:[#allocation2 + $0x46c] sm:$0xff]
    %v1478 = vld [vmem:[#allocation2 + $0x474] sm:$0xff]
    %v1479 = vld [vmem:[#allocation2 + $0x47c] sm:$0xf]
    %v1480 = vld [vmem:[#allocation2 + $0x480] sm:$0xff]
    %v1481 = vld [vmem:[#allocation2 + $0x488] sm:$0xff]
    %v1482 = vld [vmem:[#allocation2 + $0x490] sm:$0xff]
    %v1483 = vld [vmem:[#allocation2 + $0x498] sm:$0xff]
    %v1484 = vld [vmem:[#allocation2 + $0x4a0] sm:$0xf]
    %v1485 = vld [vmem:[#allocation2 + $0x4a4] sm:$0xff]
    %v1486 = vld [vmem:[#allocation2 + $0x4ac] sm:$0xff]
    %v1487 = vld [vmem:[#allocation2 + $0x4b4] sm:$0xff]
    %v1488 = vld [vmem:[#allocation2 + $0x4bc] sm:$0xff]
    %v1489 = vld [vmem:[#allocation2 + $0x4c4] sm:$0xf]
    %v1490 = vld [vmem:[#allocation2 + $0x4c8] sm:$0xff]
    %v1491 = vld [vmem:[#allocation2 + $0x4d0] sm:$0xff]
    %v1492 = vld [vmem:[#allocation2 + $0x4d8] sm:$0xff]
    %v1493 = vld [vmem:[#allocation2 + $0x4e0] sm:$0xff]
    %v1494 = vld [vmem:[#allocation2 + $0x4e8] sm:$0xf]
    %v1495 = vld [vmem:[#allocation2 + $0x4ec] sm:$0xff]
    %v1496 = vld [vmem:[#allocation2 + $0x4f4] sm:$0xff]
    %v1497 = vld [vmem:[#allocation2 + $0x4fc] sm:$0xff]
    %v1498 = vld [vmem:[#allocation2 + $0x504] sm:$0xff]
    %v1499 = vld [vmem:[#allocation2 + $0x50c] sm:$0xf]
    %v1500 = vld [vmem:[#allocation2 + $0x510] sm:$0xff]
    %v1501 = vld [vmem:[#allocation2 + $0x518] sm:$0xff]
    %v1502 = vld [vmem:[#allocation2 + $0x520] sm:$0xff]
    %v1503 = vld [vmem:[#allocation2 + $0x528] sm:$0xff]
    %v1504 = vld [vmem:[#allocation2 + $0x530] sm:$0xf]
    %v1505 = vld [vmem:[#allocation2 + $0x534] sm:$0xff]
    %v1506 = vld [vmem:[#allocation2 + $0x53c] sm:$0xff]
    %v1507 = vld [vmem:[#allocation2 + $0x544] sm:$0xff]
    %v1508 = vld [vmem:[#allocation2 + $0x54c] sm:$0xff]
    %v1509 = vld [vmem:[#allocation2 + $0x554] sm:$0xf]
    %v1510 = vld [vmem:[#allocation2 + $0x558] sm:$0xff]
    %v1511 = vld [vmem:[#allocation2 + $0x560] sm:$0xff]
    %v1512 = vld [vmem:[#allocation2 + $0x568] sm:$0xff]
    %v1513 = vld [vmem:[#allocation2 + $0x570] sm:$0xff]
    %v1514 = vld [vmem:[#allocation2 + $0x578] sm:$0xf]
    %v1515 = vld [vmem:[#allocation2 + $0x57c] sm:$0xff]
    %v1516 = vld [vmem:[#allocation2 + $0x584] sm:$0xff]
    %v1517 = vld [vmem:[#allocation2 + $0x58c] sm:$0xff]
    %v1518 = vld [vmem:[#allocation2 + $0x594] sm:$0xff]
    %v1519 = vld [vmem:[#allocation2 + $0x59c] sm:$0xf]
    %v1520 = vld [vmem:[#allocation2 + $0x5a0] sm:$0xff]
    %v1521 = vld [vmem:[#allocation2 + $0x5a8] sm:$0xff]
    %v1522 = vld [vmem:[#allocation2 + $0x5b0] sm:$0xff]
    %v1523 = vld [vmem:[#allocation2 + $0x5b8] sm:$0xff]
    %v1524 = vld [vmem:[#allocation2 + $0x5c0] sm:$0xf]
    %v1525 = vld [vmem:[#allocation2 + $0x5c4] sm:$0xff]
    %v1526 = vld [vmem:[#allocation2 + $0x5cc] sm:$0xff]
    %v1527 = vld [vmem:[#allocation2 + $0x5d4] sm:$0xff]
    %v1528 = vld [vmem:[#allocation2 + $0x5dc] sm:$0xff]
    %v1529 = vld [vmem:[#allocation2 + $0x5e4] sm:$0xf]
    %v1530 = vld [vmem:[#allocation2 + $0x5e8] sm:$0xff]
    %v1531 = vld [vmem:[#allocation2 + $0x5f0] sm:$0xff]
    %v1532 = vld [vmem:[#allocation2 + $0x5f8] sm:$0xff]
    %v1533 = vld [vmem:[#allocation2 + $0x600] sm:$0xff]
    %v1534 = vld [vmem:[#allocation2 + $0x608] sm:$0xf]
    %v1535 = vld [vmem:[#allocation2 + $0x60c] sm:$0xff]
    %v1536 = vld [vmem:[#allocation2 + $0x614] sm:$0xff]
    %v1537 = vld [vmem:[#allocation2 + $0x61c] sm:$0xff]
    %v1538 = vld [vmem:[#allocation2 + $0x624] sm:$0xff]
    %v1539 = vld [vmem:[#allocation2 + $0x62c] sm:$0xf]
    %v1540 = vld [vmem:[#allocation2 + $0x630] sm:$0xff]
    %v1541 = vld [vmem:[#allocation2 + $0x638] sm:$0xff]
    %v1542 = vld [vmem:[#allocation2 + $0x640] sm:$0xff]
    %v1543 = vld [vmem:[#allocation2 + $0x648] sm:$0xff]
    %v1544 = vld [vmem:[#allocation2 + $0x650] sm:$0xf]
    %v1545 = vld [vmem:[#allocation2 + $0x654] sm:$0xff]
    %v1546 = vld [vmem:[#allocation2 + $0x65c] sm:$0xff]
    %v1547 = vld [vmem:[#allocation2 + $0x664] sm:$0xff]
    %v1548 = vld [vmem:[#allocation2 + $0x66c] sm:$0xff]
    %v1549 = vld [vmem:[#allocation2 + $0x674] sm:$0xf]
    %v1550 = vld [vmem:[#allocation2 + $0x678] sm:$0xff]
    %v1551 = vld [vmem:[#allocation2 + $0x680] sm:$0xff]
    %v1552 = vld [vmem:[#allocation2 + $0x688] sm:$0xff]
    %v1553 = vld [vmem:[#allocation2 + $0x690] sm:$0xff]
    %v1554 = vld [vmem:[#allocation2 + $0x698] sm:$0xf]
    %v1555 = vld [vmem:[#allocation2 + $0x69c] sm:$0xff]
    %v1556 = vld [vmem:[#allocation2 + $0x6a4] sm:$0xff]
    %v1557 = vld [vmem:[#allocation2 + $0x6ac] sm:$0xff]
    %v1558 = vld [vmem:[#allocation2 + $0x6b4] sm:$0xff]
    %v1559 = vld [vmem:[#allocation2 + $0x6bc] sm:$0xf]
    %v1560 = vld [vmem:[#allocation16] sm:$0xff]
    %v1561 = vld [vmem:[#allocation16 + $0x8] sm:$0x1]
    %v1564 = vperm.slane %v1560, 0
    %v1565 = vperm.slane %v1560, 1
    %v1566 = vperm.slane %v1560, 2
    %v1567 = vperm.slane %v1560, 3
    %v1568 = vperm.slane %v1560, 4
    %v1569 = vperm.slane %v1560, 5
    %v1570 = vperm.slane %v1560, 6
    %v1571 = vperm.slane %v1560, 7
    %v1572 = vperm.slane %v1561, 0
    %v1822 = vunpack.c.l.b16 %v1320
    %v1823 = vunpack.c.h.b16 %v1320
    %v1824 = vunpack.c.l.b16 %v1321
    %v1825 = vunpack.c.h.b16 %v1321
    %v1826 = vunpack.c.l.b16 %v1322
    %v1827 = vunpack.c.h.b16 %v1322
    %v1828 = vunpack.c.l.b16 %v1323
    %v1829 = vunpack.c.h.b16 %v1323
    %v1830 = vunpack.c.l.b16 %v1324
    %v1831 = vunpack.c.l.b16 %v1325
    %v1832 = vunpack.c.h.b16 %v1325
    %v1833 = vunpack.c.l.b16 %v1326
    %v1834 = vunpack.c.h.b16 %v1326
    %v1835 = vunpack.c.l.b16 %v1327
    %v1836 = vunpack.c.h.b16 %v1327
    %v1837 = vunpack.c.l.b16 %v1328
    %v1838 = vunpack.c.h.b16 %v1328
    %v1839 = vunpack.c.l.b16 %v1329
    %v1840 = vunpack.c.l.b16 %v1330
    %v1841 = vunpack.c.h.b16 %v1330
    %v1842 = vunpack.c.l.b16 %v1331
    %v1843 = vunpack.c.h.b16 %v1331
    %v1844 = vunpack.c.l.b16 %v1332
    %v1845 = vunpack.c.h.b16 %v1332
    %v1846 = vunpack.c.l.b16 %v1333
    %v1847 = vunpack.c.h.b16 %v1333
    %v1848 = vunpack.c.l.b16 %v1334
    %v1849 = vunpack.c.l.b16 %v1335
    %v1850 = vunpack.c.h.b16 %v1335
    %v1851 = vunpack.c.l.b16 %v1336
    %v1852 = vunpack.c.h.b16 %v1336
    %v1853 = vunpack.c.l.b16 %v1337
    %v1854 = vunpack.c.h.b16 %v1337
    %v1855 = vunpack.c.l.b16 %v1338
    %v1856 = vunpack.c.h.b16 %v1338
    %v1857 = vunpack.c.l.b16 %v1339
    %v1858 = vunpack.c.l.b16 %v1340
    %v1859 = vunpack.c.h.b16 %v1340
    %v1860 = vunpack.c.l.b16 %v1341
    %v1861 = vunpack.c.h.b16 %v1341
    %v1862 = vunpack.c.l.b16 %v1342
    %v1863 = vunpack.c.h.b16 %v1342
    %v1864 = vunpack.c.l.b16 %v1343
    %v1865 = vunpack.c.h.b16 %v1343
    %v1866 = vunpack.c.l.b16 %v1344
    %v1867 = vunpack.c.l.b16 %v1345
    %v1868 = vunpack.c.h.b16 %v1345
    %v1869 = vunpack.c.l.b16 %v1346
    %v1870 = vunpack.c.h.b16 %v1346
    %v1871 = vunpack.c.l.b16 %v1347
    %v1872 = vunpack.c.h.b16 %v1347
    %v1873 = vunpack.c.l.b16 %v1348
    %v1874 = vunpack.c.h.b16 %v1348
    %v1875 = vunpack.c.l.b16 %v1349
    %v1876 = vunpack.c.l.b16 %v1350
    %v1877 = vunpack.c.h.b16 %v1350
    %v1878 = vunpack.c.l.b16 %v1351
    %v1879 = vunpack.c.h.b16 %v1351
    %v1880 = vunpack.c.l.b16 %v1352
    %v1881 = vunpack.c.h.b16 %v1352
    %v1882 = vunpack.c.l.b16 %v1353
    %v1883 = vunpack.c.h.b16 %v1353
    %v1884 = vunpack.c.l.b16 %v1354
    %v1885 = vunpack.c.l.b16 %v1355
    %v1886 = vunpack.c.h.b16 %v1355
    %v1887 = vunpack.c.l.b16 %v1356
    %v1888 = vunpack.c.h.b16 %v1356
    %v1889 = vunpack.c.l.b16 %v1357
    %v1890 = vunpack.c.h.b16 %v1357
    %v1891 = vunpack.c.l.b16 %v1358
    %v1892 = vunpack.c.h.b16 %v1358
    %v1893 = vunpack.c.l.b16 %v1359
    %v1894 = vunpack.c.l.b16 %v1360
    %v1895 = vunpack.c.h.b16 %v1360
    %v1896 = vunpack.c.l.b16 %v1361
    %v1897 = vunpack.c.h.b16 %v1361
    %v1898 = vunpack.c.l.b16 %v1362
    %v1899 = vunpack.c.h.b16 %v1362
    %v1900 = vunpack.c.l.b16 %v1363
    %v1901 = vunpack.c.h.b16 %v1363
    %v1902 = vunpack.c.l.b16 %v1364
    %v1903 = vunpack.c.l.b16 %v1365
    %v1904 = vunpack.c.h.b16 %v1365
    %v1905 = vunpack.c.l.b16 %v1366
    %v1906 = vunpack.c.h.b16 %v1366
    %v1907 = vunpack.c.l.b16 %v1367
    %v1908 = vunpack.c.h.b16 %v1367
    %v1909 = vunpack.c.l.b16 %v1368
    %v1910 = vunpack.c.h.b16 %v1368
    %v1911 = vunpack.c.l.b16 %v1369
    %v1912 = vunpack.c.l.b16 %v1370
    %v1913 = vunpack.c.h.b16 %v1370
    %v1914 = vunpack.c.l.b16 %v1371
    %v1915 = vunpack.c.h.b16 %v1371
    %v1916 = vunpack.c.l.b16 %v1372
    %v1917 = vunpack.c.h.b16 %v1372
    %v1918 = vunpack.c.l.b16 %v1373
    %v1919 = vunpack.c.h.b16 %v1373
    %v1920 = vunpack.c.l.b16 %v1374
    %v1921 = vunpack.c.l.b16 %v1375
    %v1922 = vunpack.c.h.b16 %v1375
    %v1923 = vunpack.c.l.b16 %v1376
    %v1924 = vunpack.c.h.b16 %v1376
    %v1925 = vunpack.c.l.b16 %v1377
    %v1926 = vunpack.c.h.b16 %v1377
    %v1927 = vunpack.c.l.b16 %v1378
    %v1928 = vunpack.c.h.b16 %v1378
    %v1929 = vunpack.c.l.b16 %v1379
    %v1930 = vunpack.c.l.b16 %v1380
    %v1931 = vunpack.c.h.b16 %v1380
    %v1932 = vunpack.c.l.b16 %v1381
    %v1933 = vunpack.c.h.b16 %v1381
    %v1934 = vunpack.c.l.b16 %v1382
    %v1935 = vunpack.c.h.b16 %v1382
    %v1936 = vunpack.c.l.b16 %v1383
    %v1937 = vunpack.c.h.b16 %v1383
    %v1938 = vunpack.c.l.b16 %v1384
    %v1939 = vunpack.c.l.b16 %v1385
    %v1940 = vunpack.c.h.b16 %v1385
    %v1941 = vunpack.c.l.b16 %v1386
    %v1942 = vunpack.c.h.b16 %v1386
    %v1943 = vunpack.c.l.b16 %v1387
    %v1944 = vunpack.c.h.b16 %v1387
    %v1945 = vunpack.c.l.b16 %v1388
    %v1946 = vunpack.c.h.b16 %v1388
    %v1947 = vunpack.c.l.b16 %v1389
    %v1948 = vunpack.c.l.b16 %v1390
    %v1949 = vunpack.c.h.b16 %v1390
    %v1950 = vunpack.c.l.b16 %v1391
    %v1951 = vunpack.c.h.b16 %v1391
    %v1952 = vunpack.c.l.b16 %v1392
    %v1953 = vunpack.c.h.b16 %v1392
    %v1954 = vunpack.c.l.b16 %v1393
    %v1955 = vunpack.c.h.b16 %v1393
    %v1956 = vunpack.c.l.b16 %v1394
    %v1957 = vunpack.c.l.b16 %v1395
    %v1958 = vunpack.c.h.b16 %v1395
    %v1959 = vunpack.c.l.b16 %v1396
    %v1960 = vunpack.c.h.b16 %v1396
    %v1961 = vunpack.c.l.b16 %v1397
    %v1962 = vunpack.c.h.b16 %v1397
    %v1963 = vunpack.c.l.b16 %v1398
    %v1964 = vunpack.c.h.b16 %v1398
    %v1965 = vunpack.c.l.b16 %v1399
    %v1966 = vunpack.c.l.b16 %v1400
    %v1967 = vunpack.c.h.b16 %v1400
    %v1968 = vunpack.c.l.b16 %v1401
    %v1969 = vunpack.c.h.b16 %v1401
    %v1970 = vunpack.c.l.b16 %v1402
    %v1971 = vunpack.c.h.b16 %v1402
    %v1972 = vunpack.c.l.b16 %v1403
    %v1973 = vunpack.c.h.b16 %v1403
    %v1974 = vunpack.c.l.b16 %v1404
    %v1975 = vunpack.c.l.b16 %v1405
    %v1976 = vunpack.c.h.b16 %v1405
    %v1977 = vunpack.c.l.b16 %v1406
    %v1978 = vunpack.c.h.b16 %v1406
    %v1979 = vunpack.c.l.b16 %v1407
    %v1980 = vunpack.c.h.b16 %v1407
    %v1981 = vunpack.c.l.b16 %v1408
    %v1982 = vunpack.c.h.b16 %v1408
    %v1983 = vunpack.c.l.b16 %v1409
    %v1984 = vunpack.c.l.b16 %v1410
    %v1985 = vunpack.c.h.b16 %v1410
    %v1986 = vunpack.c.l.b16 %v1411
    %v1987 = vunpack.c.h.b16 %v1411
    %v1988 = vunpack.c.l.b16 %v1412
    %v1989 = vunpack.c.h.b16 %v1412
    %v1990 = vunpack.c.l.b16 %v1413
    %v1991 = vunpack.c.h.b16 %v1413
    %v1992 = vunpack.c.l.b16 %v1414
    %v1993 = vunpack.c.l.b16 %v1415
    %v1994 = vunpack.c.h.b16 %v1415
    %v1995 = vunpack.c.l.b16 %v1416
    %v1996 = vunpack.c.h.b16 %v1416
    %v1997 = vunpack.c.l.b16 %v1417
    %v1998 = vunpack.c.h.b16 %v1417
    %v1999 = vunpack.c.l.b16 %v1418
    %v2000 = vunpack.c.h.b16 %v1418
    %v2001 = vunpack.c.l.b16 %v1419
    %v2002 = vunpack.c.l.b16 %v1420
    %v2003 = vunpack.c.h.b16 %v1420
    %v2004 = vunpack.c.l.b16 %v1421
    %v2005 = vunpack.c.h.b16 %v1421
    %v2006 = vunpack.c.l.b16 %v1422
    %v2007 = vunpack.c.h.b16 %v1422
    %v2008 = vunpack.c.l.b16 %v1423
    %v2009 = vunpack.c.h.b16 %v1423
    %v2010 = vunpack.c.l.b16 %v1424
    %v2011 = vunpack.c.l.b16 %v1425
    %v2012 = vunpack.c.h.b16 %v1425
    %v2013 = vunpack.c.l.b16 %v1426
    %v2014 = vunpack.c.h.b16 %v1426
    %v2015 = vunpack.c.l.b16 %v1427
    %v2016 = vunpack.c.h.b16 %v1427
    %v2017 = vunpack.c.l.b16 %v1428
    %v2018 = vunpack.c.h.b16 %v1428
    %v2019 = vunpack.c.l.b16 %v1429
    %v2020 = vunpack.c.l.b16 %v1430
    %v2021 = vunpack.c.h.b16 %v1430
    %v2022 = vunpack.c.l.b16 %v1431
    %v2023 = vunpack.c.h.b16 %v1431
    %v2024 = vunpack.c.l.b16 %v1432
    %v2025 = vunpack.c.h.b16 %v1432
    %v2026 = vunpack.c.l.b16 %v1433
    %v2027 = vunpack.c.h.b16 %v1433
    %v2028 = vunpack.c.l.b16 %v1434
    %v2029 = vunpack.c.l.b16 %v1435
    %v2030 = vunpack.c.h.b16 %v1435
    %v2031 = vunpack.c.l.b16 %v1436
    %v2032 = vunpack.c.h.b16 %v1436
    %v2033 = vunpack.c.l.b16 %v1437
    %v2034 = vunpack.c.h.b16 %v1437
    %v2035 = vunpack.c.l.b16 %v1438
    %v2036 = vunpack.c.h.b16 %v1438
    %v2037 = vunpack.c.l.b16 %v1439
    %v2038 = vunpack.c.l.b16 %v1440
    %v2039 = vunpack.c.h.b16 %v1440
    %v2040 = vunpack.c.l.b16 %v1441
    %v2041 = vunpack.c.h.b16 %v1441
    %v2042 = vunpack.c.l.b16 %v1442
    %v2043 = vunpack.c.h.b16 %v1442
    %v2044 = vunpack.c.l.b16 %v1443
    %v2045 = vunpack.c.h.b16 %v1443
    %v2046 = vunpack.c.l.b16 %v1444
    %v2047 = vunpack.c.l.b16 %v1445
    %v2048 = vunpack.c.h.b16 %v1445
    %v2049 = vunpack.c.l.b16 %v1446
    %v2050 = vunpack.c.h.b16 %v1446
    %v2051 = vunpack.c.l.b16 %v1447
    %v2052 = vunpack.c.h.b16 %v1447
    %v2053 = vunpack.c.l.b16 %v1448
    %v2054 = vunpack.c.h.b16 %v1448
    %v2055 = vunpack.c.l.b16 %v1449
    %v2056 = vunpack.c.l.b16 %v1450
    %v2057 = vunpack.c.h.b16 %v1450
    %v2058 = vunpack.c.l.b16 %v1451
    %v2059 = vunpack.c.h.b16 %v1451
    %v2060 = vunpack.c.l.b16 %v1452
    %v2061 = vunpack.c.h.b16 %v1452
    %v2062 = vunpack.c.l.b16 %v1453
    %v2063 = vunpack.c.h.b16 %v1453
    %v2064 = vunpack.c.l.b16 %v1454
    %v2065 = vunpack.c.l.b16 %v1455
    %v2066 = vunpack.c.h.b16 %v1455
    %v2067 = vunpack.c.l.b16 %v1456
    %v2068 = vunpack.c.h.b16 %v1456
    %v2069 = vunpack.c.l.b16 %v1457
    %v2070 = vunpack.c.h.b16 %v1457
    %v2071 = vunpack.c.l.b16 %v1458
    %v2072 = vunpack.c.h.b16 %v1458
    %v2073 = vunpack.c.l.b16 %v1459
    %v2074 = vunpack.c.l.b16 %v1460
    %v2075 = vunpack.c.h.b16 %v1460
    %v2076 = vunpack.c.l.b16 %v1461
    %v2077 = vunpack.c.h.b16 %v1461
    %v2078 = vunpack.c.l.b16 %v1462
    %v2079 = vunpack.c.h.b16 %v1462
    %v2080 = vunpack.c.l.b16 %v1463
    %v2081 = vunpack.c.h.b16 %v1463
    %v2082 = vunpack.c.l.b16 %v1464
    %v2083 = vunpack.c.l.b16 %v1465
    %v2084 = vunpack.c.h.b16 %v1465
    %v2085 = vunpack.c.l.b16 %v1466
    %v2086 = vunpack.c.h.b16 %v1466
    %v2087 = vunpack.c.l.b16 %v1467
    %v2088 = vunpack.c.h.b16 %v1467
    %v2089 = vunpack.c.l.b16 %v1468
    %v2090 = vunpack.c.h.b16 %v1468
    %v2091 = vunpack.c.l.b16 %v1469
    %v2092 = vunpack.c.l.b16 %v1470
    %v2093 = vunpack.c.h.b16 %v1470
    %v2094 = vunpack.c.l.b16 %v1471
    %v2095 = vunpack.c.h.b16 %v1471
    %v2096 = vunpack.c.l.b16 %v1472
    %v2097 = vunpack.c.h.b16 %v1472
    %v2098 = vunpack.c.l.b16 %v1473
    %v2099 = vunpack.c.h.b16 %v1473
    %v2100 = vunpack.c.l.b16 %v1474
    %v2101 = vunpack.c.l.b16 %v1475
    %v2102 = vunpack.c.h.b16 %v1475
    %v2103 = vunpack.c.l.b16 %v1476
    %v2104 = vunpack.c.h.b16 %v1476
    %v2105 = vunpack.c.l.b16 %v1477
    %v2106 = vunpack.c.h.b16 %v1477
    %v2107 = vunpack.c.l.b16 %v1478
    %v2108 = vunpack.c.h.b16 %v1478
    %v2109 = vunpack.c.l.b16 %v1479
    %v2110 = vunpack.c.l.b16 %v1480
    %v2111 = vunpack.c.h.b16 %v1480
    %v2112 = vunpack.c.l.b16 %v1481
    %v2113 = vunpack.c.h.b16 %v1481
    %v2114 = vunpack.c.l.b16 %v1482
    %v2115 = vunpack.c.h.b16 %v1482
    %v2116 = vunpack.c.l.b16 %v1483
    %v2117 = vunpack.c.h.b16 %v1483
    %v2118 = vunpack.c.l.b16 %v1484
    %v2119 = vunpack.c.l.b16 %v1485
    %v2120 = vunpack.c.h.b16 %v1485
    %v2121 = vunpack.c.l.b16 %v1486
    %v2122 = vunpack.c.h.b16 %v1486
    %v2123 = vunpack.c.l.b16 %v1487
    %v2124 = vunpack.c.h.b16 %v1487
    %v2125 = vunpack.c.l.b16 %v1488
    %v2126 = vunpack.c.h.b16 %v1488
    %v2127 = vunpack.c.l.b16 %v1489
    %v2128 = vunpack.c.l.b16 %v1490
    %v2129 = vunpack.c.h.b16 %v1490
    %v2130 = vunpack.c.l.b16 %v1491
    %v2131 = vunpack.c.h.b16 %v1491
    %v2132 = vunpack.c.l.b16 %v1492
    %v2133 = vunpack.c.h.b16 %v1492
    %v2134 = vunpack.c.l.b16 %v1493
    %v2135 = vunpack.c.h.b16 %v1493
    %v2136 = vunpack.c.l.b16 %v1494
    %v2137 = vunpack.c.l.b16 %v1495
    %v2138 = vunpack.c.h.b16 %v1495
    %v2139 = vunpack.c.l.b16 %v1496
    %v2140 = vunpack.c.h.b16 %v1496
    %v2141 = vunpack.c.l.b16 %v1497
    %v2142 = vunpack.c.h.b16 %v1497
    %v2143 = vunpack.c.l.b16 %v1498
    %v2144 = vunpack.c.h.b16 %v1498
    %v2145 = vunpack.c.l.b16 %v1499
    %v2146 = vunpack.c.l.b16 %v1500
    %v2147 = vunpack.c.h.b16 %v1500
    %v2148 = vunpack.c.l.b16 %v1501
    %v2149 = vunpack.c.h.b16 %v1501
    %v2150 = vunpack.c.l.b16 %v1502
    %v2151 = vunpack.c.h.b16 %v1502
    %v2152 = vunpack.c.l.b16 %v1503
    %v2153 = vunpack.c.h.b16 %v1503
    %v2154 = vunpack.c.l.b16 %v1504
    %v2155 = vunpack.c.l.b16 %v1505
    %v2156 = vunpack.c.h.b16 %v1505
    %v2157 = vunpack.c.l.b16 %v1506
    %v2158 = vunpack.c.h.b16 %v1506
    %v2159 = vunpack.c.l.b16 %v1507
    %v2160 = vunpack.c.h.b16 %v1507
    %v2161 = vunpack.c.l.b16 %v1508
    %v2162 = vunpack.c.h.b16 %v1508
    %v2163 = vunpack.c.l.b16 %v1509
    %v2164 = vunpack.c.l.b16 %v1510
    %v2165 = vunpack.c.h.b16 %v1510
    %v2166 = vunpack.c.l.b16 %v1511
    %v2167 = vunpack.c.h.b16 %v1511
    %v2168 = vunpack.c.l.b16 %v1512
    %v2169 = vunpack.c.h.b16 %v1512
    %v2170 = vunpack.c.l.b16 %v1513
    %v2171 = vunpack.c.h.b16 %v1513
    %v2172 = vunpack.c.l.b16 %v1514
    %v2173 = vunpack.c.l.b16 %v1515
    %v2174 = vunpack.c.h.b16 %v1515
    %v2175 = vunpack.c.l.b16 %v1516
    %v2176 = vunpack.c.h.b16 %v1516
    %v2177 = vunpack.c.l.b16 %v1517
    %v2178 = vunpack.c.h.b16 %v1517
    %v2179 = vunpack.c.l.b16 %v1518
    %v2180 = vunpack.c.h.b16 %v1518
    %v2181 = vunpack.c.l.b16 %v1519
    %v2182 = vunpack.c.l.b16 %v1520
    %v2183 = vunpack.c.h.b16 %v1520
    %v2184 = vunpack.c.l.b16 %v1521
    %v2185 = vunpack.c.h.b16 %v1521
    %v2186 = vunpack.c.l.b16 %v1522
    %v2187 = vunpack.c.h.b16 %v1522
    %v2188 = vunpack.c.l.b16 %v1523
    %v2189 = vunpack.c.h.b16 %v1523
    %v2190 = vunpack.c.l.b16 %v1524
    %v2191 = vunpack.c.l.b16 %v1525
    %v2192 = vunpack.c.h.b16 %v1525
    %v2193 = vunpack.c.l.b16 %v1526
    %v2194 = vunpack.c.h.b16 %v1526
    %v2195 = vunpack.c.l.b16 %v1527
    %v2196 = vunpack.c.h.b16 %v1527
    %v2197 = vunpack.c.l.b16 %v1528
    %v2198 = vunpack.c.h.b16 %v1528
    %v2199 = vunpack.c.l.b16 %v1529
    %v2200 = vunpack.c.l.b16 %v1530
    %v2201 = vunpack.c.h.b16 %v1530
    %v2202 = vunpack.c.l.b16 %v1531
    %v2203 = vunpack.c.h.b16 %v1531
    %v2204 = vunpack.c.l.b16 %v1532
    %v2205 = vunpack.c.h.b16 %v1532
    %v2206 = vunpack.c.l.b16 %v1533
    %v2207 = vunpack.c.h.b16 %v1533
    %v2208 = vunpack.c.l.b16 %v1534
    %v2209 = vunpack.c.l.b16 %v1535
    %v2210 = vunpack.c.h.b16 %v1535
    %v2211 = vunpack.c.l.b16 %v1536
    %v2212 = vunpack.c.h.b16 %v1536
    %v2213 = vunpack.c.l.b16 %v1537
    %v2214 = vunpack.c.h.b16 %v1537
    %v2215 = vunpack.c.l.b16 %v1538
    %v2216 = vunpack.c.h.b16 %v1538
    %v2217 = vunpack.c.l.b16 %v1539
    %v2218 = vunpack.c.l.b16 %v1540
    %v2219 = vunpack.c.h.b16 %v1540
    %v2220 = vunpack.c.l.b16 %v1541
    %v2221 = vunpack.c.h.b16 %v1541
    %v2222 = vunpack.c.l.b16 %v1542
    %v2223 = vunpack.c.h.b16 %v1542
    %v2224 = vunpack.c.l.b16 %v1543
    %v2225 = vunpack.c.h.b16 %v1543
    %v2226 = vunpack.c.l.b16 %v1544
    %v2227 = vunpack.c.l.b16 %v1545
    %v2228 = vunpack.c.h.b16 %v1545
    %v2229 = vunpack.c.l.b16 %v1546
    %v2230 = vunpack.c.h.b16 %v1546
    %v2231 = vunpack.c.l.b16 %v1547
    %v2232 = vunpack.c.h.b16 %v1547
    %v2233 = vunpack.c.l.b16 %v1548
    %v2234 = vunpack.c.h.b16 %v1548
    %v2235 = vunpack.c.l.b16 %v1549
    %v2236 = vunpack.c.l.b16 %v1550
    %v2237 = vunpack.c.h.b16 %v1550
    %v2238 = vunpack.c.l.b16 %v1551
    %v2239 = vunpack.c.h.b16 %v1551
    %v2240 = vunpack.c.l.b16 %v1552
    %v2241 = vunpack.c.h.b16 %v1552
    %v2242 = vunpack.c.l.b16 %v1553
    %v2243 = vunpack.c.h.b16 %v1553
    %v2244 = vunpack.c.l.b16 %v1554
    %v2245 = vunpack.c.l.b16 %v1555
    %v2246 = vunpack.c.h.b16 %v1555
    %v2247 = vunpack.c.l.b16 %v1556
    %v2248 = vunpack.c.h.b16 %v1556
    %v2249 = vunpack.c.l.b16 %v1557
    %v2250 = vunpack.c.h.b16 %v1557
    %v2251 = vunpack.c.l.b16 %v1558
    %v2252 = vunpack.c.h.b16 %v1558
    %v2253 = vunpack.c.l.b16 %v1559
    %v2254 = vpack.c.b16 %v1831, %v1822
    %v2255 = vpack.c.b16 %v1832, %v1823
    %v2256 = vpack.c.b16 %v1833, %v1824
    %v2257 = vpack.c.b16 %v1834, %v1825
    %v2258 = vpack.c.b16 %v1835, %v1826
    %v2259 = vpack.c.b16 %v1836, %v1827
    %v2260 = vpack.c.b16 %v1837, %v1828
    %v2261 = vpack.c.b16 %v1838, %v1829
    %v2262 = vpack.c.b16 %v1839, %v1830
    %v2263 = vpack.c.b16 %v1849, %v1840
    %v2264 = vpack.c.b16 %v1850, %v1841
    %v2265 = vpack.c.b16 %v1851, %v1842
    %v2266 = vpack.c.b16 %v1852, %v1843
    %v2267 = vpack.c.b16 %v1853, %v1844
    %v2268 = vpack.c.b16 %v1854, %v1845
    %v2269 = vpack.c.b16 %v1855, %v1846
    %v2270 = vpack.c.b16 %v1856, %v1847
    %v2271 = vpack.c.b16 %v1857, %v1848
    %v2272 = vpack.c.b16 %v1867, %v1858
    %v2273 = vpack.c.b16 %v1868, %v1859
    %v2274 = vpack.c.b16 %v1869, %v1860
    %v2275 = vpack.c.b16 %v1870, %v1861
    %v2276 = vpack.c.b16 %v1871, %v1862
    %v2277 = vpack.c.b16 %v1872, %v1863
    %v2278 = vpack.c.b16 %v1873, %v1864
    %v2279 = vpack.c.b16 %v1874, %v1865
    %v2280 = vpack.c.b16 %v1875, %v1866
    %v2281 = vpack.c.b16 %v1885, %v1876
    %v2282 = vpack.c.b16 %v1886, %v1877
    %v2283 = vpack.c.b16 %v1887, %v1878
    %v2284 = vpack.c.b16 %v1888, %v1879
    %v2285 = vpack.c.b16 %v1889, %v1880
    %v2286 = vpack.c.b16 %v1890, %v1881
    %v2287 = vpack.c.b16 %v1891, %v1882
    %v2288 = vpack.c.b16 %v1892, %v1883
    %v2289 = vpack.c.b16 %v1893, %v1884
    %v2290 = vpack.c.b16 %v1903, %v1894
    %v2291 = vpack.c.b16 %v1904, %v1895
    %v2292 = vpack.c.b16 %v1905, %v1896
    %v2293 = vpack.c.b16 %v1906, %v1897
    %v2294 = vpack.c.b16 %v1907, %v1898
    %v2295 = vpack.c.b16 %v1908, %v1899
    %v2296 = vpack.c.b16 %v1909, %v1900
    %v2297 = vpack.c.b16 %v1910, %v1901
    %v2298 = vpack.c.b16 %v1911, %v1902
    %v2299 = vpack.c.b16 %v1921, %v1912
    %v2300 = vpack.c.b16 %v1922, %v1913
    %v2301 = vpack.c.b16 %v1923, %v1914
    %v2302 = vpack.c.b16 %v1924, %v1915
    %v2303 = vpack.c.b16 %v1925, %v1916
    %v2304 = vpack.c.b16 %v1926, %v1917
    %v2305 = vpack.c.b16 %v1927, %v1918
    %v2306 = vpack.c.b16 %v1928, %v1919
    %v2307 = vpack.c.b16 %v1929, %v1920
    %v2308 = vpack.c.b16 %v1939, %v1930
    %v2309 = vpack.c.b16 %v1940, %v1931
    %v2310 = vpack.c.b16 %v1941, %v1932
    %v2311 = vpack.c.b16 %v1942, %v1933
    %v2312 = vpack.c.b16 %v1943, %v1934
    %v2313 = vpack.c.b16 %v1944, %v1935
    %v2314 = vpack.c.b16 %v1945, %v1936
    %v2315 = vpack.c.b16 %v1946, %v1937
    %v2316 = vpack.c.b16 %v1947, %v1938
    %v2317 = vpack.c.b16 %v1957, %v1948
    %v2318 = vpack.c.b16 %v1958, %v1949
    %v2319 = vpack.c.b16 %v1959, %v1950
    %v2320 = vpack.c.b16 %v1960, %v1951
    %v2321 = vpack.c.b16 %v1961, %v1952
    %v2322 = vpack.c.b16 %v1962, %v1953
    %v2323 = vpack.c.b16 %v1963, %v1954
    %v2324 = vpack.c.b16 %v1964, %v1955
    %v2325 = vpack.c.b16 %v1965, %v1956
    %v2326 = vpack.c.b16 %v1975, %v1966
    %v2327 = vpack.c.b16 %v1976, %v1967
    %v2328 = vpack.c.b16 %v1977, %v1968
    %v2329 = vpack.c.b16 %v1978, %v1969
    %v2330 = vpack.c.b16 %v1979, %v1970
    %v2331 = vpack.c.b16 %v1980, %v1971
    %v2332 = vpack.c.b16 %v1981, %v1972
    %v2333 = vpack.c.b16 %v1982, %v1973
    %v2334 = vpack.c.b16 %v1983, %v1974
    %v2335 = vpack.c.b16 %v1993, %v1984
    %v2336 = vpack.c.b16 %v1994, %v1985
    %v2337 = vpack.c.b16 %v1995, %v1986
    %v2338 = vpack.c.b16 %v1996, %v1987
    %v2339 = vpack.c.b16 %v1997, %v1988
    %v2340 = vpack.c.b16 %v1998, %v1989
    %v2341 = vpack.c.b16 %v1999, %v1990
    %v2342 = vpack.c.b16 %v2000, %v1991
    %v2343 = vpack.c.b16 %v2001, %v1992
    %v2344 = vpack.c.b16 %v2011, %v2002
    %v2345 = vpack.c.b16 %v2012, %v2003
    %v2346 = vpack.c.b16 %v2013, %v2004
    %v2347 = vpack.c.b16 %v2014, %v2005
    %v2348 = vpack.c.b16 %v2015, %v2006
    %v2349 = vpack.c.b16 %v2016, %v2007
    %v2350 = vpack.c.b16 %v2017, %v2008
    %v2351 = vpack.c.b16 %v2018, %v2009
    %v2352 = vpack.c.b16 %v2019, %v2010
    %v2353 = vpack.c.b16 %v2029, %v2020
    %v2354 = vpack.c.b16 %v2030, %v2021
    %v2355 = vpack.c.b16 %v2031, %v2022
    %v2356 = vpack.c.b16 %v2032, %v2023
    %v2357 = vpack.c.b16 %v2033, %v2024
    %v2358 = vpack.c.b16 %v2034, %v2025
    %v2359 = vpack.c.b16 %v2035, %v2026
    %v2360 = vpack.c.b16 %v2036, %v2027
    %v2361 = vpack.c.b16 %v2037, %v2028
    %v2362 = vpack.c.b16 %v2047, %v2038
    %v2363 = vpack.c.b16 %v2048, %v2039
    %v2364 = vpack.c.b16 %v2049, %v2040
    %v2365 = vpack.c.b16 %v2050, %v2041
    %v2366 = vpack.c.b16 %v2051, %v2042
    %v2367 = vpack.c.b16 %v2052, %v2043
    %v2368 = vpack.c.b16 %v2053, %v2044
    %v2369 = vpack.c.b16 %v2054, %v2045
    %v2370 = vpack.c.b16 %v2055, %v2046
    %v2371 = vpack.c.b16 %v2065, %v2056
    %v2372 = vpack.c.b16 %v2066, %v2057
    %v2373 = vpack.c.b16 %v2067, %v2058
    %v2374 = vpack.c.b16 %v2068, %v2059
    %v2375 = vpack.c.b16 %v2069, %v2060
    %v2376 = vpack.c.b16 %v2070, %v2061
    %v2377 = vpack.c.b16 %v2071, %v2062
    %v2378 = vpack.c.b16 %v2072, %v2063
    %v2379 = vpack.c.b16 %v2073, %v2064
    %v2380 = vpack.c.b16 %v2083, %v2074
    %v2381 = vpack.c.b16 %v2084, %v2075
    %v2382 = vpack.c.b16 %v2085, %v2076
    %v2383 = vpack.c.b16 %v2086, %v2077
    %v2384 = vpack.c.b16 %v2087, %v2078
    %v2385 = vpack.c.b16 %v2088, %v2079
    %v2386 = vpack.c.b16 %v2089, %v2080
    %v2387 = vpack.c.b16 %v2090, %v2081
    %v2388 = vpack.c.b16 %v2091, %v2082
    %v2389 = vpack.c.b16 %v2101, %v2092
    %v2390 = vpack.c.b16 %v2102, %v2093
    %v2391 = vpack.c.b16 %v2103, %v2094
    %v2392 = vpack.c.b16 %v2104, %v2095
    %v2393 = vpack.c.b16 %v2105, %v2096
    %v2394 = vpack.c.b16 %v2106, %v2097
    %v2395 = vpack.c.b16 %v2107, %v2098
    %v2396 = vpack.c.b16 %v2108, %v2099
    %v2397 = vpack.c.b16 %v2109, %v2100
    %v2398 = vpack.c.b16 %v2119, %v2110
    %v2399 = vpack.c.b16 %v2120, %v2111
    %v2400 = vpack.c.b16 %v2121, %v2112
    %v2401 = vpack.c.b16 %v2122, %v2113
    %v2402 = vpack.c.b16 %v2123, %v2114
    %v2403 = vpack.c.b16 %v2124, %v2115
    %v2404 = vpack.c.b16 %v2125, %v2116
    %v2405 = vpack.c.b16 %v2126, %v2117
    %v2406 = vpack.c.b16 %v2127, %v2118
    %v2407 = vpack.c.b16 %v2137, %v2128
    %v2408 = vpack.c.b16 %v2138, %v2129
    %v2409 = vpack.c.b16 %v2139, %v2130
    %v2410 = vpack.c.b16 %v2140, %v2131
    %v2411 = vpack.c.b16 %v2141, %v2132
    %v2412 = vpack.c.b16 %v2142, %v2133
    %v2413 = vpack.c.b16 %v2143, %v2134
    %v2414 = vpack.c.b16 %v2144, %v2135
    %v2415 = vpack.c.b16 %v2145, %v2136
    %v2416 = vpack.c.b16 %v2155, %v2146
    %v2417 = vpack.c.b16 %v2156, %v2147
    %v2418 = vpack.c.b16 %v2157, %v2148
    %v2419 = vpack.c.b16 %v2158, %v2149
    %v2420 = vpack.c.b16 %v2159, %v2150
    %v2421 = vpack.c.b16 %v2160, %v2151
    %v2422 = vpack.c.b16 %v2161, %v2152
    %v2423 = vpack.c.b16 %v2162, %v2153
    %v2424 = vpack.c.b16 %v2163, %v2154
    %v2425 = vpack.c.b16 %v2173, %v2164
    %v2426 = vpack.c.b16 %v2174, %v2165
    %v2427 = vpack.c.b16 %v2175, %v2166
    %v2428 = vpack.c.b16 %v2176, %v2167
    %v2429 = vpack.c.b16 %v2177, %v2168
    %v2430 = vpack.c.b16 %v2178, %v2169
    %v2431 = vpack.c.b16 %v2179, %v2170
    %v2432 = vpack.c.b16 %v2180, %v2171
    %v2433 = vpack.c.b16 %v2181, %v2172
    %v2434 = vpack.c.b16 %v2191, %v2182
    %v2435 = vpack.c.b16 %v2192, %v2183
    %v2436 = vpack.c.b16 %v2193, %v2184
    %v2437 = vpack.c.b16 %v2194, %v2185
    %v2438 = vpack.c.b16 %v2195, %v2186
    %v2439 = vpack.c.b16 %v2196, %v2187
    %v2440 = vpack.c.b16 %v2197, %v2188
    %v2441 = vpack.c.b16 %v2198, %v2189
    %v2442 = vpack.c.b16 %v2199, %v2190
    %v2443 = vpack.c.b16 %v2209, %v2200
    %v2444 = vpack.c.b16 %v2210, %v2201
    %v2445 = vpack.c.b16 %v2211, %v2202
    %v2446 = vpack.c.b16 %v2212, %v2203
    %v2447 = vpack.c.b16 %v2213, %v2204
    %v2448 = vpack.c.b16 %v2214, %v2205
    %v2449 = vpack.c.b16 %v2215, %v2206
    %v2450 = vpack.c.b16 %v2216, %v2207
    %v2451 = vpack.c.b16 %v2217, %v2208
    %v2452 = vpack.c.b16 %v2227, %v2218
    %v2453 = vpack.c.b16 %v2228, %v2219
    %v2454 = vpack.c.b16 %v2229, %v2220
    %v2455 = vpack.c.b16 %v2230, %v2221
    %v2456 = vpack.c.b16 %v2231, %v2222
    %v2457 = vpack.c.b16 %v2232, %v2223
    %v2458 = vpack.c.b16 %v2233, %v2224
    %v2459 = vpack.c.b16 %v2234, %v2225
    %v2460 = vpack.c.b16 %v2235, %v2226
    %v2461 = vpack.c.b16 %v2245, %v2236
    %v2462 = vpack.c.b16 %v2246, %v2237
    %v2463 = vpack.c.b16 %v2247, %v2238
    %v2464 = vpack.c.b16 %v2248, %v2239
    %v2465 = vpack.c.b16 %v2249, %v2240
    %v2466 = vpack.c.b16 %v2250, %v2241
    %v2467 = vpack.c.b16 %v2251, %v2242
    %v2468 = vpack.c.b16 %v2252, %v2243
    %v2469 = vpack.c.b16 %v2253, %v2244
    %2686 = vmatpush.bf16.msra.mxu0 %v2317
    %2687 = vmatpush.bf16.msra.mxu0 %v2308
    %2688 = vmatpush.bf16.msra.mxu0 %v2299
    %2689 = vmatpush.bf16.msra.mxu0 %v2290
    %2690 = vmatpush.bf16.msra.mxu0 %v2281
    %2691 = vmatpush.bf16.msra.mxu0 %v2272
    %2692 = vmatpush.bf16.msra.mxu0 %v2263
    %2693 = vmatpush.bf16.msra.mxu0 %v2254
    %2694 = vmatmul.bf16.gmra.mxu0 %v1317
    %v2695 = vpop.f32.mrf.mxu0
    %v2696 = vadd.f32 %v1564, %v2695
    %v2697 = vpop.f32.mrf.mxu0
    %2698 = vdwg.mxu0
    %2699 = vmatpush.bf16.msra.mxu0 %v2389
    %2700 = vmatpush.bf16.msra.mxu0 %v2380
    %2701 = vmatpush.bf16.msra.mxu0 %v2371
    %2702 = vmatpush.bf16.msra.mxu0 %v2362
    %2703 = vmatpush.bf16.msra.mxu0 %v2353
    %2704 = vmatpush.bf16.msra.mxu0 %v2344
    %2705 = vmatpush.bf16.msra.mxu0 %v2335
    %2706 = vmatpush.bf16.msra.mxu0 %v2326
    %2707 = vmatmul.bf16.gmra.mxu0 %v1318
    %v2708 = vpop.f32.mrf.mxu0
    %v2709 = vadd.f32 %v2696, %v2708
    %v2710 = vpop.f32.mrf.mxu0
    %2711 = vdwg.mxu0
    %2712 = vmatpush.bf16.msra.mxu0 %v2461
    %2713 = vmatpush.bf16.msra.mxu0 %v2452
    %2714 = vmatpush.bf16.msra.mxu0 %v2443
    %2715 = vmatpush.bf16.msra.mxu0 %v2434
    %2716 = vmatpush.bf16.msra.mxu0 %v2425
    %2717 = vmatpush.bf16.msra.mxu0 %v2416
    %2718 = vmatpush.bf16.msra.mxu0 %v2407
    %2719 = vmatpush.bf16.msra.mxu0 %v2398
    %2720 = vmatmul.bf16.gmra.mxu0 %v1319
    %v2721 = vpop.f32.mrf.mxu0
    %v2722 = vadd.f32 %v2709, %v2721
    %v2723 = vpop.f32.mrf.mxu0
    %2724 = vdwg.mxu0
    %2725 = vmatpush.bf16.msra.mxu0 %v2318
    %2726 = vmatpush.bf16.msra.mxu0 %v2309
    %2727 = vmatpush.bf16.msra.mxu0 %v2300
    %2728 = vmatpush.bf16.msra.mxu0 %v2291
    %2729 = vmatpush.bf16.msra.mxu0 %v2282
    %2730 = vmatpush.bf16.msra.mxu0 %v2273
    %2731 = vmatpush.bf16.msra.mxu0 %v2264
    %2732 = vmatpush.bf16.msra.mxu0 %v2255
    %2733 = vmatmul.bf16.gmra.mxu0 %v1317
    %v2734 = vpop.f32.mrf.mxu0
    %v2735 = vadd.f32 %v1565, %v2734
    %v2736 = vpop.f32.mrf.mxu0
    %2737 = vdwg.mxu0
    %2738 = vmatpush.bf16.msra.mxu0 %v2390
    %2739 = vmatpush.bf16.msra.mxu0 %v2381
    %2740 = vmatpush.bf16.msra.mxu0 %v2372
    %2741 = vmatpush.bf16.msra.mxu0 %v2363
    %2742 = vmatpush.bf16.msra.mxu0 %v2354
    %2743 = vmatpush.bf16.msra.mxu0 %v2345
    %2744 = vmatpush.bf16.msra.mxu0 %v2336
    %2745 = vmatpush.bf16.msra.mxu0 %v2327
    %2746 = vmatmul.bf16.gmra.mxu0 %v1318
    %v2747 = vpop.f32.mrf.mxu0
    %v2748 = vadd.f32 %v2735, %v2747
    %v2749 = vpop.f32.mrf.mxu0
    %2750 = vdwg.mxu0
    %2751 = vmatpush.bf16.msra.mxu0 %v2462
    %2752 = vmatpush.bf16.msra.mxu0 %v2453
    %2753 = vmatpush.bf16.msra.mxu0 %v2444
    %2754 = vmatpush.bf16.msra.mxu0 %v2435
    %2755 = vmatpush.bf16.msra.mxu0 %v2426
    %2756 = vmatpush.bf16.msra.mxu0 %v2417
    %2757 = vmatpush.bf16.msra.mxu0 %v2408
    %2758 = vmatpush.bf16.msra.mxu0 %v2399
    %2759 = vmatmul.bf16.gmra.mxu0 %v1319
    %v2760 = vpop.f32.mrf.mxu0
    %v2761 = vadd.f32 %v2748, %v2760
    %v2762 = vpop.f32.mrf.mxu0
    %2763 = vdwg.mxu0
    %2764 = vmatpush.bf16.msra.mxu0 %v2319
    %2765 = vmatpush.bf16.msra.mxu0 %v2310
    %2766 = vmatpush.bf16.msra.mxu0 %v2301
    %2767 = vmatpush.bf16.msra.mxu0 %v2292
    %2768 = vmatpush.bf16.msra.mxu0 %v2283
    %2769 = vmatpush.bf16.msra.mxu0 %v2274
    %2770 = vmatpush.bf16.msra.mxu0 %v2265
    %2771 = vmatpush.bf16.msra.mxu0 %v2256
    %2772 = vmatmul.bf16.gmra.mxu0 %v1317
    %v2773 = vpop.f32.mrf.mxu0
    %v2774 = vadd.f32 %v1566, %v2773
    %v2775 = vpop.f32.mrf.mxu0
    %2776 = vdwg.mxu0
    %2777 = vmatpush.bf16.msra.mxu0 %v2391
    %2778 = vmatpush.bf16.msra.mxu0 %v2382
    %2779 = vmatpush.bf16.msra.mxu0 %v2373
    %2780 = vmatpush.bf16.msra.mxu0 %v2364
    %2781 = vmatpush.bf16.msra.mxu0 %v2355
    %2782 = vmatpush.bf16.msra.mxu0 %v2346
    %2783 = vmatpush.bf16.msra.mxu0 %v2337
    %2784 = vmatpush.bf16.msra.mxu0 %v2328
    %2785 = vmatmul.bf16.gmra.mxu0 %v1318
    %v2786 = vpop.f32.mrf.mxu0
    %v2787 = vadd.f32 %v2774, %v2786
    %v2788 = vpop.f32.mrf.mxu0
    %2789 = vdwg.mxu0
    %2790 = vmatpush.bf16.msra.mxu0 %v2463
    %2791 = vmatpush.bf16.msra.mxu0 %v2454
    %2792 = vmatpush.bf16.msra.mxu0 %v2445
    %2793 = vmatpush.bf16.msra.mxu0 %v2436
    %2794 = vmatpush.bf16.msra.mxu0 %v2427
    %2795 = vmatpush.bf16.msra.mxu0 %v2418
    %2796 = vmatpush.bf16.msra.mxu0 %v2409
    %2797 = vmatpush.bf16.msra.mxu0 %v2400
    %2798 = vmatmul.bf16.gmra.mxu0 %v1319
    %v2799 = vpop.f32.mrf.mxu0
    %v2800 = vadd.f32 %v2787, %v2799
    %v2801 = vpop.f32.mrf.mxu0
    %2802 = vdwg.mxu0
    %2803 = vmatpush.bf16.msra.mxu0 %v2320
    %2804 = vmatpush.bf16.msra.mxu0 %v2311
    %2805 = vmatpush.bf16.msra.mxu0 %v2302
    %2806 = vmatpush.bf16.msra.mxu0 %v2293
    %2807 = vmatpush.bf16.msra.mxu0 %v2284
    %2808 = vmatpush.bf16.msra.mxu0 %v2275
    %2809 = vmatpush.bf16.msra.mxu0 %v2266
    %2810 = vmatpush.bf16.msra.mxu0 %v2257
    %2811 = vmatmul.bf16.gmra.mxu0 %v1317
    %v2812 = vpop.f32.mrf.mxu0
    %v2813 = vadd.f32 %v1567, %v2812
    %v2814 = vpop.f32.mrf.mxu0
    %2815 = vdwg.mxu0
    %2816 = vmatpush.bf16.msra.mxu0 %v2392
    %2817 = vmatpush.bf16.msra.mxu0 %v2383
    %2818 = vmatpush.bf16.msra.mxu0 %v2374
    %2819 = vmatpush.bf16.msra.mxu0 %v2365
    %2820 = vmatpush.bf16.msra.mxu0 %v2356
    %2821 = vmatpush.bf16.msra.mxu0 %v2347
    %2822 = vmatpush.bf16.msra.mxu0 %v2338
    %2823 = vmatpush.bf16.msra.mxu0 %v2329
    %2824 = vmatmul.bf16.gmra.mxu0 %v1318
    %v2825 = vpop.f32.mrf.mxu0
    %v2826 = vadd.f32 %v2813, %v2825
    %v2827 = vpop.f32.mrf.mxu0
    %2828 = vdwg.mxu0
    %2829 = vmatpush.bf16.msra.mxu0 %v2464
    %2830 = vmatpush.bf16.msra.mxu0 %v2455
    %2831 = vmatpush.bf16.msra.mxu0 %v2446
    %2832 = vmatpush.bf16.msra.mxu0 %v2437
    %2833 = vmatpush.bf16.msra.mxu0 %v2428
    %2834 = vmatpush.bf16.msra.mxu0 %v2419
    %2835 = vmatpush.bf16.msra.mxu0 %v2410
    %2836 = vmatpush.bf16.msra.mxu0 %v2401
    %2837 = vmatmul.bf16.gmra.mxu0 %v1319
    %v2838 = vpop.f32.mrf.mxu0
    %v2839 = vadd.f32 %v2826, %v2838
    %v2840 = vpop.f32.mrf.mxu0
    %2841 = vdwg.mxu0
    %2842 = vmatpush.bf16.msra.mxu0 %v2321
    %2843 = vmatpush.bf16.msra.mxu0 %v2312
    %2844 = vmatpush.bf16.msra.mxu0 %v2303
    %2845 = vmatpush.bf16.msra.mxu0 %v2294
    %2846 = vmatpush.bf16.msra.mxu0 %v2285
    %2847 = vmatpush.bf16.msra.mxu0 %v2276
    %2848 = vmatpush.bf16.msra.mxu0 %v2267
    %2849 = vmatpush.bf16.msra.mxu0 %v2258
    %2850 = vmatmul.bf16.gmra.mxu0 %v1317
    %v2851 = vpop.f32.mrf.mxu0
    %v2852 = vadd.f32 %v1568, %v2851
    %v2853 = vpop.f32.mrf.mxu0
    %2854 = vdwg.mxu0
    %2855 = vmatpush.bf16.msra.mxu0 %v2393
    %2856 = vmatpush.bf16.msra.mxu0 %v2384
    %2857 = vmatpush.bf16.msra.mxu0 %v2375
    %2858 = vmatpush.bf16.msra.mxu0 %v2366
    %2859 = vmatpush.bf16.msra.mxu0 %v2357
    %2860 = vmatpush.bf16.msra.mxu0 %v2348
    %2861 = vmatpush.bf16.msra.mxu0 %v2339
    %2862 = vmatpush.bf16.msra.mxu0 %v2330
    %2863 = vmatmul.bf16.gmra.mxu0 %v1318
    %v2864 = vpop.f32.mrf.mxu0
    %v2865 = vadd.f32 %v2852, %v2864
    %v2866 = vpop.f32.mrf.mxu0
    %2867 = vdwg.mxu0
    %2868 = vmatpush.bf16.msra.mxu0 %v2465
    %2869 = vmatpush.bf16.msra.mxu0 %v2456
    %2870 = vmatpush.bf16.msra.mxu0 %v2447
    %2871 = vmatpush.bf16.msra.mxu0 %v2438
    %2872 = vmatpush.bf16.msra.mxu0 %v2429
    %2873 = vmatpush.bf16.msra.mxu0 %v2420
    %2874 = vmatpush.bf16.msra.mxu0 %v2411
    %2875 = vmatpush.bf16.msra.mxu0 %v2402
    %2876 = vmatmul.bf16.gmra.mxu0 %v1319
    %v2877 = vpop.f32.mrf.mxu0
    %v2878 = vadd.f32 %v2865, %v2877
    %v2879 = vpop.f32.mrf.mxu0
    %2880 = vdwg.mxu0
    %2881 = vmatpush.bf16.msra.mxu0 %v2322
    %2882 = vmatpush.bf16.msra.mxu0 %v2313
    %2883 = vmatpush.bf16.msra.mxu0 %v2304
    %2884 = vmatpush.bf16.msra.mxu0 %v2295
    %2885 = vmatpush.bf16.msra.mxu0 %v2286
    %2886 = vmatpush.bf16.msra.mxu0 %v2277
    %2887 = vmatpush.bf16.msra.mxu0 %v2268
    %2888 = vmatpush.bf16.msra.mxu0 %v2259
    %2889 = vmatmul.bf16.gmra.mxu0 %v1317
    %v2890 = vpop.f32.mrf.mxu0
    %v2891 = vadd.f32 %v1569, %v2890
    %v2892 = vpop.f32.mrf.mxu0
    %2893 = vdwg.mxu0
    %2894 = vmatpush.bf16.msra.mxu0 %v2394
    %2895 = vmatpush.bf16.msra.mxu0 %v2385
    %2896 = vmatpush.bf16.msra.mxu0 %v2376
    %2897 = vmatpush.bf16.msra.mxu0 %v2367
    %2898 = vmatpush.bf16.msra.mxu0 %v2358
    %2899 = vmatpush.bf16.msra.mxu0 %v2349
    %2900 = vmatpush.bf16.msra.mxu0 %v2340
    %2901 = vmatpush.bf16.msra.mxu0 %v2331
    %2902 = vmatmul.bf16.gmra.mxu0 %v1318
    %v2903 = vpop.f32.mrf.mxu0
    %v2904 = vadd.f32 %v2891, %v2903
    %v2905 = vpop.f32.mrf.mxu0
    %2906 = vdwg.mxu0
    %2907 = vmatpush.bf16.msra.mxu0 %v2466
    %2908 = vmatpush.bf16.msra.mxu0 %v2457
    %2909 = vmatpush.bf16.msra.mxu0 %v2448
    %2910 = vmatpush.bf16.msra.mxu0 %v2439
    %2911 = vmatpush.bf16.msra.mxu0 %v2430
    %2912 = vmatpush.bf16.msra.mxu0 %v2421
    %2913 = vmatpush.bf16.msra.mxu0 %v2412
    %2914 = vmatpush.bf16.msra.mxu0 %v2403
    %2915 = vmatmul.bf16.gmra.mxu0 %v1319
    %v2916 = vpop.f32.mrf.mxu0
    %v2917 = vadd.f32 %v2904, %v2916
    %v2918 = vpop.f32.mrf.mxu0
    %2919 = vdwg.mxu0
    %2920 = vmatpush.bf16.msra.mxu0 %v2323
    %2921 = vmatpush.bf16.msra.mxu0 %v2314
    %2922 = vmatpush.bf16.msra.mxu0 %v2305
    %2923 = vmatpush.bf16.msra.mxu0 %v2296
    %2924 = vmatpush.bf16.msra.mxu0 %v2287
    %2925 = vmatpush.bf16.msra.mxu0 %v2278
    %2926 = vmatpush.bf16.msra.mxu0 %v2269
    %2927 = vmatpush.bf16.msra.mxu0 %v2260
    %2928 = vmatmul.bf16.gmra.mxu0 %v1317
    %v2929 = vpop.f32.mrf.mxu0
    %v2930 = vadd.f32 %v1570, %v2929
    %v2931 = vpop.f32.mrf.mxu0
    %2932 = vdwg.mxu0
    %2933 = vmatpush.bf16.msra.mxu0 %v2395
    %2934 = vmatpush.bf16.msra.mxu0 %v2386
    %2935 = vmatpush.bf16.msra.mxu0 %v2377
    %2936 = vmatpush.bf16.msra.mxu0 %v2368
    %2937 = vmatpush.bf16.msra.mxu0 %v2359
    %2938 = vmatpush.bf16.msra.mxu0 %v2350
    %2939 = vmatpush.bf16.msra.mxu0 %v2341
    %2940 = vmatpush.bf16.msra.mxu0 %v2332
    %2941 = vmatmul.bf16.gmra.mxu0 %v1318
    %v2942 = vpop.f32.mrf.mxu0
    %v2943 = vadd.f32 %v2930, %v2942
    %v2944 = vpop.f32.mrf.mxu0
    %2945 = vdwg.mxu0
    %2946 = vmatpush.bf16.msra.mxu0 %v2467
    %2947 = vmatpush.bf16.msra.mxu0 %v2458
    %2948 = vmatpush.bf16.msra.mxu0 %v2449
    %2949 = vmatpush.bf16.msra.mxu0 %v2440
    %2950 = vmatpush.bf16.msra.mxu0 %v2431
    %2951 = vmatpush.bf16.msra.mxu0 %v2422
    %2952 = vmatpush.bf16.msra.mxu0 %v2413
    %2953 = vmatpush.bf16.msra.mxu0 %v2404
    %2954 = vmatmul.bf16.gmra.mxu0 %v1319
    %v2955 = vpop.f32.mrf.mxu0
    %v2956 = vadd.f32 %v2943, %v2955
    %v2957 = vpop.f32.mrf.mxu0
    %2958 = vdwg.mxu0
    %2959 = vmatpush.bf16.msra.mxu0 %v2324
    %2960 = vmatpush.bf16.msra.mxu0 %v2315
    %2961 = vmatpush.bf16.msra.mxu0 %v2306
    %2962 = vmatpush.bf16.msra.mxu0 %v2297
    %2963 = vmatpush.bf16.msra.mxu0 %v2288
    %2964 = vmatpush.bf16.msra.mxu0 %v2279
    %2965 = vmatpush.bf16.msra.mxu0 %v2270
    %2966 = vmatpush.bf16.msra.mxu0 %v2261
    %2967 = vmatmul.bf16.gmra.mxu0 %v1317
    %v2968 = vpop.f32.mrf.mxu0
    %v2969 = vadd.f32 %v1571, %v2968
    %v2970 = vpop.f32.mrf.mxu0
    %2971 = vdwg.mxu0
    %2972 = vmatpush.bf16.msra.mxu0 %v2396
    %2973 = vmatpush.bf16.msra.mxu0 %v2387
    %2974 = vmatpush.bf16.msra.mxu0 %v2378
    %2975 = vmatpush.bf16.msra.mxu0 %v2369
    %2976 = vmatpush.bf16.msra.mxu0 %v2360
    %2977 = vmatpush.bf16.msra.mxu0 %v2351
    %2978 = vmatpush.bf16.msra.mxu0 %v2342
    %2979 = vmatpush.bf16.msra.mxu0 %v2333
    %2980 = vmatmul.bf16.gmra.mxu0 %v1318
    %v2981 = vpop.f32.mrf.mxu0
    %v2982 = vadd.f32 %v2969, %v2981
    %v2983 = vpop.f32.mrf.mxu0
    %2984 = vdwg.mxu0
    %2985 = vmatpush.bf16.msra.mxu0 %v2468
    %2986 = vmatpush.bf16.msra.mxu0 %v2459
    %2987 = vmatpush.bf16.msra.mxu0 %v2450
    %2988 = vmatpush.bf16.msra.mxu0 %v2441
    %2989 = vmatpush.bf16.msra.mxu0 %v2432
    %2990 = vmatpush.bf16.msra.mxu0 %v2423
    %2991 = vmatpush.bf16.msra.mxu0 %v2414
    %2992 = vmatpush.bf16.msra.mxu0 %v2405
    %2993 = vmatmul.bf16.gmra.mxu0 %v1319
    %v2994 = vpop.f32.mrf.mxu0
    %v2995 = vadd.f32 %v2982, %v2994
    %v2996 = vpop.f32.mrf.mxu0
    %2997 = vdwg.mxu0
    %2998 = vmatpush.bf16.msra.mxu0 %v2325
    %2999 = vmatpush.bf16.msra.mxu0 %v2316
    %3000 = vmatpush.bf16.msra.mxu0 %v2307
    %3001 = vmatpush.bf16.msra.mxu0 %v2298
    %3002 = vmatpush.bf16.msra.mxu0 %v2289
    %3003 = vmatpush.bf16.msra.mxu0 %v2280
    %3004 = vmatpush.bf16.msra.mxu0 %v2271
    %3005 = vmatpush.bf16.msra.mxu0 %v2262
    %3006 = vmatmul.bf16.gmra.mxu0 %v1317
    %v3007 = vpop.f32.mrf.mxu0
    %v3008 = vadd.f32 %v1572, %v3007
    %v3009 = vpop.f32.mrf.mxu0
    %3010 = vdwg.mxu0
    %3011 = vmatpush.bf16.msra.mxu0 %v2397
    %3012 = vmatpush.bf16.msra.mxu0 %v2388
    %3013 = vmatpush.bf16.msra.mxu0 %v2379
    %3014 = vmatpush.bf16.msra.mxu0 %v2370
    %3015 = vmatpush.bf16.msra.mxu0 %v2361
    %3016 = vmatpush.bf16.msra.mxu0 %v2352
    %3017 = vmatpush.bf16.msra.mxu0 %v2343
    %3018 = vmatpush.bf16.msra.mxu0 %v2334
    %3019 = vmatmul.bf16.gmra.mxu0 %v1318
    %v3020 = vpop.f32.mrf.mxu0
    %v3021 = vadd.f32 %v3008, %v3020
    %v3022 = vpop.f32.mrf.mxu0
    %3023 = vdwg.mxu0
    %3024 = vmatpush.bf16.msra.mxu0 %v2469
    %3025 = vmatpush.bf16.msra.mxu0 %v2460
    %3026 = vmatpush.bf16.msra.mxu0 %v2451
    %3027 = vmatpush.bf16.msra.mxu0 %v2442
    %3028 = vmatpush.bf16.msra.mxu0 %v2433
    %3029 = vmatpush.bf16.msra.mxu0 %v2424
    %3030 = vmatpush.bf16.msra.mxu0 %v2415
    %3031 = vmatpush.bf16.msra.mxu0 %v2406
    %3032 = vmatmul.bf16.gmra.mxu0 %v1319
    %v3033 = vpop.f32.mrf.mxu0
    %v3034 = vadd.f32 %v3021, %v3033
    %v3035 = vpop.f32.mrf.mxu0
    %3036 = vdwg.mxu0
    %v3037 = vadd.f32 %v1206, %v2722
    %v3038 = vadd.f32 %v1219, %v2761
    %v3039 = vadd.f32 %v1232, %v2800
    %v3040 = vxor.u32 %v3037, 2147483648
    %v3041 = vxor.u32 %v3038, 2147483648
    %v3042 = vxor.u32 %v3039, 2147483648
    %v3043 = vmul.f32 %v3040, 1.442695
    %v3044 = vpow.pop %v3043
    %v3045 = vmul.f32 %v3041, 1.442695
    %v3046 = vpow.pop %v3045
    %v3047 = vmul.f32 %v3042, 1.442695
    %v3048 = vpow.pop %v3047
    %v3049 = vadd.f32 %v3044, 1.0
    %v3050 = vadd.f32 %v3046, 1.0
    %v3051 = vadd.f32 %v3048, 1.0
    %v3052 = vrcp.pop %v3049
    %v3053 = vmul.f32 %v3049, %v3052
    %v3054 = vsub.f32 1.0, %v3053
    %v3055 = vmul.f32 %v3052, %v3054
    %v3056 = vadd.f32 %v3052, %v3055
    %vm3057 = vweird.f32 %v3049
    %vm3058 = vweird.f32 %v3052
    %vm3059 = vmor %vm3057, %vm3058
    %v3060 = vsel %vm3059, %v3052, %v3056
    %v3061 = vand.u32 2147483647, %v3049
    %vm3062 = vcmp.eq.f32.partialorder %v3061, 8.507059e+37
    %v3063 = vand.u32 %v3049, 2147483648
    %v3064 = vor.u32 1.1754944e-38, %v3063
    %v3065 = vsel %vm3062, %v3064, %v3060
    %v3066 = vmul.f32 1.0, %v3065
    %v3067 = vrcp.pop %v3050
    %v3068 = vmul.f32 %v3050, %v3067
    %v3069 = vsub.f32 1.0, %v3068
    %v3070 = vmul.f32 %v3067, %v3069
    %v3071 = vadd.f32 %v3067, %v3070
    %vm3072 = vweird.f32 %v3050
    %vm3073 = vweird.f32 %v3067
    %vm3074 = vmor %vm3072, %vm3073
    %v3075 = vsel %vm3074, %v3067, %v3071
    %v3076 = vand.u32 2147483647, %v3050
    %vm3077 = vcmp.eq.f32.partialorder %v3076, 8.507059e+37
    %v3078 = vand.u32 %v3050, 2147483648
    %v3079 = vor.u32 1.1754944e-38, %v3078
    %v3080 = vsel %vm3077, %v3079, %v3075
    %v3081 = vmul.f32 1.0, %v3080
    %v3082 = vrcp.pop %v3051
    %v3083 = vmul.f32 %v3051, %v3082
    %v3084 = vsub.f32 1.0, %v3083
    %v3085 = vmul.f32 %v3082, %v3084
    %v3086 = vadd.f32 %v3082, %v3085
    %vm3087 = vweird.f32 %v3051
    %vm3088 = vweird.f32 %v3082
    %vm3089 = vmor %vm3087, %vm3088
    %v3090 = vsel %vm3089, %v3082, %v3086
    %v3091 = vand.u32 2147483647, %v3051
    %vm3092 = vcmp.eq.f32.partialorder %v3091, 8.507059e+37
    %v3093 = vand.u32 %v3051, 2147483648
    %v3094 = vor.u32 1.1754944e-38, %v3093
    %v3095 = vsel %vm3092, %v3094, %v3090
    %v3096 = vmul.f32 1.0, %v3095
    %v3097 = vadd.f32 %v1245, %v2839
    %v3098 = vadd.f32 %v1258, %v2878
    %v3099 = vadd.f32 %v1271, %v2917
    %v3100 = vxor.u32 %v3097, 2147483648
    %v3101 = vxor.u32 %v3098, 2147483648
    %v3102 = vxor.u32 %v3099, 2147483648
    %v3103 = vmul.f32 %v3100, 1.442695
    %v3104 = vpow.pop %v3103
    %v3105 = vmul.f32 %v3101, 1.442695
    %v3106 = vpow.pop %v3105
    %v3107 = vmul.f32 %v3102, 1.442695
    %v3108 = vpow.pop %v3107
    %v3109 = vadd.f32 %v3104, 1.0
    %v3110 = vadd.f32 %v3106, 1.0
    %v3111 = vadd.f32 %v3108, 1.0
    %v3112 = vrcp.pop %v3109
    %v3113 = vmul.f32 %v3109, %v3112
    %v3114 = vsub.f32 1.0, %v3113
    %v3115 = vmul.f32 %v3112, %v3114
    %v3116 = vadd.f32 %v3112, %v3115
    %vm3117 = vweird.f32 %v3109
    %vm3118 = vweird.f32 %v3112
    %vm3119 = vmor %vm3117, %vm3118
    %v3120 = vsel %vm3119, %v3112, %v3116
    %v3121 = vand.u32 2147483647, %v3109
    %vm3122 = vcmp.eq.f32.partialorder %v3121, 8.507059e+37
    %v3123 = vand.u32 %v3109, 2147483648
    %v3124 = vor.u32 1.1754944e-38, %v3123
    %v3125 = vsel %vm3122, %v3124, %v3120
    %v3126 = vmul.f32 1.0, %v3125
    %v3127 = vrcp.pop %v3110
    %v3128 = vmul.f32 %v3110, %v3127
    %v3129 = vsub.f32 1.0, %v3128
    %v3130 = vmul.f32 %v3127, %v3129
    %v3131 = vadd.f32 %v3127, %v3130
    %vm3132 = vweird.f32 %v3110
    %vm3133 = vweird.f32 %v3127
    %vm3134 = vmor %vm3132, %vm3133
    %v3135 = vsel %vm3134, %v3127, %v3131
    %v3136 = vand.u32 2147483647, %v3110
    %vm3137 = vcmp.eq.f32.partialorder %v3136, 8.507059e+37
    %v3138 = vand.u32 %v3110, 2147483648
    %v3139 = vor.u32 1.1754944e-38, %v3138
    %v3140 = vsel %vm3137, %v3139, %v3135
    %v3141 = vmul.f32 1.0, %v3140
    %v3142 = vrcp.pop %v3111
    %v3143 = vmul.f32 %v3111, %v3142
    %v3144 = vsub.f32 1.0, %v3143
    %v3145 = vmul.f32 %v3142, %v3144
    %v3146 = vadd.f32 %v3142, %v3145
    %vm3147 = vweird.f32 %v3111
    %vm3148 = vweird.f32 %v3142
    %vm3149 = vmor %vm3147, %vm3148
    %v3150 = vsel %vm3149, %v3142, %v3146
    %v3151 = vand.u32 2147483647, %v3111
    %vm3152 = vcmp.eq.f32.partialorder %v3151, 8.507059e+37
    %v3153 = vand.u32 %v3111, 2147483648
    %v3154 = vor.u32 1.1754944e-38, %v3153
    %v3155 = vsel %vm3152, %v3154, %v3150
    %v3156 = vmul.f32 1.0, %v3155
    %v3157 = vmul.f32 %v3066, %v2956
    %v3158 = vmul.f32 %v3081, %v2995
    %v3159 = vmul.f32 %v3096, %v3034
    %v3160 = vadd.f32 %v1284, %v3157
    %v3161 = vadd.f32 %v1297, %v3158
    %v3162 = vadd.f32 %v1310, %v3159
    %v3163 = vtanh.pop %v3160
    %v3164 = vtanh.pop %v3161
    %v3165 = vtanh.pop %v3162
    %v3166 = vsub.f32 1.0, %v3126
    %v3167 = vsub.f32 1.0, %v3141
    %v3168 = vsub.f32 1.0, %v3156
    %v3169 = vmul.f32 %v3166, %v3163
    %v3170 = vmul.f32 %v3167, %v3164
    %v3171 = vmul.f32 %v3168, %v3165
    %v3172 = vmul.f32 %v3126, %v1005
    %v3173 = vmul.f32 %v3141, %v1057
    %v3174 = vmul.f32 %v3156, %v1109
    %v3175 = vadd.f32 %v3169, %v3172
    %v3176 = vadd.f32 %v3170, %v3173
    %v3177 = vadd.f32 %v3171, %v3174
    %v3178 = vpack.c.bf16 %v3175, %v3175
    %v3179 = vpack.c.bf16 %v3176, %v3176
    %v3180 = vpack.c.bf16 %v3177, %v3177
    %v3181 = vld [vmem:[#allocation18] sm:$0xf]
    %v3182 = vld [vmem:[#allocation18 + $0x4] sm:$0xf]
    %v3183 = vld [vmem:[#allocation18 + $0x8] sm:$0xf]
    %v3184 = vld [vmem:[#allocation18 + $0xc] sm:$0xf]
    %v3185 = vld [vmem:[#allocation18 + $0x10] sm:$0xf]
    %v3186 = vld [vmem:[#allocation18 + $0x14] sm:$0xf]
    %v3187 = vld [vmem:[#allocation18 + $0x18] sm:$0xf]
    %v3188 = vld [vmem:[#allocation18 + $0x1c] sm:$0xf]
    %v3189 = vld [vmem:[#allocation18 + $0x20] sm:$0xf]
    %v3190 = vld [vmem:[#allocation18 + $0x24] sm:$0xf]
    %v3191 = vld [vmem:[#allocation18 + $0x28] sm:$0xf]
    %v3192 = vld [vmem:[#allocation18 + $0x2c] sm:$0xf]
    %v3193 = vld [vmem:[#allocation18 + $0x30] sm:$0xf]
    %v3194 = vld [vmem:[#allocation18 + $0x34] sm:$0xf]
    %v3195 = vld [vmem:[#allocation18 + $0x38] sm:$0xf]
    %v3196 = vld [vmem:[#allocation18 + $0x3c] sm:$0xf]
    %v3197 = vld [vmem:[#allocation18 + $0x40] sm:$0xf]
    %v3198 = vld [vmem:[#allocation18 + $0x44] sm:$0xf]
    %v3199 = vld [vmem:[#allocation18 + $0x48] sm:$0xf]
    %v3200 = vld [vmem:[#allocation18 + $0x4c] sm:$0xf]
    %v3201 = vld [vmem:[#allocation18 + $0x50] sm:$0xf]
    %v3202 = vld [vmem:[#allocation18 + $0x54] sm:$0xf]
    %v3203 = vld [vmem:[#allocation18 + $0x58] sm:$0xf]
    %v3204 = vld [vmem:[#allocation18 + $0x5c] sm:$0xf]
    %v3205 = vld [vmem:[#allocation18 + $0x60] sm:$0xf]
    %v3206 = vld [vmem:[#allocation18 + $0x64] sm:$0xf]
    %v3207 = vld [vmem:[#allocation18 + $0x68] sm:$0xf]
    %v3208 = vld [vmem:[#allocation18 + $0x6c] sm:$0xf]
    %v3209 = vld [vmem:[#allocation18 + $0x70] sm:$0xf]
    %v3210 = vld [vmem:[#allocation18 + $0x74] sm:$0xf]
    %v3211 = vld [vmem:[#allocation18 + $0x78] sm:$0xf]
    %v3212 = vld [vmem:[#allocation18 + $0x7c] sm:$0xf]
    %v3213 = vld [vmem:[#allocation18 + $0x80] sm:$0xf]
    %v3214 = vld [vmem:[#allocation18 + $0x84] sm:$0xf]
    %v3215 = vld [vmem:[#allocation18 + $0x88] sm:$0xf]
    %v3216 = vld [vmem:[#allocation18 + $0x8c] sm:$0xf]
    %v3217 = vld [vmem:[#allocation18 + $0x90] sm:$0xf]
    %v3218 = vld [vmem:[#allocation18 + $0x94] sm:$0xf]
    %v3219 = vld [vmem:[#allocation18 + $0x98] sm:$0xf]
    %v3220 = vld [vmem:[#allocation18 + $0x9c] sm:$0xf]
    %v3221 = vld [vmem:[#allocation18 + $0xa0] sm:$0xf]
    %v3222 = vld [vmem:[#allocation18 + $0xa4] sm:$0xf]
    %v3223 = vld [vmem:[#allocation18 + $0xa8] sm:$0xf]
    %v3224 = vld [vmem:[#allocation18 + $0xac] sm:$0xf]
    %v3225 = vld [vmem:[#allocation18 + $0xb0] sm:$0xf]
    %v3226 = vld [vmem:[#allocation18 + $0xb4] sm:$0xf]
    %v3227 = vld [vmem:[#allocation18 + $0xb8] sm:$0xf]
    %v3228 = vld [vmem:[#allocation18 + $0xbc] sm:$0xf]
    %v3229 = vld [vmem:[%s11] sm:$0x1]
    %v3231 = vperm.slane %v3229, 0
    %v3281 = vunpack.c.l.b16 %v3181
    %v3282 = vunpack.c.l.b16 %v3182
    %v3283 = vunpack.c.l.b16 %v3183
    %v3284 = vunpack.c.l.b16 %v3184
    %v3285 = vunpack.c.l.b16 %v3185
    %v3286 = vunpack.c.l.b16 %v3186
    %v3287 = vunpack.c.l.b16 %v3187
    %v3288 = vunpack.c.l.b16 %v3188
    %v3289 = vunpack.c.l.b16 %v3189
    %v3290 = vunpack.c.l.b16 %v3190
    %v3291 = vunpack.c.l.b16 %v3191
    %v3292 = vunpack.c.l.b16 %v3192
    %v3293 = vunpack.c.l.b16 %v3193
    %v3294 = vunpack.c.l.b16 %v3194
    %v3295 = vunpack.c.l.b16 %v3195
    %v3296 = vunpack.c.l.b16 %v3196
    %v3297 = vunpack.c.l.b16 %v3197
    %v3298 = vunpack.c.l.b16 %v3198
    %v3299 = vunpack.c.l.b16 %v3199
    %v3300 = vunpack.c.l.b16 %v3200
    %v3301 = vunpack.c.l.b16 %v3201
    %v3302 = vunpack.c.l.b16 %v3202
    %v3303 = vunpack.c.l.b16 %v3203
    %v3304 = vunpack.c.l.b16 %v3204
    %v3305 = vunpack.c.l.b16 %v3205
    %v3306 = vunpack.c.l.b16 %v3206
    %v3307 = vunpack.c.l.b16 %v3207
    %v3308 = vunpack.c.l.b16 %v3208
    %v3309 = vunpack.c.l.b16 %v3209
    %v3310 = vunpack.c.l.b16 %v3210
    %v3311 = vunpack.c.l.b16 %v3211
    %v3312 = vunpack.c.l.b16 %v3212
    %v3313 = vunpack.c.l.b16 %v3213
    %v3314 = vunpack.c.l.b16 %v3214
    %v3315 = vunpack.c.l.b16 %v3215
    %v3316 = vunpack.c.l.b16 %v3216
    %v3317 = vunpack.c.l.b16 %v3217
    %v3318 = vunpack.c.l.b16 %v3218
    %v3319 = vunpack.c.l.b16 %v3219
    %v3320 = vunpack.c.l.b16 %v3220
    %v3321 = vunpack.c.l.b16 %v3221
    %v3322 = vunpack.c.l.b16 %v3222
    %v3323 = vunpack.c.l.b16 %v3223
    %v3324 = vunpack.c.l.b16 %v3224
    %v3325 = vunpack.c.l.b16 %v3225
    %v3326 = vunpack.c.l.b16 %v3226
    %v3327 = vunpack.c.l.b16 %v3227
    %v3328 = vunpack.c.l.b16 %v3228
    %v3329 = vpack.c.b16 %v3282, %v3281
    %v3330 = vpack.c.b16 %v3284, %v3283
    %v3331 = vpack.c.b16 %v3286, %v3285
    %v3332 = vpack.c.b16 %v3288, %v3287
    %v3333 = vpack.c.b16 %v3290, %v3289
    %v3334 = vpack.c.b16 %v3292, %v3291
    %v3335 = vpack.c.b16 %v3294, %v3293
    %v3336 = vpack.c.b16 %v3296, %v3295
    %v3337 = vpack.c.b16 %v3298, %v3297
    %v3338 = vpack.c.b16 %v3300, %v3299
    %v3339 = vpack.c.b16 %v3302, %v3301
    %v3340 = vpack.c.b16 %v3304, %v3303
    %v3341 = vpack.c.b16 %v3306, %v3305
    %v3342 = vpack.c.b16 %v3308, %v3307
    %v3343 = vpack.c.b16 %v3310, %v3309
    %v3344 = vpack.c.b16 %v3312, %v3311
    %v3345 = vpack.c.b16 %v3314, %v3313
    %v3346 = vpack.c.b16 %v3316, %v3315
    %v3347 = vpack.c.b16 %v3318, %v3317
    %v3348 = vpack.c.b16 %v3320, %v3319
    %v3349 = vpack.c.b16 %v3322, %v3321
    %v3350 = vpack.c.b16 %v3324, %v3323
    %v3351 = vpack.c.b16 %v3326, %v3325
    %v3352 = vpack.c.b16 %v3328, %v3327
    %3377 = vmatpush.bf16.msra.mxu0 %v3336
    %3378 = vmatpush.bf16.msra.mxu0 %v3335
    %3379 = vmatpush.bf16.msra.mxu0 %v3334
    %3380 = vmatpush.bf16.msra.mxu0 %v3333
    %3381 = vmatpush.bf16.msra.mxu0 %v3332
    %3382 = vmatpush.bf16.msra.mxu0 %v3331
    %3383 = vmatpush.bf16.msra.mxu0 %v3330
    %3384 = vmatpush.bf16.msra.mxu0 %v3329
    %3385 = vmatmul.bf16.gmra.mxu0 %v3178
    %v3386 = vpop.f32.mrf.mxu0
    %v3387 = vadd.f32 %v3231, %v3386
    %v3388 = vpop.f32.mrf.mxu0
    %3389 = vdwg.mxu0
    %3390 = vmatpush.bf16.msra.mxu0 %v3344
    %3391 = vmatpush.bf16.msra.mxu0 %v3343
    %3392 = vmatpush.bf16.msra.mxu0 %v3342
    %3393 = vmatpush.bf16.msra.mxu0 %v3341
    %3394 = vmatpush.bf16.msra.mxu0 %v3340
    %3395 = vmatpush.bf16.msra.mxu0 %v3339
    %3396 = vmatpush.bf16.msra.mxu0 %v3338
    %3397 = vmatpush.bf16.msra.mxu0 %v3337
    %3398 = vmatmul.bf16.gmra.mxu0 %v3179
    %v3399 = vpop.f32.mrf.mxu0
    %v3400 = vadd.f32 %v3387, %v3399
    %v3401 = vpop.f32.mrf.mxu0
    %3402 = vdwg.mxu0
    %3403 = vmatpush.bf16.msra.mxu0 %v3352
    %3404 = vmatpush.bf16.msra.mxu0 %v3351
    %3405 = vmatpush.bf16.msra.mxu0 %v3350
    %3406 = vmatpush.bf16.msra.mxu0 %v3349
    %3407 = vmatpush.bf16.msra.mxu0 %v3348
    %3408 = vmatpush.bf16.msra.mxu0 %v3347
    %3409 = vmatpush.bf16.msra.mxu0 %v3346
    %3410 = vmatpush.bf16.msra.mxu0 %v3345
    %3411 = vmatmul.bf16.gmra.mxu0 %v3180
    %v3412 = vpop.f32.mrf.mxu0
    %v3413 = vadd.f32 %v3400, %v3412
    %v3414 = vpop.f32.mrf.mxu0
    %3415 = vdwg.mxu0
    %v3416 = vtanh.pop %v3413
    %v3417 = vmul.f32 %v3416, 2.0
    %3418 = vst [vmem:[#allocation19] sm:$0xff] %v3417
    // Predicated region
    $region86: #{tpu_custom_call.1} parent=1 // pred_check
      _
    $region87: #{tpu_custom_call.1} parent=1 // pred_check_branch
      %3420 = sbr.rel (0) target = $region89
    $region88: #{tpu_custom_call.1} parent=1 // pred_region
      %3422 = vsyncadd [#allocation6], 0
      %s3424 = sshll.u32 [#allocation19], 4
      %s3425 = int_to_ptr.vmem [resolvable:$true] %s3424
      %s3426 = sshll.u32 %s12, 4
      %s3427 = int_to_ptr.hbm [resolvable:$true] %s3426
      %3429 = dma.vmem_to_hbm [thread:$0]  %s3425, 128, %s3427, [#allocation6]
    $region89: #{tpu_custom_call.1} parent=1 // pred_fallthru
      _
    // Predicated region
    $region90: #{tpu_custom_call.1} parent=1 // pred_check
      _
    $region91: #{tpu_custom_call.1} parent=1 // pred_check_branch
      %3431 = sbr.rel (0) target = $region93
    $region92: #{tpu_custom_call.1} parent=1 // pred_region
      %3433 = dma.done [#allocation6], 128
    $region93: #{tpu_custom_call.1} parent=1 // pred_fallthru
      _
    %3434 = vsyncpa [#allocation5], 1
    %3435 = vsyncpa [#allocation8], 1
    %3436 = vsyncpa [#allocation11], 1
    %3437 = vsyncpa [#allocation14], 1
    %3438 = vsyncpa [#allocation17], 1
    %3439 = vsyncpa [#allocation6], 1
  %3440 = vsyncmov [#allocation3]
  %s3441 = vpop.sfrf %3440
  %p3442 = scmp.eq.s32.totalorder %s3441, 0
  %p3443 = pneg %p3442
  %3445 = shalt.err (%p3443)

</llo_original>
